<compile_context>
chip_gen: v5e
topology: v5e:2x2
jax: 0.10.0
libtpu: 0.0.40
codegen_flags: <defaults>
</compile_context>

<pallas_src>
import jax
import jax.numpy as jnp
from jax.experimental import pallas as pl
from jax.experimental.pallas import tpu as pltpu

# ---------------- config (small synthetic shapes consistent with the module) ---
B = 2                          # batch
IMG = 16                       # img_size
PATCH = 4                      # patch_size
GRID = IMG // PATCH            # 4
NUM_PATCHES = GRID * GRID      # 16
PATCH_DIM = 3 * PATCH * PATCH  # 48
WIDTH = 32                     # ViT width
HEADS = 4
DH = WIDTH // HEADS            # 8
LAYERS = 2                     # transformer layers
NUM_TOKENS = 4                 # VPT prompt tokens
PROMPT_DIM = 32                # prompt_dim
VIS_DIM = 16                   # CLIP joint embedding dim (vis_dim)
OUT_PAD = 128                  # lane-dense output width (proj zero-padded)
WORD_LEN = 8                   # word_len (text tokens, unused in this forward)
NUM_CLASSES = 8                # rows in the precomputed text-embedding table
BASE_CLASS = jnp.array([0, 2, 4, 5], dtype=jnp.int32)
SEQ = 1 + NUM_TOKENS + NUM_PATCHES        # cls + prompts + patches = 21
SEQ_PAD = ((SEQ + 7) // 8) * 8            # 24
HEAD_PAD = 8                              # cls+prompts (5) zero-padded to 8 rows
BL = B * SEQ_PAD                          # 48: rows of the fused activation slab
EPS = 1e-5                                # torch.nn.LayerNorm default eps
NEG = -1e30

# In-sequence row layout per batch item (pad rows placed so every assembly piece
# is 8-row aligned — attention is permutation-equivariant so this is safe):
#   row 0        : cls
#   rows 1..4    : prompt tokens
#   rows 5..7    : padding (masked out as keys, outputs discarded)
#   rows 8..23   : patch tokens


# ------------------------------- fused kernel ----------------------------------
def zegclip_kernel(patches_ref, conv_wt_ref, tok_const_ref, attn_bias_ref,
                   ln_vecs_ref, vec_tab_ref, wide_bias_ref,
                   w_qkv_ref, w_out_ref, w_fc1_ref, w_fc2_ref, proj_ref,
                   o_ref):
    f32 = jnp.float32
    bf16 = jnp.bfloat16
    scale = 1.0 / (DH ** 0.5)

    def ln(v, g, b):
        mu = jnp.mean(v, axis=-1, keepdims=True)
        var = jnp.mean(v * v, axis=-1, keepdims=True) - mu * mu   # one-pass variance
        return (v - mu) * jax.lax.rsqrt(var + EPS) * g + b

    ln_vecs = ln_vecs_ref[...]                        # (4, W)
    ln_pre_g, ln_pre_b = ln_vecs[0:1], ln_vecs[1:2]
    ln_post_g, ln_post_b = ln_vecs[2:3], ln_vecs[3:4]

    tc = tok_const_ref[...]                           # (HEAD_PAD + B*NP, W)
    head_tok = tc[0:HEAD_PAD]                         # cls(post ln_pre) | prompts | zeros
    pos = tc[HEAD_PAD:HEAD_PAD + B * NUM_PATCHES]     # tiled patch positional embeddings

    # patch embedding (conv k=s=PATCH, no bias) as ONE (B*NP,48)@(48,W) bf16 matmul
    pe = jnp.dot(patches_ref[...].astype(bf16), conv_wt_ref[...],
                 preferred_element_type=f32)                          # (B*NP, W)
    patch_tok = ln(pe + pos, ln_pre_g, ln_pre_b)

    # token assembly in registers (no VMEM scratch); every piece is 8-row aligned
    pieces = []
    for b in range(B):
        pieces += [head_tok, patch_tok[b * NUM_PATCHES:(b + 1) * NUM_PATCHES]]
    x = jnp.concatenate(pieces, axis=0)                               # (BL, W)

    # block-diagonal-over-batch + pad-key additive bias, hoisted out of the loop
    bias = attn_bias_ref[...]                                         # (BL, BL)

    # ---- transformer layers (statically unrolled, weights resident in VMEM) ----
    for l in range(LAYERS):
        vt = vec_tab_ref[l]                     # (6, W)  packed LN params / biases
        wb = wide_bias_ref[l]                   # (2, 128) packed wide biases
        ln1_g, ln1_b, b_out = vt[0:1], vt[1:2], vt[2:3]
        ln2_g, ln2_b, b_fc2 = vt[3:4], vt[4:5], vt[5:6]
        b_qkv = wb[0:1, 0:3 * WIDTH]
        b_fc1 = wb[1:2, :]

        # multi-head self-attention: fused lane-dense QKV projection
        xn = ln(x, ln1_g, ln1_b)
        qkv = jnp.dot(xn.astype(bf16), w_qkv_ref[l],
                      preferred_element_type=f32) + b_qkv             # (BL, 3W)
        q = (qkv[:, 0:WIDTH] * scale).astype(bf16)
        k = qkv[:, WIDTH:2 * WIDTH].astype(bf16)
        v = qkv[:, 2 * WIDTH:3 * WIDTH].astype(bf16)

        ctx_heads = []
        for h in range(HEADS):
            sl = slice(h * DH, (h + 1) * DH)
            s = jax.lax.dot_general(q[:, sl], k[:, sl],
                                    (((1,), (1,)), ((), ())),
                                    preferred_element_type=f32) + bias  # (BL, BL)
            s = s - jnp.max(s, axis=-1, keepdims=True)
            p = jnp.exp(s)
            p = p * pl.reciprocal(jnp.sum(p, axis=-1, keepdims=True), approx=True)
            ctx_heads.append(jnp.dot(p.astype(bf16), v[:, sl],
                                     preferred_element_type=f32))       # (BL, DH)
        ctx = jnp.concatenate(ctx_heads, axis=-1)                        # (BL, W)
        attn = jnp.dot(ctx.astype(bf16), w_out_ref[l],
                       preferred_element_type=f32) + b_out
        x = x + attn

        # MLP (QuickGELU as in CLIP); hidden 4W = 128 lanes (lane-dense)
        xn2 = ln(x, ln2_g, ln2_b)
        h1 = jnp.dot(xn2.astype(bf16), w_fc1_ref[l],
                     preferred_element_type=f32) + b_fc1                 # (BL, 4W)
        h1 = h1 * jax.nn.sigmoid(1.702 * h1)
        x = x + jnp.dot(h1.astype(bf16), w_fc2_ref[l],
                        preferred_element_type=f32) + b_fc2

    # ---- ln_post -> @proj (zero-padded to 128 lanes) -> per-token L2 norm ------
    xn = ln(x, ln_post_g, ln_post_b)
    y = jnp.dot(xn.astype(bf16), proj_ref[...],
                preferred_element_type=f32)                              # (BL, 128)
    inv = jax.lax.rsqrt(jnp.sum(y * y, axis=-1, keepdims=True) + 1e-12)
    o_ref[...] = y * inv                                                 # unmasked vst


# ------------------------------- pallas wrapper --------------------------------
ARG_ORDER = ("conv_wt", "tok_const", "attn_bias", "ln_vecs", "vec_tab",
             "wide_bias", "w_qkv", "w_out", "w_fc1", "w_fc2", "proj")


def _full_spec(shape):
    nd = len(shape)
    return pl.BlockSpec(shape, lambda i, _nd=nd: (0,) * _nd)


def fused_forward(patches, kp):
    weights = [kp[name] for name in ARG_ORDER]
    in_specs = [_full_spec(patches.shape)] + [_full_spec(w.shape) for w in weights]
    return pl.pallas_call(
        zegclip_kernel,
        out_shape=jax.ShapeDtypeStruct((BL, OUT_PAD), jnp.float32),
        grid=(1,),
        in_specs=in_specs,
        out_specs=pl.BlockSpec((BL, OUT_PAD), lambda i: (0, 0)),
        compiler_params=pltpu.CompilerParams(dimension_semantics=("arbitrary",)),
    )(patches, *weights)


# ----------------------------- parameters (synthetic) --------------------------
def init_params(key):
    keys = iter(jax.random.split(key, 64))

    def nrm(shape, scale=0.02):
        return (scale * jax.random.normal(next(keys), shape)).astype(jnp.float32)

    p = {}
    p["conv1_w"] = nrm((WIDTH, PATCH_DIM))   # flattened conv kernel, bias-free
    p["class_emb"] = nrm((1, WIDTH))
    p["pos_emb"] = nrm((1 + NUM_PATCHES, WIDTH))
    p["ln_pre_g"] = jnp.ones((1, WIDTH), jnp.float32)
    p["ln_pre_b"] = jnp.zeros((1, WIDTH), jnp.float32)
    p["prompt_emb"] = nrm((NUM_TOKENS, PROMPT_DIM))
    p["prompt_proj_w"] = nrm((PROMPT_DIM, WIDTH))
    p["prompt_proj_b"] = jnp.zeros((1, WIDTH), jnp.float32)
    layers = []
    for _ in range(LAYERS):
        layers.append((
            jnp.ones((1, WIDTH), jnp.float32), jnp.zeros((1, WIDTH), jnp.float32),   # ln1
            nrm((WIDTH, 3 * WIDTH)), jnp.zeros((1, 3 * WIDTH), jnp.float32),         # in_proj (qkv)
            nrm((WIDTH, WIDTH)), jnp.zeros((1, WIDTH), jnp.float32),                 # out_proj
            jnp.ones((1, WIDTH), jnp.float32), jnp.zeros((1, WIDTH), jnp.float32),   # ln2
            nrm((WIDTH, 4 * WIDTH)), jnp.zeros((1, 4 * WIDTH), jnp.float32),         # mlp c_fc
            nrm((4 * WIDTH, WIDTH)), jnp.zeros((1, WIDTH), jnp.float32),             # mlp c_proj
        ))
    p["layers"] = layers
    p["ln_post_g"] = jnp.ones((1, WIDTH), jnp.float32)
    p["ln_post_b"] = jnp.zeros((1, WIDTH), jnp.float32)
    p["proj"] = nrm((WIDTH, VIS_DIM))
    # TODO(synk): original code np.load()s precomputed CLIP text embeddings
    # (load_text_embedding); replaced by a deterministic in-script table.
    p["text_embedding"] = nrm((NUM_CLASSES, VIS_DIM))
    return p


def prepare_params(p):
    """One-time host-side restructuring into kernel-friendly layouts.
    Parameter-only computations (ln_pre of the cls token, prompt projection)
    are precomputed here; everything input-dependent stays in the kernel."""
    bf16 = jnp.bfloat16
    kp = {}
    kp["conv_wt"] = p["conv1_w"].T.astype(bf16)                          # (48, W)

    def ln_host(v, g, b):
        mu = jnp.mean(v, axis=-1, keepdims=True)
        var = jnp.mean((v - mu) ** 2, axis=-1, keepdims=True)
        return (v - mu) * jax.lax.rsqrt(var + EPS) * g + b

    # cls token: ln_pre(class_emb + pos_emb[0]); prompts: prompt_proj(prompt_emb)
    # inserted AFTER ln_pre (matches VPT-CLIP ordering).
    cls_tok = ln_host(p["class_emb"] + p["pos_emb"][0:1], p["ln_pre_g"], p["ln_pre_b"])
    prompt_tok = p["prompt_emb"] @ p["prompt_proj_w"] + p["prompt_proj_b"]
    head = jnp.concatenate([cls_tok, prompt_tok], axis=0)                # (5, W)
    head = jnp.pad(head, ((0, HEAD_PAD - head.shape[0]), (0, 0)))        # (8, W)
    pos_tiled = jnp.tile(p["pos_emb"][1:], (B, 1))                       # (B*NP, W)
    kp["tok_const"] = jnp.concatenate([head, pos_tiled], axis=0).astype(jnp.float32)

    # additive attention bias: block-diagonal over the flattened batch + pad-key mask
    r = jnp.arange(SEQ_PAD)
    real_row = (r < 1 + NUM_TOKENS) | (r >= HEAD_PAD)                    # (24,)
    real_key = jnp.tile(real_row, (B,))                                  # (48,)
    idx = jnp.arange(BL)
    same_b = (idx[:, None] // SEQ_PAD) == (idx[None, :] // SEQ_PAD)
    kp["attn_bias"] = jnp.where(same_b & real_key[None, :], 0.0, NEG).astype(jnp.float32)

    kp["ln_vecs"] = jnp.concatenate(
        [p["ln_pre_g"], p["ln_pre_b"], p["ln_post_g"], p["ln_post_b"]], axis=0)  # (4, W)

    def stack(fn):
        return jnp.stack([fn(lp) for lp in p["layers"]], axis=0)

    kp["w_qkv"] = stack(lambda lp: lp[2]).astype(bf16)       # (L, W, 3W)
    kp["w_out"] = stack(lambda lp: lp[4]).astype(bf16)       # (L, W, W)
    kp["w_fc1"] = stack(lambda lp: lp[8]).astype(bf16)       # (L, W, 4W)
    kp["w_fc2"] = stack(lambda lp: lp[10]).astype(bf16)      # (L, 4W, W)
    # packed per-layer (1, W) vectors: [ln1_g, ln1_b, b_out, ln2_g, ln2_b, b_fc2]
    kp["vec_tab"] = stack(lambda lp: jnp.concatenate(
        [lp[0], lp[1], lp[5], lp[6], lp[7], lp[11]], axis=0))            # (L, 6, W)

    def pad_lanes(v, n=OUT_PAD):
        return jnp.pad(v, ((0, 0), (0, n - v.shape[1])))

    # wide biases padded to 128 lanes: row 0 = b_qkv (96->128), row 1 = b_fc1 (128)
    kp["wide_bias"] = stack(lambda lp: jnp.concatenate(
        [pad_lanes(lp[3]), pad_lanes(lp[9])], axis=0))                   # (L, 2, 128)

    # proj zero-padded to 128 output lanes -> lane-dense final store
    kp["proj"] = pad_lanes(p["proj"]).astype(bf16)                       # (W, 128)
    kp["text_embedding"] = p["text_embedding"]
    return kp


# --------------------------------- forward ------------------------------------
def zegclip_forward(kp, img, word):
    del word  # text path uses the precomputed text-embedding table (text_encoder unused)
    Bsz = img.shape[0]

    # patch embedding: conv(kernel=stride=PATCH, no bias) == unfold + matmul (in-kernel)
    patches = img.reshape(Bsz, 3, GRID, PATCH, GRID, PATCH)
    patches = patches.transpose(0, 2, 4, 1, 3, 5).reshape(Bsz * NUM_PATCHES, PATCH_DIM)

    y = fused_forward(patches, kp)                          # (B*SEQ_PAD, 128)
    y = y.reshape(Bsz, SEQ_PAD, OUT_PAD)[:, :, :VIS_DIM]    # drop lane padding

    global_embedding = y[:, 0]                              # (B, VIS_DIM), L2-normalized
    visual_embedding = y[:, HEAD_PAD:HEAD_PAD + NUM_PATCHES]
    visual_embedding = visual_embedding.reshape(Bsz, GRID, GRID, VIS_DIM)
    visual_embedding = visual_embedding.transpose(0, 3, 1, 2)   # NCHW, matches PyTorch

    vis = [(visual_embedding,), global_embedding]               # img-encoder outputs
    text_feat = kp["text_embedding"][BASE_CLASS, :]             # text_feat[base_class, :]
    return [vis, text_feat]


# ----------------------------------- main --------------------------------------
if __name__ == "__main__":
    key = jax.random.PRNGKey(0)
    pkey, ikey, wkey = jax.random.split(key, 3)
    params = init_params(pkey)
    kparams = prepare_params(params)

    img = jax.random.normal(ikey, (B, 3, IMG, IMG), dtype=jnp.float32)
    word = jax.random.randint(wkey, (B, WORD_LEN), 0, 100, dtype=jnp.int32)

    fwd = jax.jit(zegclip_forward)
    feat = jax.block_until_ready(fwd(kparams, img, word))

    (features, global_emb), text_feat = feat
    assert features[0].shape == (B, VIS_DIM, GRID, GRID)
    assert global_emb.shape == (B, VIS_DIM)
    assert text_feat.shape == (int(BASE_CLASS.shape[0]), VIS_DIM)
    print("KERNEL_OK")
</pallas_src>

<mosaic_0001>
module attributes {stable_mosaic.version = 11 : i64} {
  func.func @zegclip_kernel(%arg0: i32, %arg1: memref<32x48xf32, #tpu.memory_space<vmem>>, %arg2: memref<48x32xbf16, #tpu.memory_space<vmem>>, %arg3: memref<40x32xf32, #tpu.memory_space<vmem>>, %arg4: memref<48x48xf32, #tpu.memory_space<vmem>>, %arg5: memref<4x32xf32, #tpu.memory_space<vmem>>, %arg6: memref<2x6x32xf32, #tpu.memory_space<vmem>>, %arg7: memref<2x2x128xf32, #tpu.memory_space<vmem>>, %arg8: memref<2x32x96xbf16, #tpu.memory_space<vmem>>, %arg9: memref<2x32x32xbf16, #tpu.memory_space<vmem>>, %arg10: memref<2x32x128xbf16, #tpu.memory_space<vmem>>, %arg11: memref<2x128x32xbf16, #tpu.memory_space<vmem>>, %arg12: memref<32x128xbf16, #tpu.memory_space<vmem>>, %arg13: memref<48x128xf32, #tpu.memory_space<vmem>>) attributes {dimension_semantics = [#tpu.dimension_semantics<arbitrary>], iteration_bounds = array<i64: 1>, scalar_prefetch = 0 : i64, scratch_operands = 0 : i64, tpu.core_type = #tpu.core_type<tc>, window_params = [{pipeline_mode = #tpu.pipeline_mode<synchronous>, transform_indices = @transform_0, window_bounds = array<i64: 32, 48>}, {pipeline_mode = #tpu.pipeline_mode<synchronous>, transform_indices = @transform_1, window_bounds = array<i64: 48, 32>}, {pipeline_mode = #tpu.pipeline_mode<synchronous>, transform_indices = @transform_2, window_bounds = array<i64: 40, 32>}, {pipeline_mode = #tpu.pipeline_mode<synchronous>, transform_indices = @transform_3, window_bounds = array<i64: 48, 48>}, {pipeline_mode = #tpu.pipeline_mode<synchronous>, transform_indices = @transform_4, window_bounds = array<i64: 4, 32>}, {pipeline_mode = #tpu.pipeline_mode<synchronous>, transform_indices = @transform_5, window_bounds = array<i64: 2, 6, 32>}, {pipeline_mode = #tpu.pipeline_mode<synchronous>, transform_indices = @transform_6, window_bounds = array<i64: 2, 2, 128>}, {pipeline_mode = #tpu.pipeline_mode<synchronous>, transform_indices = @transform_7, window_bounds = array<i64: 2, 32, 96>}, {pipeline_mode = #tpu.pipeline_mode<synchronous>, transform_indices = @transform_8, window_bounds = array<i64: 2, 32, 32>}, {pipeline_mode = #tpu.pipeline_mode<synchronous>, transform_indices = @transform_9, window_bounds = array<i64: 2, 32, 128>}, {pipeline_mode = #tpu.pipeline_mode<synchronous>, transform_indices = @transform_10, window_bounds = array<i64: 2, 128, 32>}, {pipeline_mode = #tpu.pipeline_mode<synchronous>, transform_indices = @transform_11, window_bounds = array<i64: 32, 128>}, {pipeline_mode = #tpu.pipeline_mode<synchronous>, transform_indices = @transform_12, window_bounds = array<i64: 48, 128>}]} {
    %c0 = arith.constant 0 : index
    %c0_0 = arith.constant 0 : index
    %0 = vector.load %arg5[%c0, %c0_0] : memref<4x32xf32, #tpu.memory_space<vmem>>, vector<4x32xf32>
    %1 = vector.extract_strided_slice %0 {offsets = [0, 0], sizes = [1, 32], strides = [1, 1]} : vector<4x32xf32> to vector<1x32xf32>
    %2 = vector.extract_strided_slice %0 {offsets = [1, 0], sizes = [1, 32], strides = [1, 1]} : vector<4x32xf32> to vector<1x32xf32>
    %3 = vector.extract_strided_slice %0 {offsets = [2, 0], sizes = [1, 32], strides = [1, 1]} : vector<4x32xf32> to vector<1x32xf32>
    %4 = vector.extract_strided_slice %0 {offsets = [3, 0], sizes = [1, 32], strides = [1, 1]} : vector<4x32xf32> to vector<1x32xf32>
    %c0_1 = arith.constant 0 : index
    %c0_2 = arith.constant 0 : index
    %5 = vector.load %arg3[%c0_1, %c0_2] : memref<40x32xf32, #tpu.memory_space<vmem>>, vector<40x32xf32>
    %6 = vector.extract_strided_slice %5 {offsets = [0, 0], sizes = [8, 32], strides = [1, 1]} : vector<40x32xf32> to vector<8x32xf32>
    %7 = vector.extract_strided_slice %5 {offsets = [8, 0], sizes = [32, 32], strides = [1, 1]} : vector<40x32xf32> to vector<32x32xf32>
    %c0_3 = arith.constant 0 : index
    %c0_4 = arith.constant 0 : index
    %8 = vector.load %arg1[%c0_3, %c0_4] : memref<32x48xf32, #tpu.memory_space<vmem>>, vector<32x48xf32>
    %9 = arith.truncf %8 : vector<32x48xf32> to vector<32x48xbf16>
    %c0_5 = arith.constant 0 : index
    %c0_6 = arith.constant 0 : index
    %10 = vector.load %arg2[%c0_5, %c0_6] : memref<48x32xbf16, #tpu.memory_space<vmem>>, vector<48x32xbf16>
    %cst = arith.constant dense<0.000000e+00> : vector<32x32xf32>
    %11 = tpu.matmul %9, %10, %cst {dimension_numbers = #tpu.dot_dimension_numbers<[1], [0], [0], [1], [0, 0, 1, 1], [], []>} : vector<32x48xbf16>, vector<48x32xbf16>, vector<32x32xf32> -> vector<32x32xf32>
    %12 = arith.addf %11, %7 : vector<32x32xf32>
    %cst_7 = arith.constant dense<0.000000e+00> : vector<32xf32>
    %13 = vector.multi_reduction <add>, %12, %cst_7 [1] : vector<32x32xf32> to vector<32xf32>
    %14 = vector.shape_cast %13 : vector<32xf32> to vector<32x1xf32>
    %cst_8 = arith.constant 3.200000e+01 : f32
    %15 = vector.broadcast %cst_8 : f32 to vector<32x1xf32>
    %16 = arith.divf %14, %15 : vector<32x1xf32>
    %17 = arith.mulf %12, %12 : vector<32x32xf32>
    %cst_9 = arith.constant dense<0.000000e+00> : vector<32xf32>
    %18 = vector.multi_reduction <add>, %17, %cst_9 [1] : vector<32x32xf32> to vector<32xf32>
    %19 = vector.shape_cast %18 : vector<32xf32> to vector<32x1xf32>
    %cst_10 = arith.constant 3.200000e+01 : f32
    %20 = vector.broadcast %cst_10 : f32 to vector<32x1xf32>
    %21 = arith.divf %19, %20 : vector<32x1xf32>
    %22 = arith.mulf %16, %16 : vector<32x1xf32>
    %23 = arith.subf %21, %22 : vector<32x1xf32>
    %24 = vector.broadcast %16 : vector<32x1xf32> to vector<32x32xf32>
    %25 = arith.subf %12, %24 : vector<32x32xf32>
    %cst_11 = arith.constant 9.99999974E-6 : f32
    %26 = vector.broadcast %cst_11 : f32 to vector<32x1xf32>
    %27 = arith.addf %23, %26 : vector<32x1xf32>
    %28 = math.rsqrt %27 : vector<32x1xf32>
    %29 = vector.broadcast %28 : vector<32x1xf32> to vector<32x32xf32>
    %30 = arith.mulf %25, %29 : vector<32x32xf32>
    %31 = vector.broadcast %1 : vector<1x32xf32> to vector<32x32xf32>
    %32 = arith.mulf %30, %31 : vector<32x32xf32>
    %33 = vector.broadcast %2 : vector<1x32xf32> to vector<32x32xf32>
    %34 = arith.addf %32, %33 : vector<32x32xf32>
    %35 = vector.extract_strided_slice %34 {offsets = [0, 0], sizes = [16, 32], strides = [1, 1]} : vector<32x32xf32> to vector<16x32xf32>
    %36 = vector.extract_strided_slice %34 {offsets = [16, 0], sizes = [16, 32], strides = [1, 1]} : vector<32x32xf32> to vector<16x32xf32>
    %37 = tpu.concatenate %6, %35, %6, %36 in 0 : vector<8x32xf32>, vector<16x32xf32>, vector<8x32xf32>, vector<16x32xf32> -> vector<48x32xf32>
    %c0_12 = arith.constant 0 : index
    %c0_13 = arith.constant 0 : index
    %38 = vector.load %arg4[%c0_12, %c0_13] : memref<48x48xf32, #tpu.memory_space<vmem>>, vector<48x48xf32>
    %c0_14 = arith.constant 0 : index
    %c0_15 = arith.constant 0 : index
    %c0_16 = arith.constant 0 : index
    %39 = vector.load %arg6[%c0_14, %c0_15, %c0_16] : memref<2x6x32xf32, #tpu.memory_space<vmem>>, vector<1x6x32xf32>
    %40 = vector.shape_cast %39 : vector<1x6x32xf32> to vector<6x32xf32>
    %c0_17 = arith.constant 0 : index
    %c0_18 = arith.constant 0 : index
    %c0_19 = arith.constant 0 : index
    %41 = vector.load %arg7[%c0_17, %c0_18, %c0_19] : memref<2x2x128xf32, #tpu.memory_space<vmem>>, vector<1x2x128xf32>
    %42 = vector.shape_cast %41 : vector<1x2x128xf32> to vector<2x128xf32>
    %43 = vector.extract_strided_slice %40 {offsets = [0, 0], sizes = [1, 32], strides = [1, 1]} : vector<6x32xf32> to vector<1x32xf32>
    %44 = vector.extract_strided_slice %40 {offsets = [1, 0], sizes = [1, 32], strides = [1, 1]} : vector<6x32xf32> to vector<1x32xf32>
    %45 = vector.extract_strided_slice %40 {offsets = [2, 0], sizes = [1, 32], strides = [1, 1]} : vector<6x32xf32> to vector<1x32xf32>
    %46 = vector.extract_strided_slice %40 {offsets = [3, 0], sizes = [1, 32], strides = [1, 1]} : vector<6x32xf32> to vector<1x32xf32>
    %47 = vector.extract_strided_slice %40 {offsets = [4, 0], sizes = [1, 32], strides = [1, 1]} : vector<6x32xf32> to vector<1x32xf32>
    %48 = vector.extract_strided_slice %40 {offsets = [5, 0], sizes = [1, 32], strides = [1, 1]} : vector<6x32xf32> to vector<1x32xf32>
    %49 = vector.extract_strided_slice %42 {offsets = [0, 0], sizes = [1, 96], strides = [1, 1]} : vector<2x128xf32> to vector<1x96xf32>
    %50 = vector.extract_strided_slice %42 {offsets = [1, 0], sizes = [1, 128], strides = [1, 1]} : vector<2x128xf32> to vector<1x128xf32>
    %cst_20 = arith.constant dense<0.000000e+00> : vector<48xf32>
    %51 = vector.multi_reduction <add>, %37, %cst_20 [1] : vector<48x32xf32> to vector<48xf32>
    %52 = vector.shape_cast %51 : vector<48xf32> to vector<48x1xf32>
    %cst_21 = arith.constant 3.200000e+01 : f32
    %53 = vector.broadcast %cst_21 : f32 to vector<48x1xf32>
    %54 = arith.divf %52, %53 : vector<48x1xf32>
    %55 = arith.mulf %37, %37 : vector<48x32xf32>
    %cst_22 = arith.constant dense<0.000000e+00> : vector<48xf32>
    %56 = vector.multi_reduction <add>, %55, %cst_22 [1] : vector<48x32xf32> to vector<48xf32>
    %57 = vector.shape_cast %56 : vector<48xf32> to vector<48x1xf32>
    %cst_23 = arith.constant 3.200000e+01 : f32
    %58 = vector.broadcast %cst_23 : f32 to vector<48x1xf32>
    %59 = arith.divf %57, %58 : vector<48x1xf32>
    %60 = arith.mulf %54, %54 : vector<48x1xf32>
    %61 = arith.subf %59, %60 : vector<48x1xf32>
    %62 = vector.broadcast %54 : vector<48x1xf32> to vector<48x32xf32>
    %63 = arith.subf %37, %62 : vector<48x32xf32>
    %cst_24 = arith.constant 9.99999974E-6 : f32
    %64 = vector.broadcast %cst_24 : f32 to vector<48x1xf32>
    %65 = arith.addf %61, %64 : vector<48x1xf32>
    %66 = math.rsqrt %65 : vector<48x1xf32>
    %67 = vector.broadcast %66 : vector<48x1xf32> to vector<48x32xf32>
    %68 = arith.mulf %63, %67 : vector<48x32xf32>
    %69 = vector.broadcast %43 : vector<1x32xf32> to vector<48x32xf32>
    %70 = arith.mulf %68, %69 : vector<48x32xf32>
    %71 = vector.broadcast %44 : vector<1x32xf32> to vector<48x32xf32>
    %72 = arith.addf %70, %71 : vector<48x32xf32>
    %73 = arith.truncf %72 : vector<48x32xf32> to vector<48x32xbf16>
    %c0_25 = arith.constant 0 : index
    %c0_26 = arith.constant 0 : index
    %c0_27 = arith.constant 0 : index
    %74 = vector.load %arg8[%c0_25, %c0_26, %c0_27] : memref<2x32x96xbf16, #tpu.memory_space<vmem>>, vector<1x32x96xbf16>
    %75 = vector.shape_cast %74 : vector<1x32x96xbf16> to vector<32x96xbf16>
    %cst_28 = arith.constant dense<0.000000e+00> : vector<48x96xf32>
    %76 = tpu.matmul %73, %75, %cst_28 {dimension_numbers = #tpu.dot_dimension_numbers<[1], [0], [0], [1], [0, 0, 1, 1], [], []>} : vector<48x32xbf16>, vector<32x96xbf16>, vector<48x96xf32> -> vector<48x96xf32>
    %77 = vector.broadcast %49 : vector<1x96xf32> to vector<48x96xf32>
    %78 = arith.addf %76, %77 : vector<48x96xf32>
    %79 = vector.extract_strided_slice %78 {offsets = [0, 0], sizes = [48, 32], strides = [1, 1]} : vector<48x96xf32> to vector<48x32xf32>
    %cst_29 = arith.constant 0.353553385 : f32
    %80 = vector.broadcast %cst_29 : f32 to vector<48x32xf32>
    %81 = arith.mulf %79, %80 : vector<48x32xf32>
    %82 = arith.truncf %81 : vector<48x32xf32> to vector<48x32xbf16>
    %83 = vector.extract_strided_slice %78 {offsets = [0, 32], sizes = [48, 32], strides = [1, 1]} : vector<48x96xf32> to vector<48x32xf32>
    %84 = arith.truncf %83 : vector<48x32xf32> to vector<48x32xbf16>
    %85 = vector.extract_strided_slice %78 {offsets = [0, 64], sizes = [48, 32], strides = [1, 1]} : vector<48x96xf32> to vector<48x32xf32>
    %86 = arith.truncf %85 : vector<48x32xf32> to vector<48x32xbf16>
    %87 = vector.extract_strided_slice %82 {offsets = [0, 0], sizes = [48, 8], strides = [1, 1]} : vector<48x32xbf16> to vector<48x8xbf16>
    %88 = vector.extract_strided_slice %84 {offsets = [0, 0], sizes = [48, 8], strides = [1, 1]} : vector<48x32xbf16> to vector<48x8xbf16>
    %cst_30 = arith.constant dense<0.000000e+00> : vector<48x48xf32>
    %89 = tpu.matmul %87, %88, %cst_30 {dimension_numbers = #tpu.dot_dimension_numbers<[1], [1], [0], [0], [0, 0, 1, 0], [], []>} : vector<48x8xbf16>, vector<48x8xbf16>, vector<48x48xf32> -> vector<48x48xf32>
    %90 = arith.addf %89, %38 : vector<48x48xf32>
    %cst_31 = arith.constant dense<0xFF800000> : vector<48xf32>
    %91 = vector.multi_reduction <maximumf>, %90, %cst_31 [1] : vector<48x48xf32> to vector<48xf32>
    %92 = vector.shape_cast %91 : vector<48xf32> to vector<48x1xf32>
    %93 = vector.broadcast %92 : vector<48x1xf32> to vector<48x48xf32>
    %94 = arith.subf %90, %93 : vector<48x48xf32>
    %95 = math.exp %94 : vector<48x48xf32>
    %cst_32 = arith.constant dense<0.000000e+00> : vector<48xf32>
    %96 = vector.multi_reduction <add>, %95, %cst_32 [1] : vector<48x48xf32> to vector<48xf32>
    %97 = vector.shape_cast %96 : vector<48xf32> to vector<48x1xf32>
    %98 = tpu.reciprocal %97 {approx = true} : vector<48x1xf32> -> vector<48x1xf32>
    %99 = vector.broadcast %98 : vector<48x1xf32> to vector<48x48xf32>
    %100 = arith.mulf %95, %99 : vector<48x48xf32>
    %101 = arith.truncf %100 : vector<48x48xf32> to vector<48x48xbf16>
    %102 = vector.extract_strided_slice %86 {offsets = [0, 0], sizes = [48, 8], strides = [1, 1]} : vector<48x32xbf16> to vector<48x8xbf16>
    %cst_33 = arith.constant dense<0.000000e+00> : vector<48x8xf32>
    %103 = tpu.matmul %101, %102, %cst_33 {dimension_numbers = #tpu.dot_dimension_numbers<[1], [0], [0], [1], [0, 0, 1, 1], [], []>} : vector<48x48xbf16>, vector<48x8xbf16>, vector<48x8xf32> -> vector<48x8xf32>
    %104 = vector.extract_strided_slice %82 {offsets = [0, 8], sizes = [48, 8], strides = [1, 1]} : vector<48x32xbf16> to vector<48x8xbf16>
    %105 = vector.extract_strided_slice %84 {offsets = [0, 8], sizes = [48, 8], strides = [1, 1]} : vector<48x32xbf16> to vector<48x8xbf16>
    %cst_34 = arith.constant dense<0.000000e+00> : vector<48x48xf32>
    %106 = tpu.matmul %104, %105, %cst_34 {dimension_numbers = #tpu.dot_dimension_numbers<[1], [1], [0], [0], [0, 0, 1, 0], [], []>} : vector<48x8xbf16>, vector<48x8xbf16>, vector<48x48xf32> -> vector<48x48xf32>
    %107 = arith.addf %106, %38 : vector<48x48xf32>
    %cst_35 = arith.constant dense<0xFF800000> : vector<48xf32>
    %108 = vector.multi_reduction <maximumf>, %107, %cst_35 [1] : vector<48x48xf32> to vector<48xf32>
    %109 = vector.shape_cast %108 : vector<48xf32> to vector<48x1xf32>
    %110 = vector.broadcast %109 : vector<48x1xf32> to vector<48x48xf32>
    %111 = arith.subf %107, %110 : vector<48x48xf32>
    %112 = math.exp %111 : vector<48x48xf32>
    %cst_36 = arith.constant dense<0.000000e+00> : vector<48xf32>
    %113 = vector.multi_reduction <add>, %112, %cst_36 [1] : vector<48x48xf32> to vector<48xf32>
    %114 = vector.shape_cast %113 : vector<48xf32> to vector<48x1xf32>
    %115 = tpu.reciprocal %114 {approx = true} : vector<48x1xf32> -> vector<48x1xf32>
    %116 = vector.broadcast %115 : vector<48x1xf32> to vector<48x48xf32>
    %117 = arith.mulf %112, %116 : vector<48x48xf32>
    %118 = arith.truncf %117 : vector<48x48xf32> to vector<48x48xbf16>
    %119 = vector.extract_strided_slice %86 {offsets = [0, 8], sizes = [48, 8], strides = [1, 1]} : vector<48x32xbf16> to vector<48x8xbf16>
    %cst_37 = arith.constant dense<0.000000e+00> : vector<48x8xf32>
    %120 = tpu.matmul %118, %119, %cst_37 {dimension_numbers = #tpu.dot_dimension_numbers<[1], [0], [0], [1], [0, 0, 1, 1], [], []>} : vector<48x48xbf16>, vector<48x8xbf16>, vector<48x8xf32> -> vector<48x8xf32>
    %121 = vector.extract_strided_slice %82 {offsets = [0, 16], sizes = [48, 8], strides = [1, 1]} : vector<48x32xbf16> to vector<48x8xbf16>
    %122 = vector.extract_strided_slice %84 {offsets = [0, 16], sizes = [48, 8], strides = [1, 1]} : vector<48x32xbf16> to vector<48x8xbf16>
    %cst_38 = arith.constant dense<0.000000e+00> : vector<48x48xf32>
    %123 = tpu.matmul %121, %122, %cst_38 {dimension_numbers = #tpu.dot_dimension_numbers<[1], [1], [0], [0], [0, 0, 1, 0], [], []>} : vector<48x8xbf16>, vector<48x8xbf16>, vector<48x48xf32> -> vector<48x48xf32>
    %124 = arith.addf %123, %38 : vector<48x48xf32>
    %cst_39 = arith.constant dense<0xFF800000> : vector<48xf32>
    %125 = vector.multi_reduction <maximumf>, %124, %cst_39 [1] : vector<48x48xf32> to vector<48xf32>
    %126 = vector.shape_cast %125 : vector<48xf32> to vector<48x1xf32>
    %127 = vector.broadcast %126 : vector<48x1xf32> to vector<48x48xf32>
    %128 = arith.subf %124, %127 : vector<48x48xf32>
    %129 = math.exp %128 : vector<48x48xf32>
    %cst_40 = arith.constant dense<0.000000e+00> : vector<48xf32>
    %130 = vector.multi_reduction <add>, %129, %cst_40 [1] : vector<48x48xf32> to vector<48xf32>
    %131 = vector.shape_cast %130 : vector<48xf32> to vector<48x1xf32>
    %132 = tpu.reciprocal %131 {approx = true} : vector<48x1xf32> -> vector<48x1xf32>
    %133 = vector.broadcast %132 : vector<48x1xf32> to vector<48x48xf32>
    %134 = arith.mulf %129, %133 : vector<48x48xf32>
    %135 = arith.truncf %134 : vector<48x48xf32> to vector<48x48xbf16>
    %136 = vector.extract_strided_slice %86 {offsets = [0, 16], sizes = [48, 8], strides = [1, 1]} : vector<48x32xbf16> to vector<48x8xbf16>
    %cst_41 = arith.constant dense<0.000000e+00> : vector<48x8xf32>
    %137 = tpu.matmul %135, %136, %cst_41 {dimension_numbers = #tpu.dot_dimension_numbers<[1], [0], [0], [1], [0, 0, 1, 1], [], []>} : vector<48x48xbf16>, vector<48x8xbf16>, vector<48x8xf32> -> vector<48x8xf32>
    %138 = vector.extract_strided_slice %82 {offsets = [0, 24], sizes = [48, 8], strides = [1, 1]} : vector<48x32xbf16> to vector<48x8xbf16>
    %139 = vector.extract_strided_slice %84 {offsets = [0, 24], sizes = [48, 8], strides = [1, 1]} : vector<48x32xbf16> to vector<48x8xbf16>
    %cst_42 = arith.constant dense<0.000000e+00> : vector<48x48xf32>
    %140 = tpu.matmul %138, %139, %cst_42 {dimension_numbers = #tpu.dot_dimension_numbers<[1], [1], [0], [0], [0, 0, 1, 0], [], []>} : vector<48x8xbf16>, vector<48x8xbf16>, vector<48x48xf32> -> vector<48x48xf32>
    %141 = arith.addf %140, %38 : vector<48x48xf32>
    %cst_43 = arith.constant dense<0xFF800000> : vector<48xf32>
    %142 = vector.multi_reduction <maximumf>, %141, %cst_43 [1] : vector<48x48xf32> to vector<48xf32>
    %143 = vector.shape_cast %142 : vector<48xf32> to vector<48x1xf32>
    %144 = vector.broadcast %143 : vector<48x1xf32> to vector<48x48xf32>
    %145 = arith.subf %141, %144 : vector<48x48xf32>
    %146 = math.exp %145 : vector<48x48xf32>
    %cst_44 = arith.constant dense<0.000000e+00> : vector<48xf32>
    %147 = vector.multi_reduction <add>, %146, %cst_44 [1] : vector<48x48xf32> to vector<48xf32>
    %148 = vector.shape_cast %147 : vector<48xf32> to vector<48x1xf32>
    %149 = tpu.reciprocal %148 {approx = true} : vector<48x1xf32> -> vector<48x1xf32>
    %150 = vector.broadcast %149 : vector<48x1xf32> to vector<48x48xf32>
    %151 = arith.mulf %146, %150 : vector<48x48xf32>
    %152 = arith.truncf %151 : vector<48x48xf32> to vector<48x48xbf16>
    %153 = vector.extract_strided_slice %86 {offsets = [0, 24], sizes = [48, 8], strides = [1, 1]} : vector<48x32xbf16> to vector<48x8xbf16>
    %cst_45 = arith.constant dense<0.000000e+00> : vector<48x8xf32>
    %154 = tpu.matmul %152, %153, %cst_45 {dimension_numbers = #tpu.dot_dimension_numbers<[1], [0], [0], [1], [0, 0, 1, 1], [], []>} : vector<48x48xbf16>, vector<48x8xbf16>, vector<48x8xf32> -> vector<48x8xf32>
    %155 = tpu.concatenate %103, %120, %137, %154 in 1 : vector<48x8xf32>, vector<48x8xf32>, vector<48x8xf32>, vector<48x8xf32> -> vector<48x32xf32>
    %156 = arith.truncf %155 : vector<48x32xf32> to vector<48x32xbf16>
    %c0_46 = arith.constant 0 : index
    %c0_47 = arith.constant 0 : index
    %c0_48 = arith.constant 0 : index
    %157 = vector.load %arg9[%c0_46, %c0_47, %c0_48] : memref<2x32x32xbf16, #tpu.memory_space<vmem>>, vector<1x32x32xbf16>
    %158 = vector.shape_cast %157 : vector<1x32x32xbf16> to vector<32x32xbf16>
    %cst_49 = arith.constant dense<0.000000e+00> : vector<48x32xf32>
    %159 = tpu.matmul %156, %158, %cst_49 {dimension_numbers = #tpu.dot_dimension_numbers<[1], [0], [0], [1], [0, 0, 1, 1], [], []>} : vector<48x32xbf16>, vector<32x32xbf16>, vector<48x32xf32> -> vector<48x32xf32>
    %160 = vector.broadcast %45 : vector<1x32xf32> to vector<48x32xf32>
    %161 = arith.addf %159, %160 : vector<48x32xf32>
    %162 = arith.addf %37, %161 : vector<48x32xf32>
    %cst_50 = arith.constant dense<0.000000e+00> : vector<48xf32>
    %163 = vector.multi_reduction <add>, %162, %cst_50 [1] : vector<48x32xf32> to vector<48xf32>
    %164 = vector.shape_cast %163 : vector<48xf32> to vector<48x1xf32>
    %cst_51 = arith.constant 3.200000e+01 : f32
    %165 = vector.broadcast %cst_51 : f32 to vector<48x1xf32>
    %166 = arith.divf %164, %165 : vector<48x1xf32>
    %167 = arith.mulf %162, %162 : vector<48x32xf32>
    %cst_52 = arith.constant dense<0.000000e+00> : vector<48xf32>
    %168 = vector.multi_reduction <add>, %167, %cst_52 [1] : vector<48x32xf32> to vector<48xf32>
    %169 = vector.shape_cast %168 : vector<48xf32> to vector<48x1xf32>
    %cst_53 = arith.constant 3.200000e+01 : f32
    %170 = vector.broadcast %cst_53 : f32 to vector<48x1xf32>
    %171 = arith.divf %169, %170 : vector<48x1xf32>
    %172 = arith.mulf %166, %166 : vector<48x1xf32>
    %173 = arith.subf %171, %172 : vector<48x1xf32>
    %174 = vector.broadcast %166 : vector<48x1xf32> to vector<48x32xf32>
    %175 = arith.subf %162, %174 : vector<48x32xf32>
    %cst_54 = arith.constant 9.99999974E-6 : f32
    %176 = vector.broadcast %cst_54 : f32 to vector<48x1xf32>
    %177 = arith.addf %173, %176 : vector<48x1xf32>
    %178 = math.rsqrt %177 : vector<48x1xf32>
    %179 = vector.broadcast %178 : vector<48x1xf32> to vector<48x32xf32>
    %180 = arith.mulf %175, %179 : vector<48x32xf32>
    %181 = vector.broadcast %46 : vector<1x32xf32> to vector<48x32xf32>
    %182 = arith.mulf %180, %181 : vector<48x32xf32>
    %183 = vector.broadcast %47 : vector<1x32xf32> to vector<48x32xf32>
    %184 = arith.addf %182, %183 : vector<48x32xf32>
    %185 = arith.truncf %184 : vector<48x32xf32> to vector<48x32xbf16>
    %c0_55 = arith.constant 0 : index
    %c0_56 = arith.constant 0 : index
    %c0_57 = arith.constant 0 : index
    %186 = vector.load %arg10[%c0_55, %c0_56, %c0_57] : memref<2x32x128xbf16, #tpu.memory_space<vmem>>, vector<1x32x128xbf16>
    %187 = vector.shape_cast %186 : vector<1x32x128xbf16> to vector<32x128xbf16>
    %cst_58 = arith.constant dense<0.000000e+00> : vector<48x128xf32>
    %188 = tpu.matmul %185, %187, %cst_58 {dimension_numbers = #tpu.dot_dimension_numbers<[1], [0], [0], [1], [0, 0, 1, 1], [], []>} : vector<48x32xbf16>, vector<32x128xbf16>, vector<48x128xf32> -> vector<48x128xf32>
    %189 = vector.broadcast %50 : vector<1x128xf32> to vector<48x128xf32>
    %190 = arith.addf %188, %189 : vector<48x128xf32>
    %cst_59 = arith.constant 1.702000e+00 : f32
    %191 = vector.broadcast %cst_59 : f32 to vector<48x128xf32>
    %192 = arith.mulf %191, %190 : vector<48x128xf32>
    %193 = arith.negf %192 : vector<48x128xf32>
    %194 = math.exp %193 : vector<48x128xf32>
    %cst_60 = arith.constant 1.000000e+00 : f32
    %195 = vector.broadcast %cst_60 : f32 to vector<48x128xf32>
    %196 = arith.addf %195, %194 : vector<48x128xf32>
    %197 = arith.divf %195, %196 : vector<48x128xf32>
    %198 = arith.mulf %190, %197 : vector<48x128xf32>
    %199 = arith.truncf %198 : vector<48x128xf32> to vector<48x128xbf16>
    %c0_61 = arith.constant 0 : index
    %c0_62 = arith.constant 0 : index
    %c0_63 = arith.constant 0 : index
    %200 = vector.load %arg11[%c0_61, %c0_62, %c0_63] : memref<2x128x32xbf16, #tpu.memory_space<vmem>>, vector<1x128x32xbf16>
    %201 = vector.shape_cast %200 : vector<1x128x32xbf16> to vector<128x32xbf16>
    %cst_64 = arith.constant dense<0.000000e+00> : vector<48x32xf32>
    %202 = tpu.matmul %199, %201, %cst_64 {dimension_numbers = #tpu.dot_dimension_numbers<[1], [0], [0], [1], [0, 0, 1, 1], [], []>} : vector<48x128xbf16>, vector<128x32xbf16>, vector<48x32xf32> -> vector<48x32xf32>
    %203 = arith.addf %162, %202 : vector<48x32xf32>
    %204 = vector.broadcast %48 : vector<1x32xf32> to vector<48x32xf32>
    %205 = arith.addf %203, %204 : vector<48x32xf32>
    %c1 = arith.constant 1 : index
    %c0_65 = arith.constant 0 : index
    %c0_66 = arith.constant 0 : index
    %206 = vector.load %arg6[%c1, %c0_65, %c0_66] : memref<2x6x32xf32, #tpu.memory_space<vmem>>, vector<1x6x32xf32>
    %207 = vector.shape_cast %206 : vector<1x6x32xf32> to vector<6x32xf32>
    %c1_67 = arith.constant 1 : index
    %c0_68 = arith.constant 0 : index
    %c0_69 = arith.constant 0 : index
    %208 = vector.load %arg7[%c1_67, %c0_68, %c0_69] : memref<2x2x128xf32, #tpu.memory_space<vmem>>, vector<1x2x128xf32>
    %209 = vector.shape_cast %208 : vector<1x2x128xf32> to vector<2x128xf32>
    %210 = vector.extract_strided_slice %207 {offsets = [0, 0], sizes = [1, 32], strides = [1, 1]} : vector<6x32xf32> to vector<1x32xf32>
    %211 = vector.extract_strided_slice %207 {offsets = [1, 0], sizes = [1, 32], strides = [1, 1]} : vector<6x32xf32> to vector<1x32xf32>
    %212 = vector.extract_strided_slice %207 {offsets = [2, 0], sizes = [1, 32], strides = [1, 1]} : vector<6x32xf32> to vector<1x32xf32>
    %213 = vector.extract_strided_slice %207 {offsets = [3, 0], sizes = [1, 32], strides = [1, 1]} : vector<6x32xf32> to vector<1x32xf32>
    %214 = vector.extract_strided_slice %207 {offsets = [4, 0], sizes = [1, 32], strides = [1, 1]} : vector<6x32xf32> to vector<1x32xf32>
    %215 = vector.extract_strided_slice %207 {offsets = [5, 0], sizes = [1, 32], strides = [1, 1]} : vector<6x32xf32> to vector<1x32xf32>
    %216 = vector.extract_strided_slice %209 {offsets = [0, 0], sizes = [1, 96], strides = [1, 1]} : vector<2x128xf32> to vector<1x96xf32>
    %217 = vector.extract_strided_slice %209 {offsets = [1, 0], sizes = [1, 128], strides = [1, 1]} : vector<2x128xf32> to vector<1x128xf32>
    %cst_70 = arith.constant dense<0.000000e+00> : vector<48xf32>
    %218 = vector.multi_reduction <add>, %205, %cst_70 [1] : vector<48x32xf32> to vector<48xf32>
    %219 = vector.shape_cast %218 : vector<48xf32> to vector<48x1xf32>
    %cst_71 = arith.constant 3.200000e+01 : f32
    %220 = vector.broadcast %cst_71 : f32 to vector<48x1xf32>
    %221 = arith.divf %219, %220 : vector<48x1xf32>
    %222 = arith.mulf %205, %205 : vector<48x32xf32>
    %cst_72 = arith.constant dense<0.000000e+00> : vector<48xf32>
    %223 = vector.multi_reduction <add>, %222, %cst_72 [1] : vector<48x32xf32> to vector<48xf32>
    %224 = vector.shape_cast %223 : vector<48xf32> to vector<48x1xf32>
    %cst_73 = arith.constant 3.200000e+01 : f32
    %225 = vector.broadcast %cst_73 : f32 to vector<48x1xf32>
    %226 = arith.divf %224, %225 : vector<48x1xf32>
    %227 = arith.mulf %221, %221 : vector<48x1xf32>
    %228 = arith.subf %226, %227 : vector<48x1xf32>
    %229 = vector.broadcast %221 : vector<48x1xf32> to vector<48x32xf32>
    %230 = arith.subf %205, %229 : vector<48x32xf32>
    %cst_74 = arith.constant 9.99999974E-6 : f32
    %231 = vector.broadcast %cst_74 : f32 to vector<48x1xf32>
    %232 = arith.addf %228, %231 : vector<48x1xf32>
    %233 = math.rsqrt %232 : vector<48x1xf32>
    %234 = vector.broadcast %233 : vector<48x1xf32> to vector<48x32xf32>
    %235 = arith.mulf %230, %234 : vector<48x32xf32>
    %236 = vector.broadcast %210 : vector<1x32xf32> to vector<48x32xf32>
    %237 = arith.mulf %235, %236 : vector<48x32xf32>
    %238 = vector.broadcast %211 : vector<1x32xf32> to vector<48x32xf32>
    %239 = arith.addf %237, %238 : vector<48x32xf32>
    %240 = arith.truncf %239 : vector<48x32xf32> to vector<48x32xbf16>
    %c1_75 = arith.constant 1 : index
    %c0_76 = arith.constant 0 : index
    %c0_77 = arith.constant 0 : index
    %241 = vector.load %arg8[%c1_75, %c0_76, %c0_77] : memref<2x32x96xbf16, #tpu.memory_space<vmem>>, vector<1x32x96xbf16>
    %242 = vector.shape_cast %241 : vector<1x32x96xbf16> to vector<32x96xbf16>
    %cst_78 = arith.constant dense<0.000000e+00> : vector<48x96xf32>
    %243 = tpu.matmul %240, %242, %cst_78 {dimension_numbers = #tpu.dot_dimension_numbers<[1], [0], [0], [1], [0, 0, 1, 1], [], []>} : vector<48x32xbf16>, vector<32x96xbf16>, vector<48x96xf32> -> vector<48x96xf32>
    %244 = vector.broadcast %216 : vector<1x96xf32> to vector<48x96xf32>
    %245 = arith.addf %243, %244 : vector<48x96xf32>
    %246 = vector.extract_strided_slice %245 {offsets = [0, 0], sizes = [48, 32], strides = [1, 1]} : vector<48x96xf32> to vector<48x32xf32>
    %cst_79 = arith.constant 0.353553385 : f32
    %247 = vector.broadcast %cst_79 : f32 to vector<48x32xf32>
    %248 = arith.mulf %246, %247 : vector<48x32xf32>
    %249 = arith.truncf %248 : vector<48x32xf32> to vector<48x32xbf16>
    %250 = vector.extract_strided_slice %245 {offsets = [0, 32], sizes = [48, 32], strides = [1, 1]} : vector<48x96xf32> to vector<48x32xf32>
    %251 = arith.truncf %250 : vector<48x32xf32> to vector<48x32xbf16>
    %252 = vector.extract_strided_slice %245 {offsets = [0, 64], sizes = [48, 32], strides = [1, 1]} : vector<48x96xf32> to vector<48x32xf32>
    %253 = arith.truncf %252 : vector<48x32xf32> to vector<48x32xbf16>
    %254 = vector.extract_strided_slice %249 {offsets = [0, 0], sizes = [48, 8], strides = [1, 1]} : vector<48x32xbf16> to vector<48x8xbf16>
    %255 = vector.extract_strided_slice %251 {offsets = [0, 0], sizes = [48, 8], strides = [1, 1]} : vector<48x32xbf16> to vector<48x8xbf16>
    %cst_80 = arith.constant dense<0.000000e+00> : vector<48x48xf32>
    %256 = tpu.matmul %254, %255, %cst_80 {dimension_numbers = #tpu.dot_dimension_numbers<[1], [1], [0], [0], [0, 0, 1, 0], [], []>} : vector<48x8xbf16>, vector<48x8xbf16>, vector<48x48xf32> -> vector<48x48xf32>
    %257 = arith.addf %256, %38 : vector<48x48xf32>
    %cst_81 = arith.constant dense<0xFF800000> : vector<48xf32>
    %258 = vector.multi_reduction <maximumf>, %257, %cst_81 [1] : vector<48x48xf32> to vector<48xf32>
    %259 = vector.shape_cast %258 : vector<48xf32> to vector<48x1xf32>
    %260 = vector.broadcast %259 : vector<48x1xf32> to vector<48x48xf32>
    %261 = arith.subf %257, %260 : vector<48x48xf32>
    %262 = math.exp %261 : vector<48x48xf32>
    %cst_82 = arith.constant dense<0.000000e+00> : vector<48xf32>
    %263 = vector.multi_reduction <add>, %262, %cst_82 [1] : vector<48x48xf32> to vector<48xf32>
    %264 = vector.shape_cast %263 : vector<48xf32> to vector<48x1xf32>
    %265 = tpu.reciprocal %264 {approx = true} : vector<48x1xf32> -> vector<48x1xf32>
    %266 = vector.broadcast %265 : vector<48x1xf32> to vector<48x48xf32>
    %267 = arith.mulf %262, %266 : vector<48x48xf32>
    %268 = arith.truncf %267 : vector<48x48xf32> to vector<48x48xbf16>
    %269 = vector.extract_strided_slice %253 {offsets = [0, 0], sizes = [48, 8], strides = [1, 1]} : vector<48x32xbf16> to vector<48x8xbf16>
    %cst_83 = arith.constant dense<0.000000e+00> : vector<48x8xf32>
    %270 = tpu.matmul %268, %269, %cst_83 {dimension_numbers = #tpu.dot_dimension_numbers<[1], [0], [0], [1], [0, 0, 1, 1], [], []>} : vector<48x48xbf16>, vector<48x8xbf16>, vector<48x8xf32> -> vector<48x8xf32>
    %271 = vector.extract_strided_slice %249 {offsets = [0, 8], sizes = [48, 8], strides = [1, 1]} : vector<48x32xbf16> to vector<48x8xbf16>
    %272 = vector.extract_strided_slice %251 {offsets = [0, 8], sizes = [48, 8], strides = [1, 1]} : vector<48x32xbf16> to vector<48x8xbf16>
    %cst_84 = arith.constant dense<0.000000e+00> : vector<48x48xf32>
    %273 = tpu.matmul %271, %272, %cst_84 {dimension_numbers = #tpu.dot_dimension_numbers<[1], [1], [0], [0], [0, 0, 1, 0], [], []>} : vector<48x8xbf16>, vector<48x8xbf16>, vector<48x48xf32> -> vector<48x48xf32>
    %274 = arith.addf %273, %38 : vector<48x48xf32>
    %cst_85 = arith.constant dense<0xFF800000> : vector<48xf32>
    %275 = vector.multi_reduction <maximumf>, %274, %cst_85 [1] : vector<48x48xf32> to vector<48xf32>
    %276 = vector.shape_cast %275 : vector<48xf32> to vector<48x1xf32>
    %277 = vector.broadcast %276 : vector<48x1xf32> to vector<48x48xf32>
    %278 = arith.subf %274, %277 : vector<48x48xf32>
    %279 = math.exp %278 : vector<48x48xf32>
    %cst_86 = arith.constant dense<0.000000e+00> : vector<48xf32>
    %280 = vector.multi_reduction <add>, %279, %cst_86 [1] : vector<48x48xf32> to vector<48xf32>
    %281 = vector.shape_cast %280 : vector<48xf32> to vector<48x1xf32>
    %282 = tpu.reciprocal %281 {approx = true} : vector<48x1xf32> -> vector<48x1xf32>
    %283 = vector.broadcast %282 : vector<48x1xf32> to vector<48x48xf32>
    %284 = arith.mulf %279, %283 : vector<48x48xf32>
    %285 = arith.truncf %284 : vector<48x48xf32> to vector<48x48xbf16>
    %286 = vector.extract_strided_slice %253 {offsets = [0, 8], sizes = [48, 8], strides = [1, 1]} : vector<48x32xbf16> to vector<48x8xbf16>
    %cst_87 = arith.constant dense<0.000000e+00> : vector<48x8xf32>
    %287 = tpu.matmul %285, %286, %cst_87 {dimension_numbers = #tpu.dot_dimension_numbers<[1], [0], [0], [1], [0, 0, 1, 1], [], []>} : vector<48x48xbf16>, vector<48x8xbf16>, vector<48x8xf32> -> vector<48x8xf32>
    %288 = vector.extract_strided_slice %249 {offsets = [0, 16], sizes = [48, 8], strides = [1, 1]} : vector<48x32xbf16> to vector<48x8xbf16>
    %289 = vector.extract_strided_slice %251 {offsets = [0, 16], sizes = [48, 8], strides = [1, 1]} : vector<48x32xbf16> to vector<48x8xbf16>
    %cst_88 = arith.constant dense<0.000000e+00> : vector<48x48xf32>
    %290 = tpu.matmul %288, %289, %cst_88 {dimension_numbers = #tpu.dot_dimension_numbers<[1], [1], [0], [0], [0, 0, 1, 0], [], []>} : vector<48x8xbf16>, vector<48x8xbf16>, vector<48x48xf32> -> vector<48x48xf32>
    %291 = arith.addf %290, %38 : vector<48x48xf32>
    %cst_89 = arith.constant dense<0xFF800000> : vector<48xf32>
    %292 = vector.multi_reduction <maximumf>, %291, %cst_89 [1] : vector<48x48xf32> to vector<48xf32>
    %293 = vector.shape_cast %292 : vector<48xf32> to vector<48x1xf32>
    %294 = vector.broadcast %293 : vector<48x1xf32> to vector<48x48xf32>
    %295 = arith.subf %291, %294 : vector<48x48xf32>
    %296 = math.exp %295 : vector<48x48xf32>
    %cst_90 = arith.constant dense<0.000000e+00> : vector<48xf32>
    %297 = vector.multi_reduction <add>, %296, %cst_90 [1] : vector<48x48xf32> to vector<48xf32>
    %298 = vector.shape_cast %297 : vector<48xf32> to vector<48x1xf32>
    %299 = tpu.reciprocal %298 {approx = true} : vector<48x1xf32> -> vector<48x1xf32>
    %300 = vector.broadcast %299 : vector<48x1xf32> to vector<48x48xf32>
    %301 = arith.mulf %296, %300 : vector<48x48xf32>
    %302 = arith.truncf %301 : vector<48x48xf32> to vector<48x48xbf16>
    %303 = vector.extract_strided_slice %253 {offsets = [0, 16], sizes = [48, 8], strides = [1, 1]} : vector<48x32xbf16> to vector<48x8xbf16>
    %cst_91 = arith.constant dense<0.000000e+00> : vector<48x8xf32>
    %304 = tpu.matmul %302, %303, %cst_91 {dimension_numbers = #tpu.dot_dimension_numbers<[1], [0], [0], [1], [0, 0, 1, 1], [], []>} : vector<48x48xbf16>, vector<48x8xbf16>, vector<48x8xf32> -> vector<48x8xf32>
    %305 = vector.extract_strided_slice %249 {offsets = [0, 24], sizes = [48, 8], strides = [1, 1]} : vector<48x32xbf16> to vector<48x8xbf16>
    %306 = vector.extract_strided_slice %251 {offsets = [0, 24], sizes = [48, 8], strides = [1, 1]} : vector<48x32xbf16> to vector<48x8xbf16>
    %cst_92 = arith.constant dense<0.000000e+00> : vector<48x48xf32>
    %307 = tpu.matmul %305, %306, %cst_92 {dimension_numbers = #tpu.dot_dimension_numbers<[1], [1], [0], [0], [0, 0, 1, 0], [], []>} : vector<48x8xbf16>, vector<48x8xbf16>, vector<48x48xf32> -> vector<48x48xf32>
    %308 = arith.addf %307, %38 : vector<48x48xf32>
    %cst_93 = arith.constant dense<0xFF800000> : vector<48xf32>
    %309 = vector.multi_reduction <maximumf>, %308, %cst_93 [1] : vector<48x48xf32> to vector<48xf32>
    %310 = vector.shape_cast %309 : vector<48xf32> to vector<48x1xf32>
    %311 = vector.broadcast %310 : vector<48x1xf32> to vector<48x48xf32>
    %312 = arith.subf %308, %311 : vector<48x48xf32>
    %313 = math.exp %312 : vector<48x48xf32>
    %cst_94 = arith.constant dense<0.000000e+00> : vector<48xf32>
    %314 = vector.multi_reduction <add>, %313, %cst_94 [1] : vector<48x48xf32> to vector<48xf32>
    %315 = vector.shape_cast %314 : vector<48xf32> to vector<48x1xf32>
    %316 = tpu.reciprocal %315 {approx = true} : vector<48x1xf32> -> vector<48x1xf32>
    %317 = vector.broadcast %316 : vector<48x1xf32> to vector<48x48xf32>
    %318 = arith.mulf %313, %317 : vector<48x48xf32>
    %319 = arith.truncf %318 : vector<48x48xf32> to vector<48x48xbf16>
    %320 = vector.extract_strided_slice %253 {offsets = [0, 24], sizes = [48, 8], strides = [1, 1]} : vector<48x32xbf16> to vector<48x8xbf16>
    %cst_95 = arith.constant dense<0.000000e+00> : vector<48x8xf32>
    %321 = tpu.matmul %319, %320, %cst_95 {dimension_numbers = #tpu.dot_dimension_numbers<[1], [0], [0], [1], [0, 0, 1, 1], [], []>} : vector<48x48xbf16>, vector<48x8xbf16>, vector<48x8xf32> -> vector<48x8xf32>
    %322 = tpu.concatenate %270, %287, %304, %321 in 1 : vector<48x8xf32>, vector<48x8xf32>, vector<48x8xf32>, vector<48x8xf32> -> vector<48x32xf32>
    %323 = arith.truncf %322 : vector<48x32xf32> to vector<48x32xbf16>
    %c1_96 = arith.constant 1 : index
    %c0_97 = arith.constant 0 : index
    %c0_98 = arith.constant 0 : index
    %324 = vector.load %arg9[%c1_96, %c0_97, %c0_98] : memref<2x32x32xbf16, #tpu.memory_space<vmem>>, vector<1x32x32xbf16>
    %325 = vector.shape_cast %324 : vector<1x32x32xbf16> to vector<32x32xbf16>
    %cst_99 = arith.constant dense<0.000000e+00> : vector<48x32xf32>
    %326 = tpu.matmul %323, %325, %cst_99 {dimension_numbers = #tpu.dot_dimension_numbers<[1], [0], [0], [1], [0, 0, 1, 1], [], []>} : vector<48x32xbf16>, vector<32x32xbf16>, vector<48x32xf32> -> vector<48x32xf32>
    %327 = vector.broadcast %212 : vector<1x32xf32> to vector<48x32xf32>
    %328 = arith.addf %326, %327 : vector<48x32xf32>
    %329 = arith.addf %205, %328 : vector<48x32xf32>
    %cst_100 = arith.constant dense<0.000000e+00> : vector<48xf32>
    %330 = vector.multi_reduction <add>, %329, %cst_100 [1] : vector<48x32xf32> to vector<48xf32>
    %331 = vector.shape_cast %330 : vector<48xf32> to vector<48x1xf32>
    %cst_101 = arith.constant 3.200000e+01 : f32
    %332 = vector.broadcast %cst_101 : f32 to vector<48x1xf32>
    %333 = arith.divf %331, %332 : vector<48x1xf32>
    %334 = arith.mulf %329, %329 : vector<48x32xf32>
    %cst_102 = arith.constant dense<0.000000e+00> : vector<48xf32>
    %335 = vector.multi_reduction <add>, %334, %cst_102 [1] : vector<48x32xf32> to vector<48xf32>
    %336 = vector.shape_cast %335 : vector<48xf32> to vector<48x1xf32>
    %cst_103 = arith.constant 3.200000e+01 : f32
    %337 = vector.broadcast %cst_103 : f32 to vector<48x1xf32>
    %338 = arith.divf %336, %337 : vector<48x1xf32>
    %339 = arith.mulf %333, %333 : vector<48x1xf32>
    %340 = arith.subf %338, %339 : vector<48x1xf32>
    %341 = vector.broadcast %333 : vector<48x1xf32> to vector<48x32xf32>
    %342 = arith.subf %329, %341 : vector<48x32xf32>
    %cst_104 = arith.constant 9.99999974E-6 : f32
    %343 = vector.broadcast %cst_104 : f32 to vector<48x1xf32>
    %344 = arith.addf %340, %343 : vector<48x1xf32>
    %345 = math.rsqrt %344 : vector<48x1xf32>
    %346 = vector.broadcast %345 : vector<48x1xf32> to vector<48x32xf32>
    %347 = arith.mulf %342, %346 : vector<48x32xf32>
    %348 = vector.broadcast %213 : vector<1x32xf32> to vector<48x32xf32>
    %349 = arith.mulf %347, %348 : vector<48x32xf32>
    %350 = vector.broadcast %214 : vector<1x32xf32> to vector<48x32xf32>
    %351 = arith.addf %349, %350 : vector<48x32xf32>
    %352 = arith.truncf %351 : vector<48x32xf32> to vector<48x32xbf16>
    %c1_105 = arith.constant 1 : index
    %c0_106 = arith.constant 0 : index
    %c0_107 = arith.constant 0 : index
    %353 = vector.load %arg10[%c1_105, %c0_106, %c0_107] : memref<2x32x128xbf16, #tpu.memory_space<vmem>>, vector<1x32x128xbf16>
    %354 = vector.shape_cast %353 : vector<1x32x128xbf16> to vector<32x128xbf16>
    %cst_108 = arith.constant dense<0.000000e+00> : vector<48x128xf32>
    %355 = tpu.matmul %352, %354, %cst_108 {dimension_numbers = #tpu.dot_dimension_numbers<[1], [0], [0], [1], [0, 0, 1, 1], [], []>} : vector<48x32xbf16>, vector<32x128xbf16>, vector<48x128xf32> -> vector<48x128xf32>
    %356 = vector.broadcast %217 : vector<1x128xf32> to vector<48x128xf32>
    %357 = arith.addf %355, %356 : vector<48x128xf32>
    %cst_109 = arith.constant 1.702000e+00 : f32
    %358 = vector.broadcast %cst_109 : f32 to vector<48x128xf32>
    %359 = arith.mulf %358, %357 : vector<48x128xf32>
    %360 = arith.negf %359 : vector<48x128xf32>
    %361 = math.exp %360 : vector<48x128xf32>
    %cst_110 = arith.constant 1.000000e+00 : f32
    %362 = vector.broadcast %cst_110 : f32 to vector<48x128xf32>
    %363 = arith.addf %362, %361 : vector<48x128xf32>
    %364 = arith.divf %362, %363 : vector<48x128xf32>
    %365 = arith.mulf %357, %364 : vector<48x128xf32>
    %366 = arith.truncf %365 : vector<48x128xf32> to vector<48x128xbf16>
    %c1_111 = arith.constant 1 : index
    %c0_112 = arith.constant 0 : index
    %c0_113 = arith.constant 0 : index
    %367 = vector.load %arg11[%c1_111, %c0_112, %c0_113] : memref<2x128x32xbf16, #tpu.memory_space<vmem>>, vector<1x128x32xbf16>
    %368 = vector.shape_cast %367 : vector<1x128x32xbf16> to vector<128x32xbf16>
    %cst_114 = arith.constant dense<0.000000e+00> : vector<48x32xf32>
    %369 = tpu.matmul %366, %368, %cst_114 {dimension_numbers = #tpu.dot_dimension_numbers<[1], [0], [0], [1], [0, 0, 1, 1], [], []>} : vector<48x128xbf16>, vector<128x32xbf16>, vector<48x32xf32> -> vector<48x32xf32>
    %370 = arith.addf %329, %369 : vector<48x32xf32>
    %371 = vector.broadcast %215 : vector<1x32xf32> to vector<48x32xf32>
    %372 = arith.addf %370, %371 : vector<48x32xf32>
    %cst_115 = arith.constant dense<0.000000e+00> : vector<48xf32>
    %373 = vector.multi_reduction <add>, %372, %cst_115 [1] : vector<48x32xf32> to vector<48xf32>
    %374 = vector.shape_cast %373 : vector<48xf32> to vector<48x1xf32>
    %cst_116 = arith.constant 3.200000e+01 : f32
    %375 = vector.broadcast %cst_116 : f32 to vector<48x1xf32>
    %376 = arith.divf %374, %375 : vector<48x1xf32>
    %377 = arith.mulf %372, %372 : vector<48x32xf32>
    %cst_117 = arith.constant dense<0.000000e+00> : vector<48xf32>
    %378 = vector.multi_reduction <add>, %377, %cst_117 [1] : vector<48x32xf32> to vector<48xf32>
    %379 = vector.shape_cast %378 : vector<48xf32> to vector<48x1xf32>
    %cst_118 = arith.constant 3.200000e+01 : f32
    %380 = vector.broadcast %cst_118 : f32 to vector<48x1xf32>
    %381 = arith.divf %379, %380 : vector<48x1xf32>
    %382 = arith.mulf %376, %376 : vector<48x1xf32>
    %383 = arith.subf %381, %382 : vector<48x1xf32>
    %384 = vector.broadcast %376 : vector<48x1xf32> to vector<48x32xf32>
    %385 = arith.subf %372, %384 : vector<48x32xf32>
    %cst_119 = arith.constant 9.99999974E-6 : f32
    %386 = vector.broadcast %cst_119 : f32 to vector<48x1xf32>
    %387 = arith.addf %383, %386 : vector<48x1xf32>
    %388 = math.rsqrt %387 : vector<48x1xf32>
    %389 = vector.broadcast %388 : vector<48x1xf32> to vector<48x32xf32>
    %390 = arith.mulf %385, %389 : vector<48x32xf32>
    %391 = vector.broadcast %3 : vector<1x32xf32> to vector<48x32xf32>
    %392 = arith.mulf %390, %391 : vector<48x32xf32>
    %393 = vector.broadcast %4 : vector<1x32xf32> to vector<48x32xf32>
    %394 = arith.addf %392, %393 : vector<48x32xf32>
    %395 = arith.truncf %394 : vector<48x32xf32> to vector<48x32xbf16>
    %c0_120 = arith.constant 0 : index
    %c0_121 = arith.constant 0 : index
    %396 = vector.load %arg12[%c0_120, %c0_121] : memref<32x128xbf16, #tpu.memory_space<vmem>>, vector<32x128xbf16>
    %cst_122 = arith.constant dense<0.000000e+00> : vector<48x128xf32>
    %397 = tpu.matmul %395, %396, %cst_122 {dimension_numbers = #tpu.dot_dimension_numbers<[1], [0], [0], [1], [0, 0, 1, 1], [], []>} : vector<48x32xbf16>, vector<32x128xbf16>, vector<48x128xf32> -> vector<48x128xf32>
    %398 = arith.mulf %397, %397 : vector<48x128xf32>
    %cst_123 = arith.constant dense<0.000000e+00> : vector<48xf32>
    %399 = vector.multi_reduction <add>, %398, %cst_123 [1] : vector<48x128xf32> to vector<48xf32>
    %400 = vector.shape_cast %399 : vector<48xf32> to vector<48x1xf32>
    %cst_124 = arith.constant 9.99999996E-13 : f32
    %401 = vector.broadcast %cst_124 : f32 to vector<48x1xf32>
    %402 = arith.addf %400, %401 : vector<48x1xf32>
    %403 = math.rsqrt %402 : vector<48x1xf32>
    %404 = vector.broadcast %403 : vector<48x1xf32> to vector<48x128xf32>
    %405 = arith.mulf %397, %404 : vector<48x128xf32>
    %c0_125 = arith.constant 0 : index
    %c0_126 = arith.constant 0 : index
    %406 = vector.load %arg13[%c0_125, %c0_126] : memref<48x128xf32, #tpu.memory_space<vmem>>, vector<48x128xf32>
    tpu.vector_store %arg13[%c0_125, %c0_126], %405 {strides = array<i32>} : memref<48x128xf32, #tpu.memory_space<vmem>>, vector<48x128xf32>,
    return
  }
  func.func @transform_0(%arg0: i32) -> (i32, i32) {
    %c0_i32 = arith.constant 0 : i32
    %c0_i32_0 = arith.constant 0 : i32
    %c0_i32_1 = arith.constant 0 : i32
    return %c0_i32, %c0_i32_0 : i32, i32
  }
  func.func @transform_1(%arg0: i32) -> (i32, i32) {
    %c0_i32 = arith.constant 0 : i32
    %c0_i32_0 = arith.constant 0 : i32
    %c0_i32_1 = arith.constant 0 : i32
    return %c0_i32, %c0_i32_0 : i32, i32
  }
  func.func @transform_2(%arg0: i32) -> (i32, i32) {
    %c0_i32 = arith.constant 0 : i32
    %c0_i32_0 = arith.constant 0 : i32
    %c0_i32_1 = arith.constant 0 : i32
    return %c0_i32, %c0_i32_0 : i32, i32
  }
  func.func @transform_3(%arg0: i32) -> (i32, i32) {
    %c0_i32 = arith.constant 0 : i32
    %c0_i32_0 = arith.constant 0 : i32
    %c0_i32_1 = arith.constant 0 : i32
    return %c0_i32, %c0_i32_0 : i32, i32
  }
  func.func @transform_4(%arg0: i32) -> (i32, i32) {
    %c0_i32 = arith.constant 0 : i32
    %c0_i32_0 = arith.constant 0 : i32
    %c0_i32_1 = arith.constant 0 : i32
    return %c0_i32, %c0_i32_0 : i32, i32
  }
  func.func @transform_5(%arg0: i32) -> (i32, i32, i32) {
    %c0_i32 = arith.constant 0 : i32
    %c0_i32_0 = arith.constant 0 : i32
    %c0_i32_1 = arith.constant 0 : i32
    %c0_i32_2 = arith.constant 0 : i32
    return %c0_i32, %c0_i32_0, %c0_i32_1 : i32, i32, i32
  }
  func.func @transform_6(%arg0: i32) -> (i32, i32, i32) {
    %c0_i32 = arith.constant 0 : i32
    %c0_i32_0 = arith.constant 0 : i32
    %c0_i32_1 = arith.constant 0 : i32
    %c0_i32_2 = arith.constant 0 : i32
    return %c0_i32, %c0_i32_0, %c0_i32_1 : i32, i32, i32
  }
  func.func @transform_7(%arg0: i32) -> (i32, i32, i32) {
    %c0_i32 = arith.constant 0 : i32
    %c0_i32_0 = arith.constant 0 : i32
    %c0_i32_1 = arith.constant 0 : i32
    %c0_i32_2 = arith.constant 0 : i32
    return %c0_i32, %c0_i32_0, %c0_i32_1 : i32, i32, i32
  }
  func.func @transform_8(%arg0: i32) -> (i32, i32, i32) {
    %c0_i32 = arith.constant 0 : i32
    %c0_i32_0 = arith.constant 0 : i32
    %c0_i32_1 = arith.constant 0 : i32
    %c0_i32_2 = arith.constant 0 : i32
    return %c0_i32, %c0_i32_0, %c0_i32_1 : i32, i32, i32
  }
  func.func @transform_9(%arg0: i32) -> (i32, i32, i32) {
    %c0_i32 = arith.constant 0 : i32
    %c0_i32_0 = arith.constant 0 : i32
    %c0_i32_1 = arith.constant 0 : i32
    %c0_i32_2 = arith.constant 0 : i32
    return %c0_i32, %c0_i32_0, %c0_i32_1 : i32, i32, i32
  }
  func.func @transform_10(%arg0: i32) -> (i32, i32, i32) {
    %c0_i32 = arith.constant 0 : i32
    %c0_i32_0 = arith.constant 0 : i32
    %c0_i32_1 = arith.constant 0 : i32
    %c0_i32_2 = arith.constant 0 : i32
    return %c0_i32, %c0_i32_0, %c0_i32_1 : i32, i32, i32
  }
  func.func @transform_11(%arg0: i32) -> (i32, i32) {
    %c0_i32 = arith.constant 0 : i32
    %c0_i32_0 = arith.constant 0 : i32
    %c0_i32_1 = arith.constant 0 : i32
    return %c0_i32, %c0_i32_0 : i32, i32
  }
  func.func @transform_12(%arg0: i32) -> (i32, i32) {
    %c0_i32 = arith.constant 0 : i32
    %c0_i32_0 = arith.constant 0 : i32
    %c0_i32_1 = arith.constant 0 : i32
    return %c0_i32, %c0_i32_0 : i32, i32
  }
}

</mosaic_0001>

<llo_original>
// kernel: zegclip_forward.1
$region0: #{zegclip_forward.1}
  #allocation0 [shape = 'u32[]', space=smem, size = 0x4, offset = 0x4, fixed_abs, tag = 'smem constant byte address 0x4 - core index']
  #allocation1 [shape = 'u32[72,128]{1,0:T(1,128)}', space=vmem, size = 0x9000, scoped, tag = 'internal scratch']
  %s0 = inlined_call_operand.vmem [shape: f32[32,48], index: 0, kind: input, shape index: {}]
  %s1 = inlined_call_operand.vmem [shape: bf16[48,32], index: 1, kind: input, shape index: {}]
  %s2 = inlined_call_operand.vmem [shape: f32[40,32], index: 2, kind: input, shape index: {}]
  %s3 = inlined_call_operand.vmem [shape: f32[48,48], index: 3, kind: input, shape index: {}]
  %s4 = inlined_call_operand.vmem [shape: f32[4,32], index: 4, kind: input, shape index: {}]
  %s5 = inlined_call_operand.vmem [shape: f32[2,6,32], index: 5, kind: input, shape index: {}]
  %s6 = inlined_call_operand.vmem [shape: f32[2,2,128], index: 6, kind: input, shape index: {}]
  %s7 = inlined_call_operand.vmem [shape: bf16[2,32,96], index: 7, kind: input, shape index: {}]
  %s8 = inlined_call_operand.vmem [shape: bf16[2,32,32], index: 8, kind: input, shape index: {}]
  %s9 = inlined_call_operand.vmem [shape: bf16[2,32,128], index: 9, kind: input, shape index: {}]
  %s10 = inlined_call_operand.vmem [shape: bf16[2,128,32], index: 10, kind: input, shape index: {}]
  %s11 = inlined_call_operand.vmem [shape: bf16[32,128], index: 11, kind: input, shape index: {}]
  %s12 = inlined_call_operand.vmem [shape: f32[48,128], index: 12, kind: output, shape index: {}]
  %s13 = sld [smem:[#allocation0]]
  $region58: #{zegclip_forward.1} parent=0
    _
  %s15 = ssub.s32 1, %s13
  %s16 = scalar_select 0, %s15, %s13
  // Predicated region
  $region2: #{zegclip_forward.1} parent=0 // pred_check
    _
  $region3: #{zegclip_forward.1} parent=0 // pred_check_branch
    %18 = sbr.rel (0) target = $region5
  $region4: #{zegclip_forward.1} parent=0 // pred_region
    _
  $region5: #{zegclip_forward.1} parent=0 // pred_fallthru
    _
  // Predicated region
  $region6: #{zegclip_forward.1} parent=0 // pred_check
    _
  $region7: #{zegclip_forward.1} parent=0 // pred_check_branch
    %20 = sbr.rel (0) target = $region9
  $region8: #{zegclip_forward.1} parent=0 // pred_region
    _
  $region9: #{zegclip_forward.1} parent=0 // pred_fallthru
    _
  // Predicated region
  $region10: #{zegclip_forward.1} parent=0 // pred_check
    _
  $region11: #{zegclip_forward.1} parent=0 // pred_check_branch
    %22 = sbr.rel (0) target = $region13
  $region12: #{zegclip_forward.1} parent=0 // pred_region
    _
  $region13: #{zegclip_forward.1} parent=0 // pred_fallthru
    _
  // Predicated region
  $region14: #{zegclip_forward.1} parent=0 // pred_check
    _
  $region15: #{zegclip_forward.1} parent=0 // pred_check_branch
    %24 = sbr.rel (0) target = $region17
  $region16: #{zegclip_forward.1} parent=0 // pred_region
    _
  $region17: #{zegclip_forward.1} parent=0 // pred_fallthru
    _
  // Predicated region
  $region18: #{zegclip_forward.1} parent=0 // pred_check
    _
  $region19: #{zegclip_forward.1} parent=0 // pred_check_branch
    %26 = sbr.rel (0) target = $region21
  $region20: #{zegclip_forward.1} parent=0 // pred_region
    _
  $region21: #{zegclip_forward.1} parent=0 // pred_fallthru
    _
  // Predicated region
  $region22: #{zegclip_forward.1} parent=0 // pred_check
    _
  $region23: #{zegclip_forward.1} parent=0 // pred_check_branch
    %28 = sbr.rel (0) target = $region25
  $region24: #{zegclip_forward.1} parent=0 // pred_region
    _
  $region25: #{zegclip_forward.1} parent=0 // pred_fallthru
    _
  // Predicated region
  $region26: #{zegclip_forward.1} parent=0 // pred_check
    _
  $region27: #{zegclip_forward.1} parent=0 // pred_check_branch
    %30 = sbr.rel (0) target = $region29
  $region28: #{zegclip_forward.1} parent=0 // pred_region
    _
  $region29: #{zegclip_forward.1} parent=0 // pred_fallthru
    _
  // Predicated region
  $region30: #{zegclip_forward.1} parent=0 // pred_check
    _
  $region31: #{zegclip_forward.1} parent=0 // pred_check_branch
    %32 = sbr.rel (0) target = $region33
  $region32: #{zegclip_forward.1} parent=0 // pred_region
    _
  $region33: #{zegclip_forward.1} parent=0 // pred_fallthru
    _
  // Predicated region
  $region34: #{zegclip_forward.1} parent=0 // pred_check
    _
  $region35: #{zegclip_forward.1} parent=0 // pred_check_branch
    %34 = sbr.rel (0) target = $region37
  $region36: #{zegclip_forward.1} parent=0 // pred_region
    _
  $region37: #{zegclip_forward.1} parent=0 // pred_fallthru
    _
  // Predicated region
  $region38: #{zegclip_forward.1} parent=0 // pred_check
    _
  $region39: #{zegclip_forward.1} parent=0 // pred_check_branch
    %36 = sbr.rel (0) target = $region41
  $region40: #{zegclip_forward.1} parent=0 // pred_region
    _
  $region41: #{zegclip_forward.1} parent=0 // pred_fallthru
    _
  // Predicated region
  $region42: #{zegclip_forward.1} parent=0 // pred_check
    _
  $region43: #{zegclip_forward.1} parent=0 // pred_check_branch
    %38 = sbr.rel (0) target = $region45
  $region44: #{zegclip_forward.1} parent=0 // pred_region
    _
  $region45: #{zegclip_forward.1} parent=0 // pred_fallthru
    _
  // Predicated region
  $region46: #{zegclip_forward.1} parent=0 // pred_check
    _
  $region47: #{zegclip_forward.1} parent=0 // pred_check_branch
    %40 = sbr.rel (0) target = $region49
  $region48: #{zegclip_forward.1} parent=0 // pred_region
    _
  $region49: #{zegclip_forward.1} parent=0 // pred_fallthru
    _
  %v42 = vld [vmem:[%s4] sm:$0xf]
  %v43 = vld [vmem:[%s2] sm:$0xff]
  %v44 = vld [vmem:[%s2 + $0x8] sm:$0xff]
  %v45 = vld [vmem:[%s2 + $0x10] sm:$0xff]
  %v46 = vld [vmem:[%s2 + $0x18] sm:$0xff]
  %v47 = vld [vmem:[%s2 + $0x20] sm:$0xff]
  %v48 = vld [vmem:[%s0] sm:$0xff]
  %v49 = vld [vmem:[%s0 + $0x8] sm:$0xff]
  %v50 = vld [vmem:[%s0 + $0x10] sm:$0xff]
  %v51 = vld [vmem:[%s0 + $0x18] sm:$0xff]
  %v52 = vpack.c.bf16 %v49, %v48
  %v53 = vpack.c.bf16 %v51, %v50
  %v54 = vld [vmem:[%s1] sm:$0xf]
  %v55 = vld [vmem:[%s1 + $0x4] sm:$0xf]
  %v56 = vld [vmem:[%s1 + $0x8] sm:$0xf]
  %v57 = vld [vmem:[%s1 + $0xc] sm:$0xf]
  %v58 = vld [vmem:[%s1 + $0x10] sm:$0xf]
  %v59 = vld [vmem:[%s1 + $0x14] sm:$0xf]
  %v66 = vunpack.c.l.b16 %v54
  %v67 = vunpack.c.l.b16 %v55
  %v68 = vunpack.c.l.b16 %v56
  %v69 = vunpack.c.l.b16 %v57
  %v70 = vunpack.c.l.b16 %v58
  %v71 = vunpack.c.l.b16 %v59
  %v72 = vpack.c.b16 %v67, %v66
  %v73 = vpack.c.b16 %v69, %v68
  %v74 = vpack.c.b16 %v71, %v70
  %vm78 = vcmask 392192
  %v80 = vsel %vm78, %v52, 0
  %v83 = vsel %vm78, %v53, 0
  %85 = vmatpush.bf16.msra.mxu0 0
  %86 = vmatpush.bf16.msra.mxu0 0
  %87 = vmatpush.bf16.msra.mxu0 0
  %88 = vmatpush.bf16.msra.mxu0 0
  %89 = vmatpush.bf16.msra.mxu0 0
  %90 = vmatpush.bf16.msra.mxu0 %v74
  %91 = vmatpush.bf16.msra.mxu0 %v73
  %92 = vmatpush.bf16.msra.mxu0 %v72
  %93 = vmatmul.bf16.gmra.mxu0 %v80
  %v94 = vpop.f32.mrf.mxu0
  %v95 = vadd.f32 %v44, %v94
  %v96 = vpop.f32.mrf.mxu0
  %v97 = vadd.f32 %v45, %v96
  %98 = vmatmul.bf16.gmra.mxu0 %v83
  %v99 = vpop.f32.mrf.mxu0
  %v100 = vadd.f32 %v46, %v99
  %v101 = vpop.f32.mrf.mxu0
  %v102 = vadd.f32 %v47, %v101
  %103 = vdwg.mxu0
  %vm104 = vcmask 261120
  %v105 = vsel %vm104, %v95, 0.0
  %106 = vadd.xlane.f32.xlu0 %v105
  %v107 = vpop.xlane.xlu0 %106
  %v108 = vsel %vm104, %v97, 0.0
  %109 = vadd.xlane.f32.xlu0 %v108
  %v110 = vpop.xlane.xlu0 %109
  %v111 = vsel %vm104, %v100, 0.0
  %112 = vadd.xlane.f32.xlu0 %v111
  %v113 = vpop.xlane.xlu0 %112
  %v114 = vsel %vm104, %v102, 0.0
  %115 = vadd.xlane.f32.xlu0 %v114
  %v116 = vpop.xlane.xlu0 %115
  %v117 = vrcp.pop 32.0
  %v118 = vmul.f32 32.0, %v117
  %v119 = vsub.f32 1.0, %v118
  %v120 = vmul.f32 %v117, %v119
  %v121 = vadd.f32 %v117, %v120
  %vm122 = vweird.f32 %v117
  %v123 = vsel %vm122, %v117, %v121
  %v124 = vmul.f32 %v107, %v123
  %v125 = vmul.f32 %v110, %v123
  %v126 = vmul.f32 %v113, %v123
  %v127 = vmul.f32 %v116, %v123
  %v128 = vmul.f32 %v95, %v95
  %v129 = vmul.f32 %v97, %v97
  %v130 = vmul.f32 %v100, %v100
  %v131 = vmul.f32 %v102, %v102
  %v132 = vsel %vm104, %v128, 0.0
  %133 = vadd.xlane.f32.xlu0 %v132
  %v134 = vpop.xlane.xlu0 %133
  %v135 = vsel %vm104, %v129, 0.0
  %136 = vadd.xlane.f32.xlu0 %v135
  %v137 = vpop.xlane.xlu0 %136
  %v138 = vsel %vm104, %v130, 0.0
  %139 = vadd.xlane.f32.xlu0 %v138
  %v140 = vpop.xlane.xlu0 %139
  %v141 = vsel %vm104, %v131, 0.0
  %142 = vadd.xlane.f32.xlu0 %v141
  %v143 = vpop.xlane.xlu0 %142
  %v144 = vmul.f32 %v134, %v123
  %v145 = vmul.f32 %v137, %v123
  %v146 = vmul.f32 %v140, %v123
  %v147 = vmul.f32 %v143, %v123
  %v148 = vmul.f32 %v124, %v124
  %v149 = vmul.f32 %v125, %v125
  %v150 = vmul.f32 %v126, %v126
  %v151 = vmul.f32 %v127, %v127
  %v152 = vsub.f32 %v144, %v148
  %v153 = vsub.f32 %v145, %v149
  %v154 = vsub.f32 %v146, %v150
  %v155 = vsub.f32 %v147, %v151
  %v156 = vsub.f32 %v95, %v124
  %v157 = vsub.f32 %v97, %v125
  %v158 = vsub.f32 %v100, %v126
  %v159 = vsub.f32 %v102, %v127
  %v160 = vadd.f32 %v152, 1e-05
  %v161 = vadd.f32 %v153, 1e-05
  %v162 = vadd.f32 %v154, 1e-05
  %v163 = vadd.f32 %v155, 1e-05
  %v164 = vrsqrt.pop %v160
  %v165 = vmul.f32 %v164, %v160
  %v166 = vmul.f32 %v165, %v164
  %v167 = vmul.f32 0.5, %v166
  %v168 = vsub.f32 1.5, %v167
  %v169 = vmul.f32 %v164, %v168
  %vm170 = vweird.f32 %v160
  %vm171 = vweird.f32 %v164
  %vm172 = vmor %vm170, %vm171
  %v173 = vsel %vm172, %v164, %v169
  %v174 = vrsqrt.pop %v161
  %v175 = vmul.f32 %v174, %v161
  %v176 = vmul.f32 %v175, %v174
  %v177 = vmul.f32 0.5, %v176
  %v178 = vsub.f32 1.5, %v177
  %v179 = vmul.f32 %v174, %v178
  %vm180 = vweird.f32 %v161
  %vm181 = vweird.f32 %v174
  %vm182 = vmor %vm180, %vm181
  %v183 = vsel %vm182, %v174, %v179
  %v184 = vrsqrt.pop %v162
  %v185 = vmul.f32 %v184, %v162
  %v186 = vmul.f32 %v185, %v184
  %v187 = vmul.f32 0.5, %v186
  %v188 = vsub.f32 1.5, %v187
  %v189 = vmul.f32 %v184, %v188
  %vm190 = vweird.f32 %v162
  %vm191 = vweird.f32 %v184
  %vm192 = vmor %vm190, %vm191
  %v193 = vsel %vm192, %v184, %v189
  %v194 = vrsqrt.pop %v163
  %v195 = vmul.f32 %v194, %v163
  %v196 = vmul.f32 %v195, %v194
  %v197 = vmul.f32 0.5, %v196
  %v198 = vsub.f32 1.5, %v197
  %v199 = vmul.f32 %v194, %v198
  %vm200 = vweird.f32 %v163
  %vm201 = vweird.f32 %v194
  %vm202 = vmor %vm200, %vm201
  %v203 = vsel %vm202, %v194, %v199
  %v204 = vmul.f32 %v156, %v173
  %v205 = vmul.f32 %v157, %v183
  %v206 = vmul.f32 %v158, %v193
  %v207 = vmul.f32 %v159, %v203
  %v208 = vperm.slane %v42, 0
  %v209 = vmul.f32 %v204, %v208
  %v210 = vmul.f32 %v205, %v208
  %v211 = vmul.f32 %v206, %v208
  %v212 = vmul.f32 %v207, %v208
  %v213 = vperm.slane %v42, 1
  %v214 = vadd.f32 %v209, %v213
  %v215 = vadd.f32 %v210, %v213
  %v216 = vadd.f32 %v211, %v213
  %v217 = vadd.f32 %v212, %v213
  %v218 = vld [vmem:[%s3] sm:$0xff]
  %v219 = vld [vmem:[%s3 + $0x8] sm:$0xff]
  %v220 = vld [vmem:[%s3 + $0x10] sm:$0xff]
  %v221 = vld [vmem:[%s3 + $0x18] sm:$0xff]
  %v222 = vld [vmem:[%s3 + $0x20] sm:$0xff]
  %v223 = vld [vmem:[%s3 + $0x28] sm:$0xff]
  %v224 = vld [vmem:[%s5] sm:$0x3f]
  %v225 = vld [vmem:[%s6] sm:$0x3]
  %v226 = vsel %vm104, %v43, 0.0
  %227 = vadd.xlane.f32.xlu0 %v226
  %v228 = vpop.xlane.xlu0 %227
  %v229 = vsel %vm104, %v214, 0.0
  %230 = vadd.xlane.f32.xlu0 %v229
  %v231 = vpop.xlane.xlu0 %230
  %v232 = vsel %vm104, %v215, 0.0
  %233 = vadd.xlane.f32.xlu0 %v232
  %v234 = vpop.xlane.xlu0 %233
  %v235 = vsel %vm104, %v216, 0.0
  %236 = vadd.xlane.f32.xlu0 %v235
  %v237 = vpop.xlane.xlu0 %236
  %v238 = vsel %vm104, %v217, 0.0
  %239 = vadd.xlane.f32.xlu0 %v238
  %v240 = vpop.xlane.xlu0 %239
  %v241 = vmul.f32 %v228, %v123
  %v242 = vmul.f32 %v231, %v123
  %v243 = vmul.f32 %v234, %v123
  %v244 = vmul.f32 %v237, %v123
  %v245 = vmul.f32 %v240, %v123
  %v246 = vmul.f32 %v43, %v43
  %v247 = vmul.f32 %v214, %v214
  %v248 = vmul.f32 %v215, %v215
  %v249 = vmul.f32 %v216, %v216
  %v250 = vmul.f32 %v217, %v217
  %v251 = vsel %vm104, %v246, 0.0
  %252 = vadd.xlane.f32.xlu0 %v251
  %v253 = vpop.xlane.xlu0 %252
  %v254 = vsel %vm104, %v247, 0.0
  %255 = vadd.xlane.f32.xlu0 %v254
  %v256 = vpop.xlane.xlu0 %255
  %v257 = vsel %vm104, %v248, 0.0
  %258 = vadd.xlane.f32.xlu0 %v257
  %v259 = vpop.xlane.xlu0 %258
  %v260 = vsel %vm104, %v249, 0.0
  %261 = vadd.xlane.f32.xlu0 %v260
  %v262 = vpop.xlane.xlu0 %261
  %v263 = vsel %vm104, %v250, 0.0
  %264 = vadd.xlane.f32.xlu0 %v263
  %v265 = vpop.xlane.xlu0 %264
  %v266 = vmul.f32 %v253, %v123
  %v267 = vmul.f32 %v256, %v123
  %v268 = vmul.f32 %v259, %v123
  %v269 = vmul.f32 %v262, %v123
  %v270 = vmul.f32 %v265, %v123
  %v271 = vmul.f32 %v241, %v241
  %v272 = vmul.f32 %v242, %v242
  %v273 = vmul.f32 %v243, %v243
  %v274 = vmul.f32 %v244, %v244
  %v275 = vmul.f32 %v245, %v245
  %v276 = vsub.f32 %v266, %v271
  %v277 = vsub.f32 %v267, %v272
  %v278 = vsub.f32 %v268, %v273
  %v279 = vsub.f32 %v269, %v274
  %v280 = vsub.f32 %v270, %v275
  %v281 = vsub.f32 %v43, %v241
  %v282 = vsub.f32 %v214, %v242
  %v283 = vsub.f32 %v215, %v243
  %v284 = vsub.f32 %v216, %v244
  %v285 = vsub.f32 %v217, %v245
  %v286 = vadd.f32 %v276, 1e-05
  %v287 = vadd.f32 %v277, 1e-05
  %v288 = vadd.f32 %v278, 1e-05
  %v289 = vadd.f32 %v279, 1e-05
  %v290 = vadd.f32 %v280, 1e-05
  %v291 = vrsqrt.pop %v286
  %v292 = vmul.f32 %v291, %v286
  %v293 = vmul.f32 %v292, %v291
  %v294 = vmul.f32 0.5, %v293
  %v295 = vsub.f32 1.5, %v294
  %v296 = vmul.f32 %v291, %v295
  %vm297 = vweird.f32 %v286
  %vm298 = vweird.f32 %v291
  %vm299 = vmor %vm297, %vm298
  %v300 = vsel %vm299, %v291, %v296
  %v301 = vrsqrt.pop %v287
  %v302 = vmul.f32 %v301, %v287
  %v303 = vmul.f32 %v302, %v301
  %v304 = vmul.f32 0.5, %v303
  %v305 = vsub.f32 1.5, %v304
  %v306 = vmul.f32 %v301, %v305
  %vm307 = vweird.f32 %v287
  %vm308 = vweird.f32 %v301
  %vm309 = vmor %vm307, %vm308
  %v310 = vsel %vm309, %v301, %v306
  %v311 = vrsqrt.pop %v288
  %v312 = vmul.f32 %v311, %v288
  %v313 = vmul.f32 %v312, %v311
  %v314 = vmul.f32 0.5, %v313
  %v315 = vsub.f32 1.5, %v314
  %v316 = vmul.f32 %v311, %v315
  %vm317 = vweird.f32 %v288
  %vm318 = vweird.f32 %v311
  %vm319 = vmor %vm317, %vm318
  %v320 = vsel %vm319, %v311, %v316
  %v321 = vrsqrt.pop %v289
  %v322 = vmul.f32 %v321, %v289
  %v323 = vmul.f32 %v322, %v321
  %v324 = vmul.f32 0.5, %v323
  %v325 = vsub.f32 1.5, %v324
  %v326 = vmul.f32 %v321, %v325
  %vm327 = vweird.f32 %v289
  %vm328 = vweird.f32 %v321
  %vm329 = vmor %vm327, %vm328
  %v330 = vsel %vm329, %v321, %v326
  %v331 = vrsqrt.pop %v290
  %v332 = vmul.f32 %v331, %v290
  %v333 = vmul.f32 %v332, %v331
  %v334 = vmul.f32 0.5, %v333
  %v335 = vsub.f32 1.5, %v334
  %v336 = vmul.f32 %v331, %v335
  %vm337 = vweird.f32 %v290
  %vm338 = vweird.f32 %v331
  %vm339 = vmor %vm337, %vm338
  %v340 = vsel %vm339, %v331, %v336
  %v341 = vmul.f32 %v281, %v300
  %v342 = vmul.f32 %v282, %v310
  %v343 = vmul.f32 %v283, %v320
  %v344 = vmul.f32 %v284, %v330
  %v345 = vmul.f32 %v285, %v340
  %v346 = vperm.slane %v224, 0
  %v347 = vmul.f32 %v341, %v346
  %v348 = vmul.f32 %v342, %v346
  %v349 = vmul.f32 %v343, %v346
  %v350 = vmul.f32 %v344, %v346
  %v351 = vmul.f32 %v345, %v346
  %v352 = vperm.slane %v224, 1
  %v353 = vadd.f32 %v347, %v352
  %v354 = vadd.f32 %v348, %v352
  %v355 = vadd.f32 %v349, %v352
  %v356 = vadd.f32 %v350, %v352
  %v357 = vadd.f32 %v351, %v352
  %v358 = vpack.c.bf16 %v354, %v353
  %v359 = vpack.c.bf16 %v353, %v355
  %v360 = vpack.c.bf16 %v357, %v356
  %v361 = vld [vmem:[%s7] sm:$0xf]
  %v362 = vld [vmem:[%s7 + $0x4] sm:$0xf]
  %v363 = vld [vmem:[%s7 + $0x8] sm:$0xf]
  %v364 = vld [vmem:[%s7 + $0xc] sm:$0xf]
  %v365 = vperm.slane %v225, 0
  %v370 = vunpack.c.l.b16 %v361
  %v371 = vunpack.c.l.b16 %v362
  %v372 = vunpack.c.l.b16 %v363
  %v373 = vunpack.c.l.b16 %v364
  %v374 = vpack.c.b16 %v371, %v370
  %v375 = vpack.c.b16 %v373, %v372
  %v379 = vsel %vm104, %v358, 0
  %v382 = vsel %vm104, %v359, 0
  %v385 = vsel %vm104, %v360, 0
  %387 = vmatpush.bf16.msra.mxu0 0
  %388 = vmatpush.bf16.msra.mxu0 0
  %389 = vmatpush.bf16.msra.mxu0 0
  %390 = vmatpush.bf16.msra.mxu0 0
  %391 = vmatpush.bf16.msra.mxu0 0
  %392 = vmatpush.bf16.msra.mxu0 0
  %393 = vmatpush.bf16.msra.mxu0 %v375
  %394 = vmatpush.bf16.msra.mxu0 %v374
  %395 = vmatmul.bf16.gmra.mxu0 %v379
  %v396 = vpop.f32.mrf.mxu0
  %v397 = vadd.f32 %v365, %v396
  %v398 = vpop.f32.mrf.mxu0
  %v399 = vadd.f32 %v365, %v398
  %400 = vmatmul.bf16.gmra.mxu0 %v382
  %v401 = vpop.f32.mrf.mxu0
  %v402 = vadd.f32 %v365, %v401
  %v403 = vpop.f32.mrf.mxu0
  %v404 = vadd.f32 %v365, %v403
  %405 = vmatmul.bf16.gmra.mxu0 %v385
  %v406 = vpop.f32.mrf.mxu0
  %v407 = vadd.f32 %v365, %v406
  %v408 = vpop.f32.mrf.mxu0
  %v409 = vadd.f32 %v365, %v408
  %410 = vdwg.mxu0
  %v411 = vmul.f32 %v397, 0.35355338
  %v412 = vmul.f32 %v399, 0.35355338
  %v413 = vmul.f32 %v402, 0.35355338
  %v414 = vmul.f32 %v404, 0.35355338
  %v415 = vmul.f32 %v407, 0.35355338
  %v416 = vmul.f32 %v409, 0.35355338
  %v417 = vpack.c.bf16 %v411, %v411
  %v418 = vpack.c.bf16 %v412, %v412
  %v419 = vpack.c.bf16 %v413, %v413
  %v420 = vpack.c.bf16 %v414, %v414
  %v421 = vpack.c.bf16 %v415, %v415
  %v422 = vpack.c.bf16 %v416, %v416
  %v423 = vpack.c.bf16 %v397, %v397
  %v424 = vpack.c.bf16 %v399, %v399
  %v425 = vpack.c.bf16 %v402, %v402
  %v426 = vpack.c.bf16 %v404, %v404
  %v427 = vpack.c.bf16 %v407, %v407
  %v428 = vpack.c.bf16 %v409, %v409
  %v435 = vunpack.c.l.b16 %v417
  %v436 = vunpack.c.l.b16 %v418
  %v437 = vunpack.c.l.b16 %v419
  %v438 = vunpack.c.l.b16 %v420
  %v439 = vunpack.c.l.b16 %v421
  %v440 = vunpack.c.l.b16 %v422
  %v441 = vpack.c.b16 %v436, %v435
  %v442 = vpack.c.b16 %v438, %v437
  %v443 = vpack.c.b16 %v440, %v439
  %v450 = vunpack.c.l.b16 %v423
  %v451 = vunpack.c.l.b16 %v424
  %v452 = vunpack.c.l.b16 %v425
  %v453 = vunpack.c.l.b16 %v426
  %v454 = vunpack.c.l.b16 %v427
  %v455 = vunpack.c.l.b16 %v428
  %v456 = vpack.c.b16 %v451, %v450
  %v457 = vpack.c.b16 %v453, %v452
  %v458 = vpack.c.b16 %v455, %v454
  %459 = vrot.lane.b32.xlu0 %v456, 96
  %v460 = vpop.permute.xlu0 %459
  %461 = vrot.lane.b32.xlu0 %v457, 96
  %v462 = vpop.permute.xlu0 %461
  %463 = vrot.lane.b32.xlu0 %v458, 96
  %v464 = vpop.permute.xlu0 %463
  %vm465 = vcmask 64512
  %v467 = vsel %vm465, %v441, 0
  %v470 = vsel %vm465, %v442, 0
  %v473 = vsel %vm465, %v443, 0
  %v476 = vsel %vm465, %v460, 0
  %v479 = vsel %vm465, %v462, 0
  %v482 = vsel %vm465, %v464, 0
  %484 = vmatpush.bf16.xpose.msra.mxu0 0
  %485 = vmatpush.bf16.xpose.msra.mxu0 0
  %486 = vmatpush.bf16.xpose.msra.mxu0 0
  %487 = vmatpush.bf16.xpose.msra.mxu0 0
  %488 = vmatpush.bf16.xpose.msra.mxu0 0
  %489 = vmatpush.bf16.xpose.msra.mxu0 %v482
  %490 = vmatpush.bf16.xpose.msra.mxu0 %v479
  %491 = vmatpush.bf16.xpose.msra.mxu0 %v476
  %492 = vmatmul.bf16.gmra.mxu0 %v467
  %v493 = vpop.f32.mrf.mxu0
  %v494 = vadd.f32 %v218, %v493
  %v495 = vpop.f32.mrf.mxu0
  %v496 = vadd.f32 %v219, %v495
  %497 = vmatmul.bf16.gmra.mxu0 %v470
  %v498 = vpop.f32.mrf.mxu0
  %v499 = vadd.f32 %v220, %v498
  %v500 = vpop.f32.mrf.mxu0
  %v501 = vadd.f32 %v221, %v500
  %502 = vmatmul.bf16.gmra.mxu0 %v473
  %v503 = vpop.f32.mrf.mxu0
  %v504 = vadd.f32 %v222, %v503
  %v505 = vpop.f32.mrf.mxu0
  %v506 = vadd.f32 %v223, %v505
  %507 = vdwg.mxu0
  %v508 = vsel %vm78, %v494, -inf
  %509 = vmax.xlane.f32.xlu0 %v508
  %v510 = vpop.xlane.xlu0 %509
  %v511 = vsel %vm78, %v496, -inf
  %512 = vmax.xlane.f32.xlu0 %v511
  %v513 = vpop.xlane.xlu0 %512
  %v514 = vsel %vm78, %v499, -inf
  %515 = vmax.xlane.f32.xlu0 %v514
  %v516 = vpop.xlane.xlu0 %515
  %v517 = vsel %vm78, %v501, -inf
  %518 = vmax.xlane.f32.xlu0 %v517
  %v519 = vpop.xlane.xlu0 %518
  %v520 = vsel %vm78, %v504, -inf
  %521 = vmax.xlane.f32.xlu0 %v520
  %v522 = vpop.xlane.xlu0 %521
  %v523 = vsel %vm78, %v506, -inf
  %524 = vmax.xlane.f32.xlu0 %v523
  %v525 = vpop.xlane.xlu0 %524
  %v526 = vsub.f32 %v494, %v510
  %v527 = vsub.f32 %v496, %v513
  %v528 = vsub.f32 %v499, %v516
  %v529 = vsub.f32 %v501, %v519
  %v530 = vsub.f32 %v504, %v522
  %v531 = vsub.f32 %v506, %v525
  %v532 = vmul.f32 %v526, 1.442695
  %v533 = vpow.pop %v532
  %v534 = vmul.f32 %v527, 1.442695
  %v535 = vpow.pop %v534
  %v536 = vmul.f32 %v528, 1.442695
  %v537 = vpow.pop %v536
  %v538 = vmul.f32 %v529, 1.442695
  %v539 = vpow.pop %v538
  %v540 = vmul.f32 %v530, 1.442695
  %v541 = vpow.pop %v540
  %v542 = vmul.f32 %v531, 1.442695
  %v543 = vpow.pop %v542
  %v544 = vsel %vm78, %v533, 0.0
  %545 = vadd.xlane.f32.xlu0 %v544
  %v546 = vpop.xlane.xlu0 %545
  %v547 = vsel %vm78, %v535, 0.0
  %548 = vadd.xlane.f32.xlu0 %v547
  %v549 = vpop.xlane.xlu0 %548
  %v550 = vsel %vm78, %v537, 0.0
  %551 = vadd.xlane.f32.xlu0 %v550
  %v552 = vpop.xlane.xlu0 %551
  %v553 = vsel %vm78, %v539, 0.0
  %554 = vadd.xlane.f32.xlu0 %v553
  %v555 = vpop.xlane.xlu0 %554
  %v556 = vsel %vm78, %v541, 0.0
  %557 = vadd.xlane.f32.xlu0 %v556
  %v558 = vpop.xlane.xlu0 %557
  %v559 = vsel %vm78, %v543, 0.0
  %560 = vadd.xlane.f32.xlu0 %v559
  %v561 = vpop.xlane.xlu0 %560
  %v562 = vrcp.pop %v546
  %v563 = vrcp.pop %v549
  %v564 = vrcp.pop %v552
  %v565 = vrcp.pop %v555
  %v566 = vrcp.pop %v558
  %v567 = vrcp.pop %v561
  %v568 = vmul.f32 %v533, %v562
  %v569 = vmul.f32 %v535, %v563
  %v570 = vmul.f32 %v537, %v564
  %v571 = vmul.f32 %v539, %v565
  %v572 = vmul.f32 %v541, %v566
  %v573 = vmul.f32 %v543, %v567
  %v574 = vpack.c.bf16 %v569, %v568
  %v575 = vpack.c.bf16 %v571, %v570
  %v576 = vpack.c.bf16 %v573, %v572
  %577 = vrot.lane.b32.xlu0 %v456, 64
  %v578 = vpop.permute.xlu0 %577
  %579 = vrot.lane.b32.xlu0 %v457, 64
  %v580 = vpop.permute.xlu0 %579
  %581 = vrot.lane.b32.xlu0 %v458, 64
  %v582 = vpop.permute.xlu0 %581
  %v587 = vsel %vm78, %v574, 0
  %v590 = vsel %vm78, %v575, 0
  %v593 = vsel %vm78, %v576, 0
  %595 = vmatpush.bf16.msra.mxu0 0
  %596 = vmatpush.bf16.msra.mxu0 0
  %597 = vmatpush.bf16.msra.mxu0 0
  %598 = vmatpush.bf16.msra.mxu0 0
  %599 = vmatpush.bf16.msra.mxu0 0
  %600 = vmatpush.bf16.msra.mxu0 %v582
  %601 = vmatpush.bf16.msra.mxu0 %v580
  %602 = vmatpush.bf16.msra.mxu0 %v578
  %603 = vmatmul.bf16.gmra.mxu0 %v587
  %v604 = vpop.f32.mrf.mxu0
  %v605 = vadd.f32 0.0, %v604
  %v606 = vpop.f32.mrf.mxu0
  %v607 = vadd.f32 0.0, %v606
  %608 = vmatmul.bf16.gmra.mxu0 %v590
  %v609 = vpop.f32.mrf.mxu0
  %v610 = vadd.f32 0.0, %v609
  %v611 = vpop.f32.mrf.mxu0
  %v612 = vadd.f32 0.0, %v611
  %613 = vmatmul.bf16.gmra.mxu0 %v593
  %v614 = vpop.f32.mrf.mxu0
  %v615 = vadd.f32 0.0, %v614
  %v616 = vpop.f32.mrf.mxu0
  %v617 = vadd.f32 0.0, %v616
  %618 = vdwg.mxu0
  %619 = vrot.lane.b32.xlu0 %v441, 120
  %v620 = vpop.permute.xlu0 %619
  %621 = vrot.lane.b32.xlu0 %v442, 120
  %v622 = vpop.permute.xlu0 %621
  %623 = vrot.lane.b32.xlu0 %v443, 120
  %v624 = vpop.permute.xlu0 %623
  %625 = vrot.lane.b32.xlu0 %v456, 88
  %v626 = vpop.permute.xlu0 %625
  %627 = vrot.lane.b32.xlu0 %v457, 88
  %v628 = vpop.permute.xlu0 %627
  %629 = vrot.lane.b32.xlu0 %v458, 88
  %v630 = vpop.permute.xlu0 %629
  %v632 = vsel %vm465, %v620, 0
  %v635 = vsel %vm465, %v622, 0
  %v638 = vsel %vm465, %v624, 0
  %v641 = vsel %vm465, %v626, 0
  %v644 = vsel %vm465, %v628, 0
  %v647 = vsel %vm465, %v630, 0
  %649 = vmatpush.bf16.xpose.msra.mxu0 0
  %650 = vmatpush.bf16.xpose.msra.mxu0 0
  %651 = vmatpush.bf16.xpose.msra.mxu0 0
  %652 = vmatpush.bf16.xpose.msra.mxu0 0
  %653 = vmatpush.bf16.xpose.msra.mxu0 0
  %654 = vmatpush.bf16.xpose.msra.mxu0 %v647
  %655 = vmatpush.bf16.xpose.msra.mxu0 %v644
  %656 = vmatpush.bf16.xpose.msra.mxu0 %v641
  %657 = vmatmul.bf16.gmra.mxu0 %v632
  %v658 = vpop.f32.mrf.mxu0
  %v659 = vadd.f32 %v218, %v658
  %v660 = vpop.f32.mrf.mxu0
  %v661 = vadd.f32 %v219, %v660
  %662 = vmatmul.bf16.gmra.mxu0 %v635
  %v663 = vpop.f32.mrf.mxu0
  %v664 = vadd.f32 %v220, %v663
  %v665 = vpop.f32.mrf.mxu0
  %v666 = vadd.f32 %v221, %v665
  %667 = vmatmul.bf16.gmra.mxu0 %v638
  %v668 = vpop.f32.mrf.mxu0
  %v669 = vadd.f32 %v222, %v668
  %v670 = vpop.f32.mrf.mxu0
  %v671 = vadd.f32 %v223, %v670
  %672 = vdwg.mxu0
  %v673 = vsel %vm78, %v659, -inf
  %674 = vmax.xlane.f32.xlu0 %v673
  %v675 = vpop.xlane.xlu0 %674
  %v676 = vsel %vm78, %v661, -inf
  %677 = vmax.xlane.f32.xlu0 %v676
  %v678 = vpop.xlane.xlu0 %677
  %v679 = vsel %vm78, %v664, -inf
  %680 = vmax.xlane.f32.xlu0 %v679
  %v681 = vpop.xlane.xlu0 %680
  %v682 = vsel %vm78, %v666, -inf
  %683 = vmax.xlane.f32.xlu0 %v682
  %v684 = vpop.xlane.xlu0 %683
  %v685 = vsel %vm78, %v669, -inf
  %686 = vmax.xlane.f32.xlu0 %v685
  %v687 = vpop.xlane.xlu0 %686
  %v688 = vsel %vm78, %v671, -inf
  %689 = vmax.xlane.f32.xlu0 %v688
  %v690 = vpop.xlane.xlu0 %689
  %v691 = vsub.f32 %v659, %v675
  %v692 = vsub.f32 %v661, %v678
  %v693 = vsub.f32 %v664, %v681
  %v694 = vsub.f32 %v666, %v684
  %v695 = vsub.f32 %v669, %v687
  %v696 = vsub.f32 %v671, %v690
  %v697 = vmul.f32 %v691, 1.442695
  %v698 = vpow.pop %v697
  %v699 = vmul.f32 %v692, 1.442695
  %v700 = vpow.pop %v699
  %v701 = vmul.f32 %v693, 1.442695
  %v702 = vpow.pop %v701
  %v703 = vmul.f32 %v694, 1.442695
  %v704 = vpow.pop %v703
  %v705 = vmul.f32 %v695, 1.442695
  %v706 = vpow.pop %v705
  %v707 = vmul.f32 %v696, 1.442695
  %v708 = vpow.pop %v707
  %v709 = vsel %vm78, %v698, 0.0
  %710 = vadd.xlane.f32.xlu0 %v709
  %v711 = vpop.xlane.xlu0 %710
  %v712 = vsel %vm78, %v700, 0.0
  %713 = vadd.xlane.f32.xlu0 %v712
  %v714 = vpop.xlane.xlu0 %713
  %v715 = vsel %vm78, %v702, 0.0
  %716 = vadd.xlane.f32.xlu0 %v715
  %v717 = vpop.xlane.xlu0 %716
  %v718 = vsel %vm78, %v704, 0.0
  %719 = vadd.xlane.f32.xlu0 %v718
  %v720 = vpop.xlane.xlu0 %719
  %v721 = vsel %vm78, %v706, 0.0
  %722 = vadd.xlane.f32.xlu0 %v721
  %v723 = vpop.xlane.xlu0 %722
  %v724 = vsel %vm78, %v708, 0.0
  %725 = vadd.xlane.f32.xlu0 %v724
  %v726 = vpop.xlane.xlu0 %725
  %v727 = vrcp.pop %v711
  %v728 = vrcp.pop %v714
  %v729 = vrcp.pop %v717
  %v730 = vrcp.pop %v720
  %v731 = vrcp.pop %v723
  %v732 = vrcp.pop %v726
  %v733 = vmul.f32 %v698, %v727
  %v734 = vmul.f32 %v700, %v728
  %v735 = vmul.f32 %v702, %v729
  %v736 = vmul.f32 %v704, %v730
  %v737 = vmul.f32 %v706, %v731
  %v738 = vmul.f32 %v708, %v732
  %v739 = vpack.c.bf16 %v734, %v733
  %v740 = vpack.c.bf16 %v736, %v735
  %v741 = vpack.c.bf16 %v738, %v737
  %742 = vrot.lane.b32.xlu0 %v456, 56
  %v743 = vpop.permute.xlu0 %742
  %744 = vrot.lane.b32.xlu0 %v457, 56
  %v745 = vpop.permute.xlu0 %744
  %746 = vrot.lane.b32.xlu0 %v458, 56
  %v747 = vpop.permute.xlu0 %746
  %v752 = vsel %vm78, %v739, 0
  %v755 = vsel %vm78, %v740, 0
  %v758 = vsel %vm78, %v741, 0
  %760 = vmatpush.bf16.msra.mxu0 0
  %761 = vmatpush.bf16.msra.mxu0 0
  %762 = vmatpush.bf16.msra.mxu0 0
  %763 = vmatpush.bf16.msra.mxu0 0
  %764 = vmatpush.bf16.msra.mxu0 0
  %765 = vmatpush.bf16.msra.mxu0 %v747
  %766 = vmatpush.bf16.msra.mxu0 %v745
  %767 = vmatpush.bf16.msra.mxu0 %v743
  %768 = vmatmul.bf16.gmra.mxu0 %v752
  %v769 = vpop.f32.mrf.mxu0
  %v770 = vadd.f32 0.0, %v769
  %v771 = vpop.f32.mrf.mxu0
  %v772 = vadd.f32 0.0, %v771
  %773 = vmatmul.bf16.gmra.mxu0 %v755
  %v774 = vpop.f32.mrf.mxu0
  %v775 = vadd.f32 0.0, %v774
  %v776 = vpop.f32.mrf.mxu0
  %v777 = vadd.f32 0.0, %v776
  %778 = vmatmul.bf16.gmra.mxu0 %v758
  %v779 = vpop.f32.mrf.mxu0
  %v780 = vadd.f32 0.0, %v779
  %v781 = vpop.f32.mrf.mxu0
  %v782 = vadd.f32 0.0, %v781
  %783 = vdwg.mxu0
  %784 = vrot.lane.b32.xlu0 %v441, 112
  %v785 = vpop.permute.xlu0 %784
  %786 = vrot.lane.b32.xlu0 %v442, 112
  %v787 = vpop.permute.xlu0 %786
  %788 = vrot.lane.b32.xlu0 %v443, 112
  %v789 = vpop.permute.xlu0 %788
  %790 = vrot.lane.b32.xlu0 %v456, 80
  %v791 = vpop.permute.xlu0 %790
  %792 = vrot.lane.b32.xlu0 %v457, 80
  %v793 = vpop.permute.xlu0 %792
  %794 = vrot.lane.b32.xlu0 %v458, 80
  %v795 = vpop.permute.xlu0 %794
  %v797 = vsel %vm465, %v785, 0
  %v800 = vsel %vm465, %v787, 0
  %v803 = vsel %vm465, %v789, 0
  %v806 = vsel %vm465, %v791, 0
  %v809 = vsel %vm465, %v793, 0
  %v812 = vsel %vm465, %v795, 0
  %814 = vmatpush.bf16.xpose.msra.mxu0 0
  %815 = vmatpush.bf16.xpose.msra.mxu0 0
  %816 = vmatpush.bf16.xpose.msra.mxu0 0
  %817 = vmatpush.bf16.xpose.msra.mxu0 0
  %818 = vmatpush.bf16.xpose.msra.mxu0 0
  %819 = vmatpush.bf16.xpose.msra.mxu0 %v812
  %820 = vmatpush.bf16.xpose.msra.mxu0 %v809
  %821 = vmatpush.bf16.xpose.msra.mxu0 %v806
  %822 = vmatmul.bf16.gmra.mxu0 %v797
  %v823 = vpop.f32.mrf.mxu0
  %v824 = vadd.f32 %v218, %v823
  %v825 = vpop.f32.mrf.mxu0
  %v826 = vadd.f32 %v219, %v825
  %827 = vmatmul.bf16.gmra.mxu0 %v800
  %v828 = vpop.f32.mrf.mxu0
  %v829 = vadd.f32 %v220, %v828
  %v830 = vpop.f32.mrf.mxu0
  %v831 = vadd.f32 %v221, %v830
  %832 = vmatmul.bf16.gmra.mxu0 %v803
  %v833 = vpop.f32.mrf.mxu0
  %v834 = vadd.f32 %v222, %v833
  %v835 = vpop.f32.mrf.mxu0
  %v836 = vadd.f32 %v223, %v835
  %837 = vdwg.mxu0
  %v838 = vsel %vm78, %v824, -inf
  %839 = vmax.xlane.f32.xlu0 %v838
  %v840 = vpop.xlane.xlu0 %839
  %v841 = vsel %vm78, %v826, -inf
  %842 = vmax.xlane.f32.xlu0 %v841
  %v843 = vpop.xlane.xlu0 %842
  %v844 = vsel %vm78, %v829, -inf
  %845 = vmax.xlane.f32.xlu0 %v844
  %v846 = vpop.xlane.xlu0 %845
  %v847 = vsel %vm78, %v831, -inf
  %848 = vmax.xlane.f32.xlu0 %v847
  %v849 = vpop.xlane.xlu0 %848
  %v850 = vsel %vm78, %v834, -inf
  %851 = vmax.xlane.f32.xlu0 %v850
  %v852 = vpop.xlane.xlu0 %851
  %v853 = vsel %vm78, %v836, -inf
  %854 = vmax.xlane.f32.xlu0 %v853
  %v855 = vpop.xlane.xlu0 %854
  %v856 = vsub.f32 %v824, %v840
  %v857 = vsub.f32 %v826, %v843
  %v858 = vsub.f32 %v829, %v846
  %v859 = vsub.f32 %v831, %v849
  %v860 = vsub.f32 %v834, %v852
  %v861 = vsub.f32 %v836, %v855
  %v862 = vmul.f32 %v856, 1.442695
  %v863 = vpow.pop %v862
  %v864 = vmul.f32 %v857, 1.442695
  %v865 = vpow.pop %v864
  %v866 = vmul.f32 %v858, 1.442695
  %v867 = vpow.pop %v866
  %v868 = vmul.f32 %v859, 1.442695
  %v869 = vpow.pop %v868
  %v870 = vmul.f32 %v860, 1.442695
  %v871 = vpow.pop %v870
  %v872 = vmul.f32 %v861, 1.442695
  %v873 = vpow.pop %v872
  %v874 = vsel %vm78, %v863, 0.0
  %875 = vadd.xlane.f32.xlu0 %v874
  %v876 = vpop.xlane.xlu0 %875
  %v877 = vsel %vm78, %v865, 0.0
  %878 = vadd.xlane.f32.xlu0 %v877
  %v879 = vpop.xlane.xlu0 %878
  %v880 = vsel %vm78, %v867, 0.0
  %881 = vadd.xlane.f32.xlu0 %v880
  %v882 = vpop.xlane.xlu0 %881
  %v883 = vsel %vm78, %v869, 0.0
  %884 = vadd.xlane.f32.xlu0 %v883
  %v885 = vpop.xlane.xlu0 %884
  %v886 = vsel %vm78, %v871, 0.0
  %887 = vadd.xlane.f32.xlu0 %v886
  %v888 = vpop.xlane.xlu0 %887
  %v889 = vsel %vm78, %v873, 0.0
  %890 = vadd.xlane.f32.xlu0 %v889
  %v891 = vpop.xlane.xlu0 %890
  %v892 = vrcp.pop %v876
  %v893 = vrcp.pop %v879
  %v894 = vrcp.pop %v882
  %v895 = vrcp.pop %v885
  %v896 = vrcp.pop %v888
  %v897 = vrcp.pop %v891
  %v898 = vmul.f32 %v863, %v892
  %v899 = vmul.f32 %v865, %v893
  %v900 = vmul.f32 %v867, %v894
  %v901 = vmul.f32 %v869, %v895
  %v902 = vmul.f32 %v871, %v896
  %v903 = vmul.f32 %v873, %v897
  %v904 = vpack.c.bf16 %v899, %v898
  %v905 = vpack.c.bf16 %v901, %v900
  %v906 = vpack.c.bf16 %v903, %v902
  %907 = vrot.lane.b32.xlu0 %v456, 48
  %v908 = vpop.permute.xlu0 %907
  %909 = vrot.lane.b32.xlu0 %v457, 48
  %v910 = vpop.permute.xlu0 %909
  %911 = vrot.lane.b32.xlu0 %v458, 48
  %v912 = vpop.permute.xlu0 %911
  %v917 = vsel %vm78, %v904, 0
  %v920 = vsel %vm78, %v905, 0
  %v923 = vsel %vm78, %v906, 0
  %925 = vmatpush.bf16.msra.mxu0 0
  %926 = vmatpush.bf16.msra.mxu0 0
  %927 = vmatpush.bf16.msra.mxu0 0
  %928 = vmatpush.bf16.msra.mxu0 0
  %929 = vmatpush.bf16.msra.mxu0 0
  %930 = vmatpush.bf16.msra.mxu0 %v912
  %931 = vmatpush.bf16.msra.mxu0 %v910
  %932 = vmatpush.bf16.msra.mxu0 %v908
  %933 = vmatmul.bf16.gmra.mxu0 %v917
  %v934 = vpop.f32.mrf.mxu0
  %v935 = vadd.f32 0.0, %v934
  %v936 = vpop.f32.mrf.mxu0
  %v937 = vadd.f32 0.0, %v936
  %938 = vmatmul.bf16.gmra.mxu0 %v920
  %v939 = vpop.f32.mrf.mxu0
  %v940 = vadd.f32 0.0, %v939
  %v941 = vpop.f32.mrf.mxu0
  %v942 = vadd.f32 0.0, %v941
  %943 = vmatmul.bf16.gmra.mxu0 %v923
  %v944 = vpop.f32.mrf.mxu0
  %v945 = vadd.f32 0.0, %v944
  %v946 = vpop.f32.mrf.mxu0
  %v947 = vadd.f32 0.0, %v946
  %948 = vdwg.mxu0
  %949 = vrot.lane.b32.xlu0 %v441, 104
  %v950 = vpop.permute.xlu0 %949
  %951 = vrot.lane.b32.xlu0 %v442, 104
  %v952 = vpop.permute.xlu0 %951
  %953 = vrot.lane.b32.xlu0 %v443, 104
  %v954 = vpop.permute.xlu0 %953
  %955 = vrot.lane.b32.xlu0 %v456, 72
  %v956 = vpop.permute.xlu0 %955
  %957 = vrot.lane.b32.xlu0 %v457, 72
  %v958 = vpop.permute.xlu0 %957
  %959 = vrot.lane.b32.xlu0 %v458, 72
  %v960 = vpop.permute.xlu0 %959
  %v962 = vsel %vm465, %v950, 0
  %v965 = vsel %vm465, %v952, 0
  %v968 = vsel %vm465, %v954, 0
  %v971 = vsel %vm465, %v956, 0
  %v974 = vsel %vm465, %v958, 0
  %v977 = vsel %vm465, %v960, 0
  %979 = vmatpush.bf16.xpose.msra.mxu0 0
  %980 = vmatpush.bf16.xpose.msra.mxu0 0
  %981 = vmatpush.bf16.xpose.msra.mxu0 0
  %982 = vmatpush.bf16.xpose.msra.mxu0 0
  %983 = vmatpush.bf16.xpose.msra.mxu0 0
  %984 = vmatpush.bf16.xpose.msra.mxu0 %v977
  %985 = vmatpush.bf16.xpose.msra.mxu0 %v974
  %986 = vmatpush.bf16.xpose.msra.mxu0 %v971
  %987 = vmatmul.bf16.gmra.mxu0 %v962
  %v988 = vpop.f32.mrf.mxu0
  %v989 = vadd.f32 %v218, %v988
  %v990 = vpop.f32.mrf.mxu0
  %v991 = vadd.f32 %v219, %v990
  %992 = vmatmul.bf16.gmra.mxu0 %v965
  %v993 = vpop.f32.mrf.mxu0
  %v994 = vadd.f32 %v220, %v993
  %v995 = vpop.f32.mrf.mxu0
  %v996 = vadd.f32 %v221, %v995
  %997 = vmatmul.bf16.gmra.mxu0 %v968
  %v998 = vpop.f32.mrf.mxu0
  %v999 = vadd.f32 %v222, %v998
  %v1000 = vpop.f32.mrf.mxu0
  %v1001 = vadd.f32 %v223, %v1000
  %1002 = vdwg.mxu0
  %v1003 = vsel %vm78, %v989, -inf
  %1004 = vmax.xlane.f32.xlu0 %v1003
  %v1005 = vpop.xlane.xlu0 %1004
  %v1006 = vsel %vm78, %v991, -inf
  %1007 = vmax.xlane.f32.xlu0 %v1006
  %v1008 = vpop.xlane.xlu0 %1007
  %v1009 = vsel %vm78, %v994, -inf
  %1010 = vmax.xlane.f32.xlu0 %v1009
  %v1011 = vpop.xlane.xlu0 %1010
  %v1012 = vsel %vm78, %v996, -inf
  %1013 = vmax.xlane.f32.xlu0 %v1012
  %v1014 = vpop.xlane.xlu0 %1013
  %v1015 = vsel %vm78, %v999, -inf
  %1016 = vmax.xlane.f32.xlu0 %v1015
  %v1017 = vpop.xlane.xlu0 %1016
  %v1018 = vsel %vm78, %v1001, -inf
  %1019 = vmax.xlane.f32.xlu0 %v1018
  %v1020 = vpop.xlane.xlu0 %1019
  %v1021 = vsub.f32 %v989, %v1005
  %v1022 = vsub.f32 %v991, %v1008
  %v1023 = vsub.f32 %v994, %v1011
  %v1024 = vsub.f32 %v996, %v1014
  %v1025 = vsub.f32 %v999, %v1017
  %v1026 = vsub.f32 %v1001, %v1020
  %v1027 = vmul.f32 %v1021, 1.442695
  %v1028 = vpow.pop %v1027
  %v1029 = vmul.f32 %v1022, 1.442695
  %v1030 = vpow.pop %v1029
  %v1031 = vmul.f32 %v1023, 1.442695
  %v1032 = vpow.pop %v1031
  %v1033 = vmul.f32 %v1024, 1.442695
  %v1034 = vpow.pop %v1033
  %v1035 = vmul.f32 %v1025, 1.442695
  %v1036 = vpow.pop %v1035
  %v1037 = vmul.f32 %v1026, 1.442695
  %v1038 = vpow.pop %v1037
  %v1039 = vsel %vm78, %v1028, 0.0
  %1040 = vadd.xlane.f32.xlu0 %v1039
  %v1041 = vpop.xlane.xlu0 %1040
  %v1042 = vsel %vm78, %v1030, 0.0
  %1043 = vadd.xlane.f32.xlu0 %v1042
  %v1044 = vpop.xlane.xlu0 %1043
  %v1045 = vsel %vm78, %v1032, 0.0
  %1046 = vadd.xlane.f32.xlu0 %v1045
  %v1047 = vpop.xlane.xlu0 %1046
  %v1048 = vsel %vm78, %v1034, 0.0
  %1049 = vadd.xlane.f32.xlu0 %v1048
  %v1050 = vpop.xlane.xlu0 %1049
  %v1051 = vsel %vm78, %v1036, 0.0
  %1052 = vadd.xlane.f32.xlu0 %v1051
  %v1053 = vpop.xlane.xlu0 %1052
  %v1054 = vsel %vm78, %v1038, 0.0
  %1055 = vadd.xlane.f32.xlu0 %v1054
  %v1056 = vpop.xlane.xlu0 %1055
  %v1057 = vrcp.pop %v1041
  %v1058 = vrcp.pop %v1044
  %v1059 = vrcp.pop %v1047
  %v1060 = vrcp.pop %v1050
  %v1061 = vrcp.pop %v1053
  %v1062 = vrcp.pop %v1056
  %v1063 = vmul.f32 %v1028, %v1057
  %v1064 = vmul.f32 %v1030, %v1058
  %v1065 = vmul.f32 %v1032, %v1059
  %v1066 = vmul.f32 %v1034, %v1060
  %v1067 = vmul.f32 %v1036, %v1061
  %v1068 = vmul.f32 %v1038, %v1062
  %v1069 = vpack.c.bf16 %v1064, %v1063
  %v1070 = vpack.c.bf16 %v1066, %v1065
  %v1071 = vpack.c.bf16 %v1068, %v1067
  %1072 = vrot.lane.b32.xlu0 %v456, 40
  %v1073 = vpop.permute.xlu0 %1072
  %1074 = vrot.lane.b32.xlu0 %v457, 40
  %v1075 = vpop.permute.xlu0 %1074
  %1076 = vrot.lane.b32.xlu0 %v458, 40
  %v1077 = vpop.permute.xlu0 %1076
  %v1082 = vsel %vm78, %v1069, 0
  %v1085 = vsel %vm78, %v1070, 0
  %v1088 = vsel %vm78, %v1071, 0
  %1090 = vmatpush.bf16.msra.mxu0 0
  %1091 = vmatpush.bf16.msra.mxu0 0
  %1092 = vmatpush.bf16.msra.mxu0 0
  %1093 = vmatpush.bf16.msra.mxu0 0
  %1094 = vmatpush.bf16.msra.mxu0 0
  %1095 = vmatpush.bf16.msra.mxu0 %v1077
  %1096 = vmatpush.bf16.msra.mxu0 %v1075
  %1097 = vmatpush.bf16.msra.mxu0 %v1073
  %1098 = vmatmul.bf16.gmra.mxu0 %v1082
  %v1099 = vpop.f32.mrf.mxu0
  %v1100 = vadd.f32 0.0, %v1099
  %v1101 = vpop.f32.mrf.mxu0
  %v1102 = vadd.f32 0.0, %v1101
  %1103 = vmatmul.bf16.gmra.mxu0 %v1085
  %v1104 = vpop.f32.mrf.mxu0
  %v1105 = vadd.f32 0.0, %v1104
  %v1106 = vpop.f32.mrf.mxu0
  %v1107 = vadd.f32 0.0, %v1106
  %1108 = vmatmul.bf16.gmra.mxu0 %v1088
  %v1109 = vpop.f32.mrf.mxu0
  %v1110 = vadd.f32 0.0, %v1109
  %v1111 = vpop.f32.mrf.mxu0
  %v1112 = vadd.f32 0.0, %v1111
  %1113 = vdwg.mxu0
  %1120 = vrot.lane.b32.xlu0 %v770, 8
  %v1121 = vpop.permute.xlu0 %1120
  %1122 = vrot.lane.b32.xlu0 %v772, 8
  %v1123 = vpop.permute.xlu0 %1122
  %1124 = vrot.lane.b32.xlu0 %v775, 8
  %v1125 = vpop.permute.xlu0 %1124
  %1126 = vrot.lane.b32.xlu0 %v777, 8
  %v1127 = vpop.permute.xlu0 %1126
  %1128 = vrot.lane.b32.xlu0 %v780, 8
  %v1129 = vpop.permute.xlu0 %1128
  %1130 = vrot.lane.b32.xlu0 %v782, 8
  %v1131 = vpop.permute.xlu0 %1130
  %1144 = vrot.lane.b32.xlu0 %v935, 16
  %v1145 = vpop.permute.xlu0 %1144
  %1146 = vrot.lane.b32.xlu0 %v937, 16
  %v1147 = vpop.permute.xlu0 %1146
  %1148 = vrot.lane.b32.xlu0 %v940, 16
  %v1149 = vpop.permute.xlu0 %1148
  %1150 = vrot.lane.b32.xlu0 %v942, 16
  %v1151 = vpop.permute.xlu0 %1150
  %1152 = vrot.lane.b32.xlu0 %v945, 16
  %v1153 = vpop.permute.xlu0 %1152
  %1154 = vrot.lane.b32.xlu0 %v947, 16
  %v1155 = vpop.permute.xlu0 %1154
  %1168 = vrot.lane.b32.xlu0 %v1100, 24
  %v1169 = vpop.permute.xlu0 %1168
  %1170 = vrot.lane.b32.xlu0 %v1102, 24
  %v1171 = vpop.permute.xlu0 %1170
  %1172 = vrot.lane.b32.xlu0 %v1105, 24
  %v1173 = vpop.permute.xlu0 %1172
  %1174 = vrot.lane.b32.xlu0 %v1107, 24
  %v1175 = vpop.permute.xlu0 %1174
  %1176 = vrot.lane.b32.xlu0 %v1110, 24
  %v1177 = vpop.permute.xlu0 %1176
  %1178 = vrot.lane.b32.xlu0 %v1112, 24
  %v1179 = vpop.permute.xlu0 %1178
  %v1186 = vsel %vm465, %v605, %v1121
  %v1187 = vsel %vm465, %v607, %v1123
  %v1188 = vsel %vm465, %v610, %v1125
  %v1189 = vsel %vm465, %v612, %v1127
  %v1190 = vsel %vm465, %v615, %v1129
  %v1191 = vsel %vm465, %v617, %v1131
  %vm1192 = vcmask 130048
  %v1193 = vsel %vm1192, %v1186, %v1145
  %v1194 = vsel %vm1192, %v1187, %v1147
  %v1195 = vsel %vm1192, %v1188, %v1149
  %v1196 = vsel %vm1192, %v1189, %v1151
  %v1197 = vsel %vm1192, %v1190, %v1153
  %v1198 = vsel %vm1192, %v1191, %v1155
  %vm1199 = vcmask 195584
  %v1200 = vsel %vm1199, %v1193, %v1169
  %v1201 = vsel %vm1199, %v1194, %v1171
  %v1202 = vsel %vm1199, %v1195, %v1173
  %v1203 = vsel %vm1199, %v1196, %v1175
  %v1204 = vsel %vm1199, %v1197, %v1177
  %v1205 = vsel %vm1199, %v1198, %v1179
  %v1206 = vpack.c.bf16 %v1201, %v1200
  %v1207 = vpack.c.bf16 %v1203, %v1202
  %v1208 = vpack.c.bf16 %v1205, %v1204
  %v1209 = vld [vmem:[%s8] sm:$0xf]
  %v1210 = vld [vmem:[%s8 + $0x4] sm:$0xf]
  %v1211 = vld [vmem:[%s8 + $0x8] sm:$0xf]
  %v1212 = vld [vmem:[%s8 + $0xc] sm:$0xf]
  %v1213 = vperm.slane %v224, 2
  %v1218 = vunpack.c.l.b16 %v1209
  %v1219 = vunpack.c.l.b16 %v1210
  %v1220 = vunpack.c.l.b16 %v1211
  %v1221 = vunpack.c.l.b16 %v1212
  %v1222 = vpack.c.b16 %v1219, %v1218
  %v1223 = vpack.c.b16 %v1221, %v1220
  %v1227 = vsel %vm104, %v1206, 0
  %v1230 = vsel %vm104, %v1207, 0
  %v1233 = vsel %vm104, %v1208, 0
  %1235 = vmatpush.bf16.msra.mxu0 0
  %1236 = vmatpush.bf16.msra.mxu0 0
  %1237 = vmatpush.bf16.msra.mxu0 0
  %1238 = vmatpush.bf16.msra.mxu0 0
  %1239 = vmatpush.bf16.msra.mxu0 0
  %1240 = vmatpush.bf16.msra.mxu0 0
  %1241 = vmatpush.bf16.msra.mxu0 %v1223
  %1242 = vmatpush.bf16.msra.mxu0 %v1222
  %1243 = vmatmul.bf16.gmra.mxu0 %v1227
  %v1244 = vpop.f32.mrf.mxu0
  %v1245 = vadd.f32 %v1213, %v1244
  %v1246 = vpop.f32.mrf.mxu0
  %v1247 = vadd.f32 %v1213, %v1246
  %1248 = vmatmul.bf16.gmra.mxu0 %v1230
  %v1249 = vpop.f32.mrf.mxu0
  %v1250 = vadd.f32 %v1213, %v1249
  %v1251 = vpop.f32.mrf.mxu0
  %v1252 = vadd.f32 %v1213, %v1251
  %1253 = vmatmul.bf16.gmra.mxu0 %v1233
  %v1254 = vpop.f32.mrf.mxu0
  %v1255 = vadd.f32 %v1213, %v1254
  %v1256 = vpop.f32.mrf.mxu0
  %v1257 = vadd.f32 %v1213, %v1256
  %1258 = vdwg.mxu0
  %v1259 = vadd.f32 %v43, %v1245
  %v1260 = vadd.f32 %v214, %v1247
  %v1261 = vadd.f32 %v215, %v1250
  %v1262 = vadd.f32 %v43, %v1252
  %v1263 = vadd.f32 %v216, %v1255
  %v1264 = vadd.f32 %v217, %v1257
  %v1265 = vsel %vm104, %v1259, 0.0
  %1266 = vadd.xlane.f32.xlu0 %v1265
  %v1267 = vpop.xlane.xlu0 %1266
  %v1268 = vsel %vm104, %v1260, 0.0
  %1269 = vadd.xlane.f32.xlu0 %v1268
  %v1270 = vpop.xlane.xlu0 %1269
  %v1271 = vsel %vm104, %v1261, 0.0
  %1272 = vadd.xlane.f32.xlu0 %v1271
  %v1273 = vpop.xlane.xlu0 %1272
  %v1274 = vsel %vm104, %v1262, 0.0
  %1275 = vadd.xlane.f32.xlu0 %v1274
  %v1276 = vpop.xlane.xlu0 %1275
  %v1277 = vsel %vm104, %v1263, 0.0
  %1278 = vadd.xlane.f32.xlu0 %v1277
  %v1279 = vpop.xlane.xlu0 %1278
  %v1280 = vsel %vm104, %v1264, 0.0
  %1281 = vadd.xlane.f32.xlu0 %v1280
  %v1282 = vpop.xlane.xlu0 %1281
  %v1283 = vmul.f32 %v1267, %v123
  %v1284 = vmul.f32 %v1270, %v123
  %v1285 = vmul.f32 %v1273, %v123
  %v1286 = vmul.f32 %v1276, %v123
  %v1287 = vmul.f32 %v1279, %v123
  %v1288 = vmul.f32 %v1282, %v123
  %v1289 = vmul.f32 %v1259, %v1259
  %v1290 = vmul.f32 %v1260, %v1260
  %v1291 = vmul.f32 %v1261, %v1261
  %v1292 = vmul.f32 %v1262, %v1262
  %v1293 = vmul.f32 %v1263, %v1263
  %v1294 = vmul.f32 %v1264, %v1264
  %v1295 = vsel %vm104, %v1289, 0.0
  %1296 = vadd.xlane.f32.xlu0 %v1295
  %v1297 = vpop.xlane.xlu0 %1296
  %v1298 = vsel %vm104, %v1290, 0.0
  %1299 = vadd.xlane.f32.xlu0 %v1298
  %v1300 = vpop.xlane.xlu0 %1299
  %v1301 = vsel %vm104, %v1291, 0.0
  %1302 = vadd.xlane.f32.xlu0 %v1301
  %v1303 = vpop.xlane.xlu0 %1302
  %v1304 = vsel %vm104, %v1292, 0.0
  %1305 = vadd.xlane.f32.xlu0 %v1304
  %v1306 = vpop.xlane.xlu0 %1305
  %v1307 = vsel %vm104, %v1293, 0.0
  %1308 = vadd.xlane.f32.xlu0 %v1307
  %v1309 = vpop.xlane.xlu0 %1308
  %v1310 = vsel %vm104, %v1294, 0.0
  %1311 = vadd.xlane.f32.xlu0 %v1310
  %v1312 = vpop.xlane.xlu0 %1311
  %v1313 = vmul.f32 %v1297, %v123
  %v1314 = vmul.f32 %v1300, %v123
  %v1315 = vmul.f32 %v1303, %v123
  %v1316 = vmul.f32 %v1306, %v123
  %v1317 = vmul.f32 %v1309, %v123
  %v1318 = vmul.f32 %v1312, %v123
  %v1319 = vmul.f32 %v1283, %v1283
  %v1320 = vmul.f32 %v1284, %v1284
  %v1321 = vmul.f32 %v1285, %v1285
  %v1322 = vmul.f32 %v1286, %v1286
  %v1323 = vmul.f32 %v1287, %v1287
  %v1324 = vmul.f32 %v1288, %v1288
  %v1325 = vsub.f32 %v1313, %v1319
  %v1326 = vsub.f32 %v1314, %v1320
  %v1327 = vsub.f32 %v1315, %v1321
  %v1328 = vsub.f32 %v1316, %v1322
  %v1329 = vsub.f32 %v1317, %v1323
  %v1330 = vsub.f32 %v1318, %v1324
  %v1331 = vsub.f32 %v1259, %v1283
  %v1332 = vsub.f32 %v1260, %v1284
  %v1333 = vsub.f32 %v1261, %v1285
  %v1334 = vsub.f32 %v1262, %v1286
  %v1335 = vsub.f32 %v1263, %v1287
  %v1336 = vsub.f32 %v1264, %v1288
  %v1337 = vadd.f32 %v1325, 1e-05
  %v1338 = vadd.f32 %v1326, 1e-05
  %v1339 = vadd.f32 %v1327, 1e-05
  %v1340 = vadd.f32 %v1328, 1e-05
  %v1341 = vadd.f32 %v1329, 1e-05
  %v1342 = vadd.f32 %v1330, 1e-05
  %v1343 = vrsqrt.pop %v1337
  %v1344 = vmul.f32 %v1343, %v1337
  %v1345 = vmul.f32 %v1344, %v1343
  %v1346 = vmul.f32 0.5, %v1345
  %v1347 = vsub.f32 1.5, %v1346
  %v1348 = vmul.f32 %v1343, %v1347
  %vm1349 = vweird.f32 %v1337
  %vm1350 = vweird.f32 %v1343
  %vm1351 = vmor %vm1349, %vm1350
  %v1352 = vsel %vm1351, %v1343, %v1348
  %v1353 = vrsqrt.pop %v1338
  %v1354 = vmul.f32 %v1353, %v1338
  %v1355 = vmul.f32 %v1354, %v1353
  %v1356 = vmul.f32 0.5, %v1355
  %v1357 = vsub.f32 1.5, %v1356
  %v1358 = vmul.f32 %v1353, %v1357
  %vm1359 = vweird.f32 %v1338
  %vm1360 = vweird.f32 %v1353
  %vm1361 = vmor %vm1359, %vm1360
  %v1362 = vsel %vm1361, %v1353, %v1358
  %v1363 = vrsqrt.pop %v1339
  %v1364 = vmul.f32 %v1363, %v1339
  %v1365 = vmul.f32 %v1364, %v1363
  %v1366 = vmul.f32 0.5, %v1365
  %v1367 = vsub.f32 1.5, %v1366
  %v1368 = vmul.f32 %v1363, %v1367
  %vm1369 = vweird.f32 %v1339
  %vm1370 = vweird.f32 %v1363
  %vm1371 = vmor %vm1369, %vm1370
  %v1372 = vsel %vm1371, %v1363, %v1368
  %v1373 = vrsqrt.pop %v1340
  %v1374 = vmul.f32 %v1373, %v1340
  %v1375 = vmul.f32 %v1374, %v1373
  %v1376 = vmul.f32 0.5, %v1375
  %v1377 = vsub.f32 1.5, %v1376
  %v1378 = vmul.f32 %v1373, %v1377
  %vm1379 = vweird.f32 %v1340
  %vm1380 = vweird.f32 %v1373
  %vm1381 = vmor %vm1379, %vm1380
  %v1382 = vsel %vm1381, %v1373, %v1378
  %v1383 = vrsqrt.pop %v1341
  %v1384 = vmul.f32 %v1383, %v1341
  %v1385 = vmul.f32 %v1384, %v1383
  %v1386 = vmul.f32 0.5, %v1385
  %v1387 = vsub.f32 1.5, %v1386
  %v1388 = vmul.f32 %v1383, %v1387
  %vm1389 = vweird.f32 %v1341
  %vm1390 = vweird.f32 %v1383
  %vm1391 = vmor %vm1389, %vm1390
  %v1392 = vsel %vm1391, %v1383, %v1388
  %v1393 = vrsqrt.pop %v1342
  %v1394 = vmul.f32 %v1393, %v1342
  %v1395 = vmul.f32 %v1394, %v1393
  %v1396 = vmul.f32 0.5, %v1395
  %v1397 = vsub.f32 1.5, %v1396
  %v1398 = vmul.f32 %v1393, %v1397
  %vm1399 = vweird.f32 %v1342
  %vm1400 = vweird.f32 %v1393
  %vm1401 = vmor %vm1399, %vm1400
  %v1402 = vsel %vm1401, %v1393, %v1398
  %v1403 = vmul.f32 %v1331, %v1352
  %v1404 = vmul.f32 %v1332, %v1362
  %v1405 = vmul.f32 %v1333, %v1372
  %v1406 = vmul.f32 %v1334, %v1382
  %v1407 = vmul.f32 %v1335, %v1392
  %v1408 = vmul.f32 %v1336, %v1402
  %v1409 = vperm.slane %v224, 3
  %v1410 = vmul.f32 %v1403, %v1409
  %v1411 = vmul.f32 %v1404, %v1409
  %v1412 = vmul.f32 %v1405, %v1409
  %v1413 = vmul.f32 %v1406, %v1409
  %v1414 = vmul.f32 %v1407, %v1409
  %v1415 = vmul.f32 %v1408, %v1409
  %v1416 = vperm.slane %v224, 4
  %v1417 = vadd.f32 %v1410, %v1416
  %v1418 = vadd.f32 %v1411, %v1416
  %v1419 = vadd.f32 %v1412, %v1416
  %v1420 = vadd.f32 %v1413, %v1416
  %v1421 = vadd.f32 %v1414, %v1416
  %v1422 = vadd.f32 %v1415, %v1416
  %v1423 = vpack.c.bf16 %v1418, %v1417
  %v1424 = vpack.c.bf16 %v1420, %v1419
  %v1425 = vpack.c.bf16 %v1422, %v1421
  %v1426 = vld [vmem:[%s9] sm:$0xf]
  %v1427 = vld [vmem:[%s9 + $0x4] sm:$0xf]
  %v1428 = vld [vmem:[%s9 + $0x8] sm:$0xf]
  %v1429 = vld [vmem:[%s9 + $0xc] sm:$0xf]
  %v1430 = vperm.slane %v225, 1
  %v1435 = vunpack.c.l.b16 %v1426
  %v1436 = vunpack.c.l.b16 %v1427
  %v1437 = vunpack.c.l.b16 %v1428
  %v1438 = vunpack.c.l.b16 %v1429
  %v1439 = vpack.c.b16 %v1436, %v1435
  %v1440 = vpack.c.b16 %v1438, %v1437
  %v1444 = vsel %vm104, %v1423, 0
  %v1447 = vsel %vm104, %v1424, 0
  %v1450 = vsel %vm104, %v1425, 0
  %1452 = vmatpush.bf16.msra.mxu0 0
  %1453 = vmatpush.bf16.msra.mxu0 0
  %1454 = vmatpush.bf16.msra.mxu0 0
  %1455 = vmatpush.bf16.msra.mxu0 0
  %1456 = vmatpush.bf16.msra.mxu0 0
  %1457 = vmatpush.bf16.msra.mxu0 0
  %1458 = vmatpush.bf16.msra.mxu0 %v1440
  %1459 = vmatpush.bf16.msra.mxu0 %v1439
  %1460 = vmatmul.bf16.gmra.mxu0 %v1444
  %v1461 = vpop.f32.mrf.mxu0
  %v1462 = vadd.f32 %v1430, %v1461
  %v1463 = vpop.f32.mrf.mxu0
  %v1464 = vadd.f32 %v1430, %v1463
  %1465 = vmatmul.bf16.gmra.mxu0 %v1447
  %v1466 = vpop.f32.mrf.mxu0
  %v1467 = vadd.f32 %v1430, %v1466
  %v1468 = vpop.f32.mrf.mxu0
  %v1469 = vadd.f32 %v1430, %v1468
  %1470 = vmatmul.bf16.gmra.mxu0 %v1450
  %v1471 = vpop.f32.mrf.mxu0
  %v1472 = vadd.f32 %v1430, %v1471
  %v1473 = vpop.f32.mrf.mxu0
  %v1474 = vadd.f32 %v1430, %v1473
  %1475 = vdwg.mxu0
  %v1476 = vmul.f32 %v1462, 1.702
  %v1477 = vmul.f32 %v1464, 1.702
  %v1478 = vmul.f32 %v1467, 1.702
  %v1479 = vmul.f32 %v1469, 1.702
  %v1480 = vmul.f32 %v1472, 1.702
  %v1481 = vmul.f32 %v1474, 1.702
  %v1482 = vxor.u32 %v1476, 2147483648
  %v1483 = vxor.u32 %v1477, 2147483648
  %v1484 = vxor.u32 %v1478, 2147483648
  %v1485 = vxor.u32 %v1479, 2147483648
  %v1486 = vxor.u32 %v1480, 2147483648
  %v1487 = vxor.u32 %v1481, 2147483648
  %v1488 = vmul.f32 %v1482, 1.442695
  %v1489 = vpow.pop %v1488
  %v1490 = vmul.f32 %v1483, 1.442695
  %v1491 = vpow.pop %v1490
  %v1492 = vmul.f32 %v1484, 1.442695
  %v1493 = vpow.pop %v1492
  %v1494 = vmul.f32 %v1485, 1.442695
  %v1495 = vpow.pop %v1494
  %v1496 = vmul.f32 %v1486, 1.442695
  %v1497 = vpow.pop %v1496
  %v1498 = vmul.f32 %v1487, 1.442695
  %v1499 = vpow.pop %v1498
  %v1500 = vadd.f32 %v1489, 1.0
  %v1501 = vadd.f32 %v1491, 1.0
  %v1502 = vadd.f32 %v1493, 1.0
  %v1503 = vadd.f32 %v1495, 1.0
  %v1504 = vadd.f32 %v1497, 1.0
  %v1505 = vadd.f32 %v1499, 1.0
  %v1506 = vrcp.pop %v1500
  %v1507 = vmul.f32 %v1500, %v1506
  %v1508 = vsub.f32 1.0, %v1507
  %v1509 = vmul.f32 %v1506, %v1508
  %v1510 = vadd.f32 %v1506, %v1509
  %vm1511 = vweird.f32 %v1500
  %vm1512 = vweird.f32 %v1506
  %vm1513 = vmor %vm1511, %vm1512
  %v1514 = vsel %vm1513, %v1506, %v1510
  %v1515 = vand.u32 2147483647, %v1500
  %vm1516 = vcmp.eq.f32.partialorder %v1515, 8.507059e+37
  %v1517 = vand.u32 %v1500, 2147483648
  %v1518 = vor.u32 1.1754944e-38, %v1517
  %v1519 = vsel %vm1516, %v1518, %v1514
  %v1520 = vmul.f32 1.0, %v1519
  %v1521 = vrcp.pop %v1501
  %v1522 = vmul.f32 %v1501, %v1521
  %v1523 = vsub.f32 1.0, %v1522
  %v1524 = vmul.f32 %v1521, %v1523
  %v1525 = vadd.f32 %v1521, %v1524
  %vm1526 = vweird.f32 %v1501
  %vm1527 = vweird.f32 %v1521
  %vm1528 = vmor %vm1526, %vm1527
  %v1529 = vsel %vm1528, %v1521, %v1525
  %v1530 = vand.u32 2147483647, %v1501
  %vm1531 = vcmp.eq.f32.partialorder %v1530, 8.507059e+37
  %v1532 = vand.u32 %v1501, 2147483648
  %v1533 = vor.u32 1.1754944e-38, %v1532
  %v1534 = vsel %vm1531, %v1533, %v1529
  %v1535 = vmul.f32 1.0, %v1534
  %v1536 = vrcp.pop %v1502
  %v1537 = vmul.f32 %v1502, %v1536
  %v1538 = vsub.f32 1.0, %v1537
  %v1539 = vmul.f32 %v1536, %v1538
  %v1540 = vadd.f32 %v1536, %v1539
  %vm1541 = vweird.f32 %v1502
  %vm1542 = vweird.f32 %v1536
  %vm1543 = vmor %vm1541, %vm1542
  %v1544 = vsel %vm1543, %v1536, %v1540
  %v1545 = vand.u32 2147483647, %v1502
  %vm1546 = vcmp.eq.f32.partialorder %v1545, 8.507059e+37
  %v1547 = vand.u32 %v1502, 2147483648
  %v1548 = vor.u32 1.1754944e-38, %v1547
  %v1549 = vsel %vm1546, %v1548, %v1544
  %v1550 = vmul.f32 1.0, %v1549
  %v1551 = vrcp.pop %v1503
  %v1552 = vmul.f32 %v1503, %v1551
  %v1553 = vsub.f32 1.0, %v1552
  %v1554 = vmul.f32 %v1551, %v1553
  %v1555 = vadd.f32 %v1551, %v1554
  %vm1556 = vweird.f32 %v1503
  %vm1557 = vweird.f32 %v1551
  %vm1558 = vmor %vm1556, %vm1557
  %v1559 = vsel %vm1558, %v1551, %v1555
  %v1560 = vand.u32 2147483647, %v1503
  %vm1561 = vcmp.eq.f32.partialorder %v1560, 8.507059e+37
  %v1562 = vand.u32 %v1503, 2147483648
  %v1563 = vor.u32 1.1754944e-38, %v1562
  %v1564 = vsel %vm1561, %v1563, %v1559
  %v1565 = vmul.f32 1.0, %v1564
  %v1566 = vrcp.pop %v1504
  %v1567 = vmul.f32 %v1504, %v1566
  %v1568 = vsub.f32 1.0, %v1567
  %v1569 = vmul.f32 %v1566, %v1568
  %v1570 = vadd.f32 %v1566, %v1569
  %vm1571 = vweird.f32 %v1504
  %vm1572 = vweird.f32 %v1566
  %vm1573 = vmor %vm1571, %vm1572
  %v1574 = vsel %vm1573, %v1566, %v1570
  %v1575 = vand.u32 2147483647, %v1504
  %vm1576 = vcmp.eq.f32.partialorder %v1575, 8.507059e+37
  %v1577 = vand.u32 %v1504, 2147483648
  %v1578 = vor.u32 1.1754944e-38, %v1577
  %v1579 = vsel %vm1576, %v1578, %v1574
  %v1580 = vmul.f32 1.0, %v1579
  %v1581 = vrcp.pop %v1505
  %v1582 = vmul.f32 %v1505, %v1581
  %v1583 = vsub.f32 1.0, %v1582
  %v1584 = vmul.f32 %v1581, %v1583
  %v1585 = vadd.f32 %v1581, %v1584
  %vm1586 = vweird.f32 %v1505
  %vm1587 = vweird.f32 %v1581
  %vm1588 = vmor %vm1586, %vm1587
  %v1589 = vsel %vm1588, %v1581, %v1585
  %v1590 = vand.u32 2147483647, %v1505
  %vm1591 = vcmp.eq.f32.partialorder %v1590, 8.507059e+37
  %v1592 = vand.u32 %v1505, 2147483648
  %v1593 = vor.u32 1.1754944e-38, %v1592
  %v1594 = vsel %vm1591, %v1593, %v1589
  %v1595 = vmul.f32 1.0, %v1594
  %v1596 = vmul.f32 %v1462, %v1520
  %v1597 = vmul.f32 %v1464, %v1535
  %v1598 = vmul.f32 %v1467, %v1550
  %v1599 = vmul.f32 %v1469, %v1565
  %v1600 = vmul.f32 %v1472, %v1580
  %v1601 = vmul.f32 %v1474, %v1595
  %v1602 = vpack.c.bf16 %v1597, %v1596
  %v1603 = vpack.c.bf16 %v1599, %v1598
  %v1604 = vpack.c.bf16 %v1601, %v1600
  %v1605 = vld [vmem:[%s10] sm:$0xf]
  %v1606 = vld [vmem:[%s10 + $0x4] sm:$0xf]
  %v1607 = vld [vmem:[%s10 + $0x8] sm:$0xf]
  %v1608 = vld [vmem:[%s10 + $0xc] sm:$0xf]
  %v1609 = vld [vmem:[%s10 + $0x10] sm:$0xf]
  %v1610 = vld [vmem:[%s10 + $0x14] sm:$0xf]
  %v1611 = vld [vmem:[%s10 + $0x18] sm:$0xf]
  %v1612 = vld [vmem:[%s10 + $0x1c] sm:$0xf]
  %v1613 = vld [vmem:[%s10 + $0x20] sm:$0xf]
  %v1614 = vld [vmem:[%s10 + $0x24] sm:$0xf]
  %v1615 = vld [vmem:[%s10 + $0x28] sm:$0xf]
  %v1616 = vld [vmem:[%s10 + $0x2c] sm:$0xf]
  %v1617 = vld [vmem:[%s10 + $0x30] sm:$0xf]
  %v1618 = vld [vmem:[%s10 + $0x34] sm:$0xf]
  %v1619 = vld [vmem:[%s10 + $0x38] sm:$0xf]
  %v1620 = vld [vmem:[%s10 + $0x3c] sm:$0xf]
  %v1637 = vunpack.c.l.b16 %v1605
  %v1638 = vunpack.c.l.b16 %v1606
  %v1639 = vunpack.c.l.b16 %v1607
  %v1640 = vunpack.c.l.b16 %v1608
  %v1641 = vunpack.c.l.b16 %v1609
  %v1642 = vunpack.c.l.b16 %v1610
  %v1643 = vunpack.c.l.b16 %v1611
  %v1644 = vunpack.c.l.b16 %v1612
  %v1645 = vunpack.c.l.b16 %v1613
  %v1646 = vunpack.c.l.b16 %v1614
  %v1647 = vunpack.c.l.b16 %v1615
  %v1648 = vunpack.c.l.b16 %v1616
  %v1649 = vunpack.c.l.b16 %v1617
  %v1650 = vunpack.c.l.b16 %v1618
  %v1651 = vunpack.c.l.b16 %v1619
  %v1652 = vunpack.c.l.b16 %v1620
  %v1653 = vpack.c.b16 %v1638, %v1637
  %v1654 = vpack.c.b16 %v1640, %v1639
  %v1655 = vpack.c.b16 %v1642, %v1641
  %v1656 = vpack.c.b16 %v1644, %v1643
  %v1657 = vpack.c.b16 %v1646, %v1645
  %v1658 = vpack.c.b16 %v1648, %v1647
  %v1659 = vpack.c.b16 %v1650, %v1649
  %v1660 = vpack.c.b16 %v1652, %v1651
  %1669 = vmatpush.bf16.msra.mxu0 %v1660
  %1670 = vmatpush.bf16.msra.mxu0 %v1659
  %1671 = vmatpush.bf16.msra.mxu0 %v1658
  %1672 = vmatpush.bf16.msra.mxu0 %v1657
  %1673 = vmatpush.bf16.msra.mxu0 %v1656
  %1674 = vmatpush.bf16.msra.mxu0 %v1655
  %1675 = vmatpush.bf16.msra.mxu0 %v1654
  %1676 = vmatpush.bf16.msra.mxu0 %v1653
  %1677 = vmatmul.bf16.gmra.mxu0 %v1602
  %v1678 = vpop.f32.mrf.mxu0
  %v1679 = vadd.f32 0.0, %v1678
  %v1680 = vpop.f32.mrf.mxu0
  %v1681 = vadd.f32 0.0, %v1680
  %1682 = vmatmul.bf16.gmra.mxu0 %v1603
  %v1683 = vpop.f32.mrf.mxu0
  %v1684 = vadd.f32 0.0, %v1683
  %v1685 = vpop.f32.mrf.mxu0
  %v1686 = vadd.f32 0.0, %v1685
  %1687 = vmatmul.bf16.gmra.mxu0 %v1604
  %v1688 = vpop.f32.mrf.mxu0
  %v1689 = vadd.f32 0.0, %v1688
  %v1690 = vpop.f32.mrf.mxu0
  %v1691 = vadd.f32 0.0, %v1690
  %1692 = vdwg.mxu0
  %v1693 = vadd.f32 %v1259, %v1679
  %v1694 = vadd.f32 %v1260, %v1681
  %v1695 = vadd.f32 %v1261, %v1684
  %v1696 = vadd.f32 %v1262, %v1686
  %v1697 = vadd.f32 %v1263, %v1689
  %v1698 = vadd.f32 %v1264, %v1691
  %v1699 = vperm.slane %v224, 5
  %v1700 = vadd.f32 %v1693, %v1699
  %v1701 = vadd.f32 %v1694, %v1699
  %v1702 = vadd.f32 %v1695, %v1699
  %v1703 = vadd.f32 %v1696, %v1699
  %v1704 = vadd.f32 %v1697, %v1699
  %v1705 = vadd.f32 %v1698, %v1699
  %s1706 = scalar_lea.vmem %s5, 8
  %v1707 = vld [vmem:[%s1706] sm:$0x3f]
  %s1708 = scalar_lea.vmem %s6, 2
  %v1709 = vld [vmem:[%s1708] sm:$0x3]
  %v1710 = vsel %vm104, %v1700, 0.0
  %1711 = vadd.xlane.f32.xlu0 %v1710
  %v1712 = vpop.xlane.xlu0 %1711
  %v1713 = vsel %vm104, %v1701, 0.0
  %1714 = vadd.xlane.f32.xlu0 %v1713
  %v1715 = vpop.xlane.xlu0 %1714
  %v1716 = vsel %vm104, %v1702, 0.0
  %1717 = vadd.xlane.f32.xlu0 %v1716
  %v1718 = vpop.xlane.xlu0 %1717
  %v1719 = vsel %vm104, %v1703, 0.0
  %1720 = vadd.xlane.f32.xlu0 %v1719
  %v1721 = vpop.xlane.xlu0 %1720
  %v1722 = vsel %vm104, %v1704, 0.0
  %1723 = vadd.xlane.f32.xlu0 %v1722
  %v1724 = vpop.xlane.xlu0 %1723
  %v1725 = vsel %vm104, %v1705, 0.0
  %1726 = vadd.xlane.f32.xlu0 %v1725
  %v1727 = vpop.xlane.xlu0 %1726
  %v1728 = vmul.f32 %v1712, %v123
  %v1729 = vmul.f32 %v1715, %v123
  %v1730 = vmul.f32 %v1718, %v123
  %v1731 = vmul.f32 %v1721, %v123
  %v1732 = vmul.f32 %v1724, %v123
  %v1733 = vmul.f32 %v1727, %v123
  %v1734 = vmul.f32 %v1700, %v1700
  %v1735 = vmul.f32 %v1701, %v1701
  %v1736 = vmul.f32 %v1702, %v1702
  %v1737 = vmul.f32 %v1703, %v1703
  %v1738 = vmul.f32 %v1704, %v1704
  %v1739 = vmul.f32 %v1705, %v1705
  %v1740 = vsel %vm104, %v1734, 0.0
  %1741 = vadd.xlane.f32.xlu0 %v1740
  %v1742 = vpop.xlane.xlu0 %1741
  %v1743 = vsel %vm104, %v1735, 0.0
  %1744 = vadd.xlane.f32.xlu0 %v1743
  %v1745 = vpop.xlane.xlu0 %1744
  %v1746 = vsel %vm104, %v1736, 0.0
  %1747 = vadd.xlane.f32.xlu0 %v1746
  %v1748 = vpop.xlane.xlu0 %1747
  %v1749 = vsel %vm104, %v1737, 0.0
  %1750 = vadd.xlane.f32.xlu0 %v1749
  %v1751 = vpop.xlane.xlu0 %1750
  %v1752 = vsel %vm104, %v1738, 0.0
  %1753 = vadd.xlane.f32.xlu0 %v1752
  %v1754 = vpop.xlane.xlu0 %1753
  %v1755 = vsel %vm104, %v1739, 0.0
  %1756 = vadd.xlane.f32.xlu0 %v1755
  %v1757 = vpop.xlane.xlu0 %1756
  %v1758 = vmul.f32 %v1742, %v123
  %v1759 = vmul.f32 %v1745, %v123
  %v1760 = vmul.f32 %v1748, %v123
  %v1761 = vmul.f32 %v1751, %v123
  %v1762 = vmul.f32 %v1754, %v123
  %v1763 = vmul.f32 %v1757, %v123
  %v1764 = vmul.f32 %v1728, %v1728
  %v1765 = vmul.f32 %v1729, %v1729
  %v1766 = vmul.f32 %v1730, %v1730
  %v1767 = vmul.f32 %v1731, %v1731
  %v1768 = vmul.f32 %v1732, %v1732
  %v1769 = vmul.f32 %v1733, %v1733
  %v1770 = vsub.f32 %v1758, %v1764
  %v1771 = vsub.f32 %v1759, %v1765
  %v1772 = vsub.f32 %v1760, %v1766
  %v1773 = vsub.f32 %v1761, %v1767
  %v1774 = vsub.f32 %v1762, %v1768
  %v1775 = vsub.f32 %v1763, %v1769
  %v1776 = vsub.f32 %v1700, %v1728
  %v1777 = vsub.f32 %v1701, %v1729
  %v1778 = vsub.f32 %v1702, %v1730
  %v1779 = vsub.f32 %v1703, %v1731
  %v1780 = vsub.f32 %v1704, %v1732
  %v1781 = vsub.f32 %v1705, %v1733
  %v1782 = vadd.f32 %v1770, 1e-05
  %v1783 = vadd.f32 %v1771, 1e-05
  %v1784 = vadd.f32 %v1772, 1e-05
  %v1785 = vadd.f32 %v1773, 1e-05
  %v1786 = vadd.f32 %v1774, 1e-05
  %v1787 = vadd.f32 %v1775, 1e-05
  %v1788 = vrsqrt.pop %v1782
  %v1789 = vmul.f32 %v1788, %v1782
  %v1790 = vmul.f32 %v1789, %v1788
  %v1791 = vmul.f32 0.5, %v1790
  %v1792 = vsub.f32 1.5, %v1791
  %v1793 = vmul.f32 %v1788, %v1792
  %vm1794 = vweird.f32 %v1782
  %vm1795 = vweird.f32 %v1788
  %vm1796 = vmor %vm1794, %vm1795
  %v1797 = vsel %vm1796, %v1788, %v1793
  %v1798 = vrsqrt.pop %v1783
  %v1799 = vmul.f32 %v1798, %v1783
  %v1800 = vmul.f32 %v1799, %v1798
  %v1801 = vmul.f32 0.5, %v1800
  %v1802 = vsub.f32 1.5, %v1801
  %v1803 = vmul.f32 %v1798, %v1802
  %vm1804 = vweird.f32 %v1783
  %vm1805 = vweird.f32 %v1798
  %vm1806 = vmor %vm1804, %vm1805
  %v1807 = vsel %vm1806, %v1798, %v1803
  %v1808 = vrsqrt.pop %v1784
  %v1809 = vmul.f32 %v1808, %v1784
  %v1810 = vmul.f32 %v1809, %v1808
  %v1811 = vmul.f32 0.5, %v1810
  %v1812 = vsub.f32 1.5, %v1811
  %v1813 = vmul.f32 %v1808, %v1812
  %vm1814 = vweird.f32 %v1784
  %vm1815 = vweird.f32 %v1808
  %vm1816 = vmor %vm1814, %vm1815
  %v1817 = vsel %vm1816, %v1808, %v1813
  %v1818 = vrsqrt.pop %v1785
  %v1819 = vmul.f32 %v1818, %v1785
  %v1820 = vmul.f32 %v1819, %v1818
  %v1821 = vmul.f32 0.5, %v1820
  %v1822 = vsub.f32 1.5, %v1821
  %v1823 = vmul.f32 %v1818, %v1822
  %vm1824 = vweird.f32 %v1785
  %vm1825 = vweird.f32 %v1818
  %vm1826 = vmor %vm1824, %vm1825
  %v1827 = vsel %vm1826, %v1818, %v1823
  %v1828 = vrsqrt.pop %v1786
  %v1829 = vmul.f32 %v1828, %v1786
  %v1830 = vmul.f32 %v1829, %v1828
  %v1831 = vmul.f32 0.5, %v1830
  %v1832 = vsub.f32 1.5, %v1831
  %v1833 = vmul.f32 %v1828, %v1832
  %vm1834 = vweird.f32 %v1786
  %vm1835 = vweird.f32 %v1828
  %vm1836 = vmor %vm1834, %vm1835
  %v1837 = vsel %vm1836, %v1828, %v1833
  %v1838 = vrsqrt.pop %v1787
  %v1839 = vmul.f32 %v1838, %v1787
  %v1840 = vmul.f32 %v1839, %v1838
  %v1841 = vmul.f32 0.5, %v1840
  %v1842 = vsub.f32 1.5, %v1841
  %v1843 = vmul.f32 %v1838, %v1842
  %vm1844 = vweird.f32 %v1787
  %vm1845 = vweird.f32 %v1838
  %vm1846 = vmor %vm1844, %vm1845
  %v1847 = vsel %vm1846, %v1838, %v1843
  %v1848 = vmul.f32 %v1776, %v1797
  %v1849 = vmul.f32 %v1777, %v1807
  %v1850 = vmul.f32 %v1778, %v1817
  %v1851 = vmul.f32 %v1779, %v1827
  %v1852 = vmul.f32 %v1780, %v1837
  %v1853 = vmul.f32 %v1781, %v1847
  %v1854 = vperm.slane %v1707, 0
  %v1855 = vmul.f32 %v1848, %v1854
  %v1856 = vmul.f32 %v1849, %v1854
  %v1857 = vmul.f32 %v1850, %v1854
  %v1858 = vmul.f32 %v1851, %v1854
  %v1859 = vmul.f32 %v1852, %v1854
  %v1860 = vmul.f32 %v1853, %v1854
  %v1861 = vperm.slane %v1707, 1
  %v1862 = vadd.f32 %v1855, %v1861
  %v1863 = vadd.f32 %v1856, %v1861
  %v1864 = vadd.f32 %v1857, %v1861
  %v1865 = vadd.f32 %v1858, %v1861
  %v1866 = vadd.f32 %v1859, %v1861
  %v1867 = vadd.f32 %v1860, %v1861
  %v1868 = vpack.c.bf16 %v1863, %v1862
  %v1869 = vpack.c.bf16 %v1865, %v1864
  %v1870 = vpack.c.bf16 %v1867, %v1866
  %s1871 = scalar_lea.vmem %s7, 16
  %v1872 = vld [vmem:[%s1871] sm:$0xf]
  %v1873 = vld [vmem:[%s1871 + $0x4] sm:$0xf]
  %v1874 = vld [vmem:[%s1871 + $0x8] sm:$0xf]
  %v1875 = vld [vmem:[%s1871 + $0xc] sm:$0xf]
  %v1876 = vperm.slane %v1709, 0
  %v1881 = vunpack.c.l.b16 %v1872
  %v1882 = vunpack.c.l.b16 %v1873
  %v1883 = vunpack.c.l.b16 %v1874
  %v1884 = vunpack.c.l.b16 %v1875
  %v1885 = vpack.c.b16 %v1882, %v1881
  %v1886 = vpack.c.b16 %v1884, %v1883
  %v1890 = vsel %vm104, %v1868, 0
  %v1893 = vsel %vm104, %v1869, 0
  %v1896 = vsel %vm104, %v1870, 0
  %1898 = vmatpush.bf16.msra.mxu0 0
  %1899 = vmatpush.bf16.msra.mxu0 0
  %1900 = vmatpush.bf16.msra.mxu0 0
  %1901 = vmatpush.bf16.msra.mxu0 0
  %1902 = vmatpush.bf16.msra.mxu0 0
  %1903 = vmatpush.bf16.msra.mxu0 0
  %1904 = vmatpush.bf16.msra.mxu0 %v1886
  %1905 = vmatpush.bf16.msra.mxu0 %v1885
  %1906 = vmatmul.bf16.gmra.mxu0 %v1890
  %v1907 = vpop.f32.mrf.mxu0
  %v1908 = vadd.f32 %v1876, %v1907
  %v1909 = vpop.f32.mrf.mxu0
  %v1910 = vadd.f32 %v1876, %v1909
  %1911 = vmatmul.bf16.gmra.mxu0 %v1893
  %v1912 = vpop.f32.mrf.mxu0
  %v1913 = vadd.f32 %v1876, %v1912
  %v1914 = vpop.f32.mrf.mxu0
  %v1915 = vadd.f32 %v1876, %v1914
  %1916 = vmatmul.bf16.gmra.mxu0 %v1896
  %v1917 = vpop.f32.mrf.mxu0
  %v1918 = vadd.f32 %v1876, %v1917
  %v1919 = vpop.f32.mrf.mxu0
  %v1920 = vadd.f32 %v1876, %v1919
  %1921 = vdwg.mxu0
  %v1922 = vmul.f32 %v1908, 0.35355338
  %v1923 = vmul.f32 %v1910, 0.35355338
  %v1924 = vmul.f32 %v1913, 0.35355338
  %v1925 = vmul.f32 %v1915, 0.35355338
  %v1926 = vmul.f32 %v1918, 0.35355338
  %v1927 = vmul.f32 %v1920, 0.35355338
  %v1928 = vpack.c.bf16 %v1922, %v1922
  %v1929 = vpack.c.bf16 %v1923, %v1923
  %v1930 = vpack.c.bf16 %v1924, %v1924
  %v1931 = vpack.c.bf16 %v1925, %v1925
  %v1932 = vpack.c.bf16 %v1926, %v1926
  %v1933 = vpack.c.bf16 %v1927, %v1927
  %v1934 = vpack.c.bf16 %v1908, %v1908
  %v1935 = vpack.c.bf16 %v1910, %v1910
  %v1936 = vpack.c.bf16 %v1913, %v1913
  %v1937 = vpack.c.bf16 %v1915, %v1915
  %v1938 = vpack.c.bf16 %v1918, %v1918
  %v1939 = vpack.c.bf16 %v1920, %v1920
  %v1946 = vunpack.c.l.b16 %v1928
  %v1947 = vunpack.c.l.b16 %v1929
  %v1948 = vunpack.c.l.b16 %v1930
  %v1949 = vunpack.c.l.b16 %v1931
  %v1950 = vunpack.c.l.b16 %v1932
  %v1951 = vunpack.c.l.b16 %v1933
  %v1952 = vpack.c.b16 %v1947, %v1946
  %v1953 = vpack.c.b16 %v1949, %v1948
  %v1954 = vpack.c.b16 %v1951, %v1950
  %v1961 = vunpack.c.l.b16 %v1934
  %v1962 = vunpack.c.l.b16 %v1935
  %v1963 = vunpack.c.l.b16 %v1936
  %v1964 = vunpack.c.l.b16 %v1937
  %v1965 = vunpack.c.l.b16 %v1938
  %v1966 = vunpack.c.l.b16 %v1939
  %v1967 = vpack.c.b16 %v1962, %v1961
  %v1968 = vpack.c.b16 %v1964, %v1963
  %v1969 = vpack.c.b16 %v1966, %v1965
  %1970 = vrot.lane.b32.xlu0 %v1967, 96
  %v1971 = vpop.permute.xlu0 %1970
  %1972 = vrot.lane.b32.xlu0 %v1968, 96
  %v1973 = vpop.permute.xlu0 %1972
  %1974 = vrot.lane.b32.xlu0 %v1969, 96
  %v1975 = vpop.permute.xlu0 %1974
  %v1977 = vsel %vm465, %v1952, 0
  %v1980 = vsel %vm465, %v1953, 0
  %v1983 = vsel %vm465, %v1954, 0
  %v1986 = vsel %vm465, %v1971, 0
  %v1989 = vsel %vm465, %v1973, 0
  %v1992 = vsel %vm465, %v1975, 0
  %1994 = vmatpush.bf16.xpose.msra.mxu0 0
  %1995 = vmatpush.bf16.xpose.msra.mxu0 0
  %1996 = vmatpush.bf16.xpose.msra.mxu0 0
  %1997 = vmatpush.bf16.xpose.msra.mxu0 0
  %1998 = vmatpush.bf16.xpose.msra.mxu0 0
  %1999 = vmatpush.bf16.xpose.msra.mxu0 %v1992
  %2000 = vmatpush.bf16.xpose.msra.mxu0 %v1989
  %2001 = vmatpush.bf16.xpose.msra.mxu0 %v1986
  %2002 = vmatmul.bf16.gmra.mxu0 %v1977
  %v2003 = vpop.f32.mrf.mxu0
  %v2004 = vadd.f32 %v218, %v2003
  %v2005 = vpop.f32.mrf.mxu0
  %v2006 = vadd.f32 %v219, %v2005
  %2007 = vmatmul.bf16.gmra.mxu0 %v1980
  %v2008 = vpop.f32.mrf.mxu0
  %v2009 = vadd.f32 %v220, %v2008
  %v2010 = vpop.f32.mrf.mxu0
  %v2011 = vadd.f32 %v221, %v2010
  %2012 = vmatmul.bf16.gmra.mxu0 %v1983
  %v2013 = vpop.f32.mrf.mxu0
  %v2014 = vadd.f32 %v222, %v2013
  %v2015 = vpop.f32.mrf.mxu0
  %v2016 = vadd.f32 %v223, %v2015
  %2017 = vdwg.mxu0
  %v2018 = vsel %vm78, %v2004, -inf
  %2019 = vmax.xlane.f32.xlu0 %v2018
  %v2020 = vpop.xlane.xlu0 %2019
  %v2021 = vsel %vm78, %v2006, -inf
  %2022 = vmax.xlane.f32.xlu0 %v2021
  %v2023 = vpop.xlane.xlu0 %2022
  %v2024 = vsel %vm78, %v2009, -inf
  %2025 = vmax.xlane.f32.xlu0 %v2024
  %v2026 = vpop.xlane.xlu0 %2025
  %v2027 = vsel %vm78, %v2011, -inf
  %2028 = vmax.xlane.f32.xlu0 %v2027
  %v2029 = vpop.xlane.xlu0 %2028
  %v2030 = vsel %vm78, %v2014, -inf
  %2031 = vmax.xlane.f32.xlu0 %v2030
  %v2032 = vpop.xlane.xlu0 %2031
  %v2033 = vsel %vm78, %v2016, -inf
  %2034 = vmax.xlane.f32.xlu0 %v2033
  %v2035 = vpop.xlane.xlu0 %2034
  %v2036 = vsub.f32 %v2004, %v2020
  %v2037 = vsub.f32 %v2006, %v2023
  %v2038 = vsub.f32 %v2009, %v2026
  %v2039 = vsub.f32 %v2011, %v2029
  %v2040 = vsub.f32 %v2014, %v2032
  %v2041 = vsub.f32 %v2016, %v2035
  %v2042 = vmul.f32 %v2036, 1.442695
  %v2043 = vpow.pop %v2042
  %v2044 = vmul.f32 %v2037, 1.442695
  %v2045 = vpow.pop %v2044
  %v2046 = vmul.f32 %v2038, 1.442695
  %v2047 = vpow.pop %v2046
  %v2048 = vmul.f32 %v2039, 1.442695
  %v2049 = vpow.pop %v2048
  %v2050 = vmul.f32 %v2040, 1.442695
  %v2051 = vpow.pop %v2050
  %v2052 = vmul.f32 %v2041, 1.442695
  %v2053 = vpow.pop %v2052
  %v2054 = vsel %vm78, %v2043, 0.0
  %2055 = vadd.xlane.f32.xlu0 %v2054
  %v2056 = vpop.xlane.xlu0 %2055
  %v2057 = vsel %vm78, %v2045, 0.0
  %2058 = vadd.xlane.f32.xlu0 %v2057
  %v2059 = vpop.xlane.xlu0 %2058
  %v2060 = vsel %vm78, %v2047, 0.0
  %2061 = vadd.xlane.f32.xlu0 %v2060
  %v2062 = vpop.xlane.xlu0 %2061
  %v2063 = vsel %vm78, %v2049, 0.0
  %2064 = vadd.xlane.f32.xlu0 %v2063
  %v2065 = vpop.xlane.xlu0 %2064
  %v2066 = vsel %vm78, %v2051, 0.0
  %2067 = vadd.xlane.f32.xlu0 %v2066
  %v2068 = vpop.xlane.xlu0 %2067
  %v2069 = vsel %vm78, %v2053, 0.0
  %2070 = vadd.xlane.f32.xlu0 %v2069
  %v2071 = vpop.xlane.xlu0 %2070
  %v2072 = vrcp.pop %v2056
  %v2073 = vrcp.pop %v2059
  %v2074 = vrcp.pop %v2062
  %v2075 = vrcp.pop %v2065
  %v2076 = vrcp.pop %v2068
  %v2077 = vrcp.pop %v2071
  %v2078 = vmul.f32 %v2043, %v2072
  %v2079 = vmul.f32 %v2045, %v2073
  %v2080 = vmul.f32 %v2047, %v2074
  %v2081 = vmul.f32 %v2049, %v2075
  %v2082 = vmul.f32 %v2051, %v2076
  %v2083 = vmul.f32 %v2053, %v2077
  %v2084 = vpack.c.bf16 %v2079, %v2078
  %v2085 = vpack.c.bf16 %v2081, %v2080
  %v2086 = vpack.c.bf16 %v2083, %v2082
  %2087 = vrot.lane.b32.xlu0 %v1967, 64
  %v2088 = vpop.permute.xlu0 %2087
  %2089 = vrot.lane.b32.xlu0 %v1968, 64
  %v2090 = vpop.permute.xlu0 %2089
  %2091 = vrot.lane.b32.xlu0 %v1969, 64
  %v2092 = vpop.permute.xlu0 %2091
  %v2097 = vsel %vm78, %v2084, 0
  %v2100 = vsel %vm78, %v2085, 0
  %v2103 = vsel %vm78, %v2086, 0
  %2105 = vmatpush.bf16.msra.mxu0 0
  %2106 = vmatpush.bf16.msra.mxu0 0
  %2107 = vmatpush.bf16.msra.mxu0 0
  %2108 = vmatpush.bf16.msra.mxu0 0
  %2109 = vmatpush.bf16.msra.mxu0 0
  %2110 = vmatpush.bf16.msra.mxu0 %v2092
  %2111 = vmatpush.bf16.msra.mxu0 %v2090
  %2112 = vmatpush.bf16.msra.mxu0 %v2088
  %2113 = vmatmul.bf16.gmra.mxu0 %v2097
  %v2114 = vpop.f32.mrf.mxu0
  %v2115 = vadd.f32 0.0, %v2114
  %v2116 = vpop.f32.mrf.mxu0
  %v2117 = vadd.f32 0.0, %v2116
  %2118 = vmatmul.bf16.gmra.mxu0 %v2100
  %v2119 = vpop.f32.mrf.mxu0
  %v2120 = vadd.f32 0.0, %v2119
  %v2121 = vpop.f32.mrf.mxu0
  %v2122 = vadd.f32 0.0, %v2121
  %2123 = vmatmul.bf16.gmra.mxu0 %v2103
  %v2124 = vpop.f32.mrf.mxu0
  %v2125 = vadd.f32 0.0, %v2124
  %v2126 = vpop.f32.mrf.mxu0
  %v2127 = vadd.f32 0.0, %v2126
  %2128 = vdwg.mxu0
  %2129 = vrot.lane.b32.xlu0 %v1952, 120
  %v2130 = vpop.permute.xlu0 %2129
  %2131 = vrot.lane.b32.xlu0 %v1953, 120
  %v2132 = vpop.permute.xlu0 %2131
  %2133 = vrot.lane.b32.xlu0 %v1954, 120
  %v2134 = vpop.permute.xlu0 %2133
  %2135 = vrot.lane.b32.xlu0 %v1967, 88
  %v2136 = vpop.permute.xlu0 %2135
  %2137 = vrot.lane.b32.xlu0 %v1968, 88
  %v2138 = vpop.permute.xlu0 %2137
  %2139 = vrot.lane.b32.xlu0 %v1969, 88
  %v2140 = vpop.permute.xlu0 %2139
  %v2142 = vsel %vm465, %v2130, 0
  %v2145 = vsel %vm465, %v2132, 0
  %v2148 = vsel %vm465, %v2134, 0
  %v2151 = vsel %vm465, %v2136, 0
  %v2154 = vsel %vm465, %v2138, 0
  %v2157 = vsel %vm465, %v2140, 0
  %2159 = vmatpush.bf16.xpose.msra.mxu0 0
  %2160 = vmatpush.bf16.xpose.msra.mxu0 0
  %2161 = vmatpush.bf16.xpose.msra.mxu0 0
  %2162 = vmatpush.bf16.xpose.msra.mxu0 0
  %2163 = vmatpush.bf16.xpose.msra.mxu0 0
  %2164 = vmatpush.bf16.xpose.msra.mxu0 %v2157
  %2165 = vmatpush.bf16.xpose.msra.mxu0 %v2154
  %2166 = vmatpush.bf16.xpose.msra.mxu0 %v2151
  %2167 = vmatmul.bf16.gmra.mxu0 %v2142
  %v2168 = vpop.f32.mrf.mxu0
  %v2169 = vadd.f32 %v218, %v2168
  %v2170 = vpop.f32.mrf.mxu0
  %v2171 = vadd.f32 %v219, %v2170
  %2172 = vmatmul.bf16.gmra.mxu0 %v2145
  %v2173 = vpop.f32.mrf.mxu0
  %v2174 = vadd.f32 %v220, %v2173
  %v2175 = vpop.f32.mrf.mxu0
  %v2176 = vadd.f32 %v221, %v2175
  %2177 = vmatmul.bf16.gmra.mxu0 %v2148
  %v2178 = vpop.f32.mrf.mxu0
  %v2179 = vadd.f32 %v222, %v2178
  %v2180 = vpop.f32.mrf.mxu0
  %v2181 = vadd.f32 %v223, %v2180
  %2182 = vdwg.mxu0
  %v2183 = vsel %vm78, %v2169, -inf
  %2184 = vmax.xlane.f32.xlu0 %v2183
  %v2185 = vpop.xlane.xlu0 %2184
  %v2186 = vsel %vm78, %v2171, -inf
  %2187 = vmax.xlane.f32.xlu0 %v2186
  %v2188 = vpop.xlane.xlu0 %2187
  %v2189 = vsel %vm78, %v2174, -inf
  %2190 = vmax.xlane.f32.xlu0 %v2189
  %v2191 = vpop.xlane.xlu0 %2190
  %v2192 = vsel %vm78, %v2176, -inf
  %2193 = vmax.xlane.f32.xlu0 %v2192
  %v2194 = vpop.xlane.xlu0 %2193
  %v2195 = vsel %vm78, %v2179, -inf
  %2196 = vmax.xlane.f32.xlu0 %v2195
  %v2197 = vpop.xlane.xlu0 %2196
  %v2198 = vsel %vm78, %v2181, -inf
  %2199 = vmax.xlane.f32.xlu0 %v2198
  %v2200 = vpop.xlane.xlu0 %2199
  %v2201 = vsub.f32 %v2169, %v2185
  %v2202 = vsub.f32 %v2171, %v2188
  %v2203 = vsub.f32 %v2174, %v2191
  %v2204 = vsub.f32 %v2176, %v2194
  %v2205 = vsub.f32 %v2179, %v2197
  %v2206 = vsub.f32 %v2181, %v2200
  %v2207 = vmul.f32 %v2201, 1.442695
  %v2208 = vpow.pop %v2207
  %v2209 = vmul.f32 %v2202, 1.442695
  %v2210 = vpow.pop %v2209
  %v2211 = vmul.f32 %v2203, 1.442695
  %v2212 = vpow.pop %v2211
  %v2213 = vmul.f32 %v2204, 1.442695
  %v2214 = vpow.pop %v2213
  %v2215 = vmul.f32 %v2205, 1.442695
  %v2216 = vpow.pop %v2215
  %v2217 = vmul.f32 %v2206, 1.442695
  %v2218 = vpow.pop %v2217
  %v2219 = vsel %vm78, %v2208, 0.0
  %2220 = vadd.xlane.f32.xlu0 %v2219
  %v2221 = vpop.xlane.xlu0 %2220
  %v2222 = vsel %vm78, %v2210, 0.0
  %2223 = vadd.xlane.f32.xlu0 %v2222
  %v2224 = vpop.xlane.xlu0 %2223
  %v2225 = vsel %vm78, %v2212, 0.0
  %2226 = vadd.xlane.f32.xlu0 %v2225
  %v2227 = vpop.xlane.xlu0 %2226
  %v2228 = vsel %vm78, %v2214, 0.0
  %2229 = vadd.xlane.f32.xlu0 %v2228
  %v2230 = vpop.xlane.xlu0 %2229
  %v2231 = vsel %vm78, %v2216, 0.0
  %2232 = vadd.xlane.f32.xlu0 %v2231
  %v2233 = vpop.xlane.xlu0 %2232
  %v2234 = vsel %vm78, %v2218, 0.0
  %2235 = vadd.xlane.f32.xlu0 %v2234
  %v2236 = vpop.xlane.xlu0 %2235
  %v2237 = vrcp.pop %v2221
  %v2238 = vrcp.pop %v2224
  %v2239 = vrcp.pop %v2227
  %v2240 = vrcp.pop %v2230
  %v2241 = vrcp.pop %v2233
  %v2242 = vrcp.pop %v2236
  %v2243 = vmul.f32 %v2208, %v2237
  %v2244 = vmul.f32 %v2210, %v2238
  %v2245 = vmul.f32 %v2212, %v2239
  %v2246 = vmul.f32 %v2214, %v2240
  %v2247 = vmul.f32 %v2216, %v2241
  %v2248 = vmul.f32 %v2218, %v2242
  %v2249 = vpack.c.bf16 %v2244, %v2243
  %v2250 = vpack.c.bf16 %v2246, %v2245
  %v2251 = vpack.c.bf16 %v2248, %v2247
  %2252 = vrot.lane.b32.xlu0 %v1967, 56
  %v2253 = vpop.permute.xlu0 %2252
  %2254 = vrot.lane.b32.xlu0 %v1968, 56
  %v2255 = vpop.permute.xlu0 %2254
  %2256 = vrot.lane.b32.xlu0 %v1969, 56
  %v2257 = vpop.permute.xlu0 %2256
  %v2262 = vsel %vm78, %v2249, 0
  %v2265 = vsel %vm78, %v2250, 0
  %v2268 = vsel %vm78, %v2251, 0
  %2270 = vmatpush.bf16.msra.mxu0 0
  %2271 = vmatpush.bf16.msra.mxu0 0
  %2272 = vmatpush.bf16.msra.mxu0 0
  %2273 = vmatpush.bf16.msra.mxu0 0
  %2274 = vmatpush.bf16.msra.mxu0 0
  %2275 = vmatpush.bf16.msra.mxu0 %v2257
  %2276 = vmatpush.bf16.msra.mxu0 %v2255
  %2277 = vmatpush.bf16.msra.mxu0 %v2253
  %2278 = vmatmul.bf16.gmra.mxu0 %v2262
  %v2279 = vpop.f32.mrf.mxu0
  %v2280 = vadd.f32 0.0, %v2279
  %v2281 = vpop.f32.mrf.mxu0
  %v2282 = vadd.f32 0.0, %v2281
  %2283 = vmatmul.bf16.gmra.mxu0 %v2265
  %v2284 = vpop.f32.mrf.mxu0
  %v2285 = vadd.f32 0.0, %v2284
  %v2286 = vpop.f32.mrf.mxu0
  %v2287 = vadd.f32 0.0, %v2286
  %2288 = vmatmul.bf16.gmra.mxu0 %v2268
  %v2289 = vpop.f32.mrf.mxu0
  %v2290 = vadd.f32 0.0, %v2289
  %v2291 = vpop.f32.mrf.mxu0
  %v2292 = vadd.f32 0.0, %v2291
  %2293 = vdwg.mxu0
  %2294 = vrot.lane.b32.xlu0 %v1952, 112
  %v2295 = vpop.permute.xlu0 %2294
  %2296 = vrot.lane.b32.xlu0 %v1953, 112
  %v2297 = vpop.permute.xlu0 %2296
  %2298 = vrot.lane.b32.xlu0 %v1954, 112
  %v2299 = vpop.permute.xlu0 %2298
  %2300 = vrot.lane.b32.xlu0 %v1967, 80
  %v2301 = vpop.permute.xlu0 %2300
  %2302 = vrot.lane.b32.xlu0 %v1968, 80
  %v2303 = vpop.permute.xlu0 %2302
  %2304 = vrot.lane.b32.xlu0 %v1969, 80
  %v2305 = vpop.permute.xlu0 %2304
  %v2307 = vsel %vm465, %v2295, 0
  %v2310 = vsel %vm465, %v2297, 0
  %v2313 = vsel %vm465, %v2299, 0
  %v2316 = vsel %vm465, %v2301, 0
  %v2319 = vsel %vm465, %v2303, 0
  %v2322 = vsel %vm465, %v2305, 0
  %2324 = vmatpush.bf16.xpose.msra.mxu0 0
  %2325 = vmatpush.bf16.xpose.msra.mxu0 0
  %2326 = vmatpush.bf16.xpose.msra.mxu0 0
  %2327 = vmatpush.bf16.xpose.msra.mxu0 0
  %2328 = vmatpush.bf16.xpose.msra.mxu0 0
  %2329 = vmatpush.bf16.xpose.msra.mxu0 %v2322
  %2330 = vmatpush.bf16.xpose.msra.mxu0 %v2319
  %2331 = vmatpush.bf16.xpose.msra.mxu0 %v2316
  %2332 = vmatmul.bf16.gmra.mxu0 %v2307
  %v2333 = vpop.f32.mrf.mxu0
  %v2334 = vadd.f32 %v218, %v2333
  %v2335 = vpop.f32.mrf.mxu0
  %v2336 = vadd.f32 %v219, %v2335
  %2337 = vmatmul.bf16.gmra.mxu0 %v2310
  %v2338 = vpop.f32.mrf.mxu0
  %v2339 = vadd.f32 %v220, %v2338
  %v2340 = vpop.f32.mrf.mxu0
  %v2341 = vadd.f32 %v221, %v2340
  %2342 = vmatmul.bf16.gmra.mxu0 %v2313
  %v2343 = vpop.f32.mrf.mxu0
  %v2344 = vadd.f32 %v222, %v2343
  %v2345 = vpop.f32.mrf.mxu0
  %v2346 = vadd.f32 %v223, %v2345
  %2347 = vdwg.mxu0
  %v2348 = vsel %vm78, %v2334, -inf
  %2349 = vmax.xlane.f32.xlu0 %v2348
  %v2350 = vpop.xlane.xlu0 %2349
  %v2351 = vsel %vm78, %v2336, -inf
  %2352 = vmax.xlane.f32.xlu0 %v2351
  %v2353 = vpop.xlane.xlu0 %2352
  %v2354 = vsel %vm78, %v2339, -inf
  %2355 = vmax.xlane.f32.xlu0 %v2354
  %v2356 = vpop.xlane.xlu0 %2355
  %v2357 = vsel %vm78, %v2341, -inf
  %2358 = vmax.xlane.f32.xlu0 %v2357
  %v2359 = vpop.xlane.xlu0 %2358
  %v2360 = vsel %vm78, %v2344, -inf
  %2361 = vmax.xlane.f32.xlu0 %v2360
  %v2362 = vpop.xlane.xlu0 %2361
  %v2363 = vsel %vm78, %v2346, -inf
  %2364 = vmax.xlane.f32.xlu0 %v2363
  %v2365 = vpop.xlane.xlu0 %2364
  %v2366 = vsub.f32 %v2334, %v2350
  %v2367 = vsub.f32 %v2336, %v2353
  %v2368 = vsub.f32 %v2339, %v2356
  %v2369 = vsub.f32 %v2341, %v2359
  %v2370 = vsub.f32 %v2344, %v2362
  %v2371 = vsub.f32 %v2346, %v2365
  %v2372 = vmul.f32 %v2366, 1.442695
  %v2373 = vpow.pop %v2372
  %v2374 = vmul.f32 %v2367, 1.442695
  %v2375 = vpow.pop %v2374
  %v2376 = vmul.f32 %v2368, 1.442695
  %v2377 = vpow.pop %v2376
  %v2378 = vmul.f32 %v2369, 1.442695
  %v2379 = vpow.pop %v2378
  %v2380 = vmul.f32 %v2370, 1.442695
  %v2381 = vpow.pop %v2380
  %v2382 = vmul.f32 %v2371, 1.442695
  %v2383 = vpow.pop %v2382
  %v2384 = vsel %vm78, %v2373, 0.0
  %2385 = vadd.xlane.f32.xlu0 %v2384
  %v2386 = vpop.xlane.xlu0 %2385
  %v2387 = vsel %vm78, %v2375, 0.0
  %2388 = vadd.xlane.f32.xlu0 %v2387
  %v2389 = vpop.xlane.xlu0 %2388
  %v2390 = vsel %vm78, %v2377, 0.0
  %2391 = vadd.xlane.f32.xlu0 %v2390
  %v2392 = vpop.xlane.xlu0 %2391
  %v2393 = vsel %vm78, %v2379, 0.0
  %2394 = vadd.xlane.f32.xlu0 %v2393
  %v2395 = vpop.xlane.xlu0 %2394
  %v2396 = vsel %vm78, %v2381, 0.0
  %2397 = vadd.xlane.f32.xlu0 %v2396
  %v2398 = vpop.xlane.xlu0 %2397
  %v2399 = vsel %vm78, %v2383, 0.0
  %2400 = vadd.xlane.f32.xlu0 %v2399
  %v2401 = vpop.xlane.xlu0 %2400
  %v2402 = vrcp.pop %v2386
  %v2403 = vrcp.pop %v2389
  %v2404 = vrcp.pop %v2392
  %v2405 = vrcp.pop %v2395
  %v2406 = vrcp.pop %v2398
  %v2407 = vrcp.pop %v2401
  %v2408 = vmul.f32 %v2373, %v2402
  %v2409 = vmul.f32 %v2375, %v2403
  %v2410 = vmul.f32 %v2377, %v2404
  %v2411 = vmul.f32 %v2379, %v2405
  %v2412 = vmul.f32 %v2381, %v2406
  %v2413 = vmul.f32 %v2383, %v2407
  %v2414 = vpack.c.bf16 %v2409, %v2408
  %v2415 = vpack.c.bf16 %v2411, %v2410
  %v2416 = vpack.c.bf16 %v2413, %v2412
  %2417 = vrot.lane.b32.xlu0 %v1967, 48
  %v2418 = vpop.permute.xlu0 %2417
  %2419 = vrot.lane.b32.xlu0 %v1968, 48
  %v2420 = vpop.permute.xlu0 %2419
  %2421 = vrot.lane.b32.xlu0 %v1969, 48
  %v2422 = vpop.permute.xlu0 %2421
  %v2427 = vsel %vm78, %v2414, 0
  %v2430 = vsel %vm78, %v2415, 0
  %v2433 = vsel %vm78, %v2416, 0
  %2435 = vmatpush.bf16.msra.mxu0 0
  %2436 = vmatpush.bf16.msra.mxu0 0
  %2437 = vmatpush.bf16.msra.mxu0 0
  %2438 = vmatpush.bf16.msra.mxu0 0
  %2439 = vmatpush.bf16.msra.mxu0 0
  %2440 = vmatpush.bf16.msra.mxu0 %v2422
  %2441 = vmatpush.bf16.msra.mxu0 %v2420
  %2442 = vmatpush.bf16.msra.mxu0 %v2418
  %2443 = vmatmul.bf16.gmra.mxu0 %v2427
  %v2444 = vpop.f32.mrf.mxu0
  %v2445 = vadd.f32 0.0, %v2444
  %v2446 = vpop.f32.mrf.mxu0
  %v2447 = vadd.f32 0.0, %v2446
  %2448 = vmatmul.bf16.gmra.mxu0 %v2430
  %v2449 = vpop.f32.mrf.mxu0
  %v2450 = vadd.f32 0.0, %v2449
  %v2451 = vpop.f32.mrf.mxu0
  %v2452 = vadd.f32 0.0, %v2451
  %2453 = vmatmul.bf16.gmra.mxu0 %v2433
  %v2454 = vpop.f32.mrf.mxu0
  %v2455 = vadd.f32 0.0, %v2454
  %v2456 = vpop.f32.mrf.mxu0
  %v2457 = vadd.f32 0.0, %v2456
  %2458 = vdwg.mxu0
  %2459 = vrot.lane.b32.xlu0 %v1952, 104
  %v2460 = vpop.permute.xlu0 %2459
  %2461 = vrot.lane.b32.xlu0 %v1953, 104
  %v2462 = vpop.permute.xlu0 %2461
  %2463 = vrot.lane.b32.xlu0 %v1954, 104
  %v2464 = vpop.permute.xlu0 %2463
  %2465 = vrot.lane.b32.xlu0 %v1967, 72
  %v2466 = vpop.permute.xlu0 %2465
  %2467 = vrot.lane.b32.xlu0 %v1968, 72
  %v2468 = vpop.permute.xlu0 %2467
  %2469 = vrot.lane.b32.xlu0 %v1969, 72
  %v2470 = vpop.permute.xlu0 %2469
  %v2472 = vsel %vm465, %v2460, 0
  %v2475 = vsel %vm465, %v2462, 0
  %v2478 = vsel %vm465, %v2464, 0
  %v2481 = vsel %vm465, %v2466, 0
  %v2484 = vsel %vm465, %v2468, 0
  %v2487 = vsel %vm465, %v2470, 0
  %2489 = vmatpush.bf16.xpose.msra.mxu0 0
  %2490 = vmatpush.bf16.xpose.msra.mxu0 0
  %2491 = vmatpush.bf16.xpose.msra.mxu0 0
  %2492 = vmatpush.bf16.xpose.msra.mxu0 0
  %2493 = vmatpush.bf16.xpose.msra.mxu0 0
  %2494 = vmatpush.bf16.xpose.msra.mxu0 %v2487
  %2495 = vmatpush.bf16.xpose.msra.mxu0 %v2484
  %2496 = vmatpush.bf16.xpose.msra.mxu0 %v2481
  %2497 = vmatmul.bf16.gmra.mxu0 %v2472
  %v2498 = vpop.f32.mrf.mxu0
  %v2499 = vadd.f32 %v218, %v2498
  %v2500 = vpop.f32.mrf.mxu0
  %v2501 = vadd.f32 %v219, %v2500
  %2502 = vmatmul.bf16.gmra.mxu0 %v2475
  %v2503 = vpop.f32.mrf.mxu0
  %v2504 = vadd.f32 %v220, %v2503
  %v2505 = vpop.f32.mrf.mxu0
  %v2506 = vadd.f32 %v221, %v2505
  %2507 = vmatmul.bf16.gmra.mxu0 %v2478
  %v2508 = vpop.f32.mrf.mxu0
  %v2509 = vadd.f32 %v222, %v2508
  %v2510 = vpop.f32.mrf.mxu0
  %v2511 = vadd.f32 %v223, %v2510
  %2512 = vdwg.mxu0
  %v2513 = vsel %vm78, %v2499, -inf
  %2514 = vmax.xlane.f32.xlu0 %v2513
  %v2515 = vpop.xlane.xlu0 %2514
  %v2516 = vsel %vm78, %v2501, -inf
  %2517 = vmax.xlane.f32.xlu0 %v2516
  %v2518 = vpop.xlane.xlu0 %2517
  %v2519 = vsel %vm78, %v2504, -inf
  %2520 = vmax.xlane.f32.xlu0 %v2519
  %v2521 = vpop.xlane.xlu0 %2520
  %v2522 = vsel %vm78, %v2506, -inf
  %2523 = vmax.xlane.f32.xlu0 %v2522
  %v2524 = vpop.xlane.xlu0 %2523
  %v2525 = vsel %vm78, %v2509, -inf
  %2526 = vmax.xlane.f32.xlu0 %v2525
  %v2527 = vpop.xlane.xlu0 %2526
  %v2528 = vsel %vm78, %v2511, -inf
  %2529 = vmax.xlane.f32.xlu0 %v2528
  %v2530 = vpop.xlane.xlu0 %2529
  %v2531 = vsub.f32 %v2499, %v2515
  %v2532 = vsub.f32 %v2501, %v2518
  %v2533 = vsub.f32 %v2504, %v2521
  %v2534 = vsub.f32 %v2506, %v2524
  %v2535 = vsub.f32 %v2509, %v2527
  %v2536 = vsub.f32 %v2511, %v2530
  %v2537 = vmul.f32 %v2531, 1.442695
  %v2538 = vpow.pop %v2537
  %v2539 = vmul.f32 %v2532, 1.442695
  %v2540 = vpow.pop %v2539
  %v2541 = vmul.f32 %v2533, 1.442695
  %v2542 = vpow.pop %v2541
  %v2543 = vmul.f32 %v2534, 1.442695
  %v2544 = vpow.pop %v2543
  %v2545 = vmul.f32 %v2535, 1.442695
  %v2546 = vpow.pop %v2545
  %v2547 = vmul.f32 %v2536, 1.442695
  %v2548 = vpow.pop %v2547
  %v2549 = vsel %vm78, %v2538, 0.0
  %2550 = vadd.xlane.f32.xlu0 %v2549
  %v2551 = vpop.xlane.xlu0 %2550
  %v2552 = vsel %vm78, %v2540, 0.0
  %2553 = vadd.xlane.f32.xlu0 %v2552
  %v2554 = vpop.xlane.xlu0 %2553
  %v2555 = vsel %vm78, %v2542, 0.0
  %2556 = vadd.xlane.f32.xlu0 %v2555
  %v2557 = vpop.xlane.xlu0 %2556
  %v2558 = vsel %vm78, %v2544, 0.0
  %2559 = vadd.xlane.f32.xlu0 %v2558
  %v2560 = vpop.xlane.xlu0 %2559
  %v2561 = vsel %vm78, %v2546, 0.0
  %2562 = vadd.xlane.f32.xlu0 %v2561
  %v2563 = vpop.xlane.xlu0 %2562
  %v2564 = vsel %vm78, %v2548, 0.0
  %2565 = vadd.xlane.f32.xlu0 %v2564
  %v2566 = vpop.xlane.xlu0 %2565
  %v2567 = vrcp.pop %v2551
  %v2568 = vrcp.pop %v2554
  %v2569 = vrcp.pop %v2557
  %v2570 = vrcp.pop %v2560
  %v2571 = vrcp.pop %v2563
  %v2572 = vrcp.pop %v2566
  %v2573 = vmul.f32 %v2538, %v2567
  %v2574 = vmul.f32 %v2540, %v2568
  %v2575 = vmul.f32 %v2542, %v2569
  %v2576 = vmul.f32 %v2544, %v2570
  %v2577 = vmul.f32 %v2546, %v2571
  %v2578 = vmul.f32 %v2548, %v2572
  %v2579 = vpack.c.bf16 %v2574, %v2573
  %v2580 = vpack.c.bf16 %v2576, %v2575
  %v2581 = vpack.c.bf16 %v2578, %v2577
  %2582 = vrot.lane.b32.xlu0 %v1967, 40
  %v2583 = vpop.permute.xlu0 %2582
  %2584 = vrot.lane.b32.xlu0 %v1968, 40
  %v2585 = vpop.permute.xlu0 %2584
  %2586 = vrot.lane.b32.xlu0 %v1969, 40
  %v2587 = vpop.permute.xlu0 %2586
  %v2592 = vsel %vm78, %v2579, 0
  %v2595 = vsel %vm78, %v2580, 0
  %v2598 = vsel %vm78, %v2581, 0
  %2600 = vmatpush.bf16.msra.mxu0 0
  %2601 = vmatpush.bf16.msra.mxu0 0
  %2602 = vmatpush.bf16.msra.mxu0 0
  %2603 = vmatpush.bf16.msra.mxu0 0
  %2604 = vmatpush.bf16.msra.mxu0 0
  %2605 = vmatpush.bf16.msra.mxu0 %v2587
  %2606 = vmatpush.bf16.msra.mxu0 %v2585
  %2607 = vmatpush.bf16.msra.mxu0 %v2583
  %2608 = vmatmul.bf16.gmra.mxu0 %v2592
  %v2609 = vpop.f32.mrf.mxu0
  %v2610 = vadd.f32 0.0, %v2609
  %v2611 = vpop.f32.mrf.mxu0
  %v2612 = vadd.f32 0.0, %v2611
  %2613 = vmatmul.bf16.gmra.mxu0 %v2595
  %v2614 = vpop.f32.mrf.mxu0
  %v2615 = vadd.f32 0.0, %v2614
  %v2616 = vpop.f32.mrf.mxu0
  %v2617 = vadd.f32 0.0, %v2616
  %2618 = vmatmul.bf16.gmra.mxu0 %v2598
  %v2619 = vpop.f32.mrf.mxu0
  %v2620 = vadd.f32 0.0, %v2619
  %v2621 = vpop.f32.mrf.mxu0
  %v2622 = vadd.f32 0.0, %v2621
  %2623 = vdwg.mxu0
  %2630 = vrot.lane.b32.xlu0 %v2280, 8
  %v2631 = vpop.permute.xlu0 %2630
  %2632 = vrot.lane.b32.xlu0 %v2282, 8
  %v2633 = vpop.permute.xlu0 %2632
  %2634 = vrot.lane.b32.xlu0 %v2285, 8
  %v2635 = vpop.permute.xlu0 %2634
  %2636 = vrot.lane.b32.xlu0 %v2287, 8
  %v2637 = vpop.permute.xlu0 %2636
  %2638 = vrot.lane.b32.xlu0 %v2290, 8
  %v2639 = vpop.permute.xlu0 %2638
  %2640 = vrot.lane.b32.xlu0 %v2292, 8
  %v2641 = vpop.permute.xlu0 %2640
  %2654 = vrot.lane.b32.xlu0 %v2445, 16
  %v2655 = vpop.permute.xlu0 %2654
  %2656 = vrot.lane.b32.xlu0 %v2447, 16
  %v2657 = vpop.permute.xlu0 %2656
  %2658 = vrot.lane.b32.xlu0 %v2450, 16
  %v2659 = vpop.permute.xlu0 %2658
  %2660 = vrot.lane.b32.xlu0 %v2452, 16
  %v2661 = vpop.permute.xlu0 %2660
  %2662 = vrot.lane.b32.xlu0 %v2455, 16
  %v2663 = vpop.permute.xlu0 %2662
  %2664 = vrot.lane.b32.xlu0 %v2457, 16
  %v2665 = vpop.permute.xlu0 %2664
  %2678 = vrot.lane.b32.xlu0 %v2610, 24
  %v2679 = vpop.permute.xlu0 %2678
  %2680 = vrot.lane.b32.xlu0 %v2612, 24
  %v2681 = vpop.permute.xlu0 %2680
  %2682 = vrot.lane.b32.xlu0 %v2615, 24
  %v2683 = vpop.permute.xlu0 %2682
  %2684 = vrot.lane.b32.xlu0 %v2617, 24
  %v2685 = vpop.permute.xlu0 %2684
  %2686 = vrot.lane.b32.xlu0 %v2620, 24
  %v2687 = vpop.permute.xlu0 %2686
  %2688 = vrot.lane.b32.xlu0 %v2622, 24
  %v2689 = vpop.permute.xlu0 %2688
  %v2696 = vsel %vm465, %v2115, %v2631
  %v2697 = vsel %vm465, %v2117, %v2633
  %v2698 = vsel %vm465, %v2120, %v2635
  %v2699 = vsel %vm465, %v2122, %v2637
  %v2700 = vsel %vm465, %v2125, %v2639
  %v2701 = vsel %vm465, %v2127, %v2641
  %v2702 = vsel %vm1192, %v2696, %v2655
  %v2703 = vsel %vm1192, %v2697, %v2657
  %v2704 = vsel %vm1192, %v2698, %v2659
  %v2705 = vsel %vm1192, %v2699, %v2661
  %v2706 = vsel %vm1192, %v2700, %v2663
  %v2707 = vsel %vm1192, %v2701, %v2665
  %v2708 = vsel %vm1199, %v2702, %v2679
  %v2709 = vsel %vm1199, %v2703, %v2681
  %v2710 = vsel %vm1199, %v2704, %v2683
  %v2711 = vsel %vm1199, %v2705, %v2685
  %v2712 = vsel %vm1199, %v2706, %v2687
  %v2713 = vsel %vm1199, %v2707, %v2689
  %v2714 = vpack.c.bf16 %v2709, %v2708
  %v2715 = vpack.c.bf16 %v2711, %v2710
  %v2716 = vpack.c.bf16 %v2713, %v2712
  %s2717 = scalar_lea.vmem %s8, 16
  %v2718 = vld [vmem:[%s2717] sm:$0xf]
  %v2719 = vld [vmem:[%s2717 + $0x4] sm:$0xf]
  %v2720 = vld [vmem:[%s2717 + $0x8] sm:$0xf]
  %v2721 = vld [vmem:[%s2717 + $0xc] sm:$0xf]
  %v2722 = vperm.slane %v1707, 2
  %v2727 = vunpack.c.l.b16 %v2718
  %v2728 = vunpack.c.l.b16 %v2719
  %v2729 = vunpack.c.l.b16 %v2720
  %v2730 = vunpack.c.l.b16 %v2721
  %v2731 = vpack.c.b16 %v2728, %v2727
  %v2732 = vpack.c.b16 %v2730, %v2729
  %v2736 = vsel %vm104, %v2714, 0
  %v2739 = vsel %vm104, %v2715, 0
  %v2742 = vsel %vm104, %v2716, 0
  %2744 = vmatpush.bf16.msra.mxu0 0
  %2745 = vmatpush.bf16.msra.mxu0 0
  %2746 = vmatpush.bf16.msra.mxu0 0
  %2747 = vmatpush.bf16.msra.mxu0 0
  %2748 = vmatpush.bf16.msra.mxu0 0
  %2749 = vmatpush.bf16.msra.mxu0 0
  %2750 = vmatpush.bf16.msra.mxu0 %v2732
  %2751 = vmatpush.bf16.msra.mxu0 %v2731
  %2752 = vmatmul.bf16.gmra.mxu0 %v2736
  %v2753 = vpop.f32.mrf.mxu0
  %v2754 = vadd.f32 %v2722, %v2753
  %v2755 = vpop.f32.mrf.mxu0
  %v2756 = vadd.f32 %v2722, %v2755
  %2757 = vmatmul.bf16.gmra.mxu0 %v2739
  %v2758 = vpop.f32.mrf.mxu0
  %v2759 = vadd.f32 %v2722, %v2758
  %v2760 = vpop.f32.mrf.mxu0
  %v2761 = vadd.f32 %v2722, %v2760
  %2762 = vmatmul.bf16.gmra.mxu0 %v2742
  %v2763 = vpop.f32.mrf.mxu0
  %v2764 = vadd.f32 %v2722, %v2763
  %v2765 = vpop.f32.mrf.mxu0
  %v2766 = vadd.f32 %v2722, %v2765
  %2767 = vdwg.mxu0
  %v2768 = vadd.f32 %v1700, %v2754
  %v2769 = vadd.f32 %v1701, %v2756
  %v2770 = vadd.f32 %v1702, %v2759
  %v2771 = vadd.f32 %v1703, %v2761
  %v2772 = vadd.f32 %v1704, %v2764
  %v2773 = vadd.f32 %v1705, %v2766
  %v2774 = vsel %vm104, %v2768, 0.0
  %2775 = vadd.xlane.f32.xlu0 %v2774
  %v2776 = vpop.xlane.xlu0 %2775
  %v2777 = vsel %vm104, %v2769, 0.0
  %2778 = vadd.xlane.f32.xlu0 %v2777
  %v2779 = vpop.xlane.xlu0 %2778
  %v2780 = vsel %vm104, %v2770, 0.0
  %2781 = vadd.xlane.f32.xlu0 %v2780
  %v2782 = vpop.xlane.xlu0 %2781
  %v2783 = vsel %vm104, %v2771, 0.0
  %2784 = vadd.xlane.f32.xlu0 %v2783
  %v2785 = vpop.xlane.xlu0 %2784
  %v2786 = vsel %vm104, %v2772, 0.0
  %2787 = vadd.xlane.f32.xlu0 %v2786
  %v2788 = vpop.xlane.xlu0 %2787
  %v2789 = vsel %vm104, %v2773, 0.0
  %2790 = vadd.xlane.f32.xlu0 %v2789
  %v2791 = vpop.xlane.xlu0 %2790
  %v2792 = vmul.f32 %v2776, %v123
  %v2793 = vmul.f32 %v2779, %v123
  %v2794 = vmul.f32 %v2782, %v123
  %v2795 = vmul.f32 %v2785, %v123
  %v2796 = vmul.f32 %v2788, %v123
  %v2797 = vmul.f32 %v2791, %v123
  %v2798 = vmul.f32 %v2768, %v2768
  %v2799 = vmul.f32 %v2769, %v2769
  %v2800 = vmul.f32 %v2770, %v2770
  %v2801 = vmul.f32 %v2771, %v2771
  %v2802 = vmul.f32 %v2772, %v2772
  %v2803 = vmul.f32 %v2773, %v2773
  %v2804 = vsel %vm104, %v2798, 0.0
  %2805 = vadd.xlane.f32.xlu0 %v2804
  %v2806 = vpop.xlane.xlu0 %2805
  %v2807 = vsel %vm104, %v2799, 0.0
  %2808 = vadd.xlane.f32.xlu0 %v2807
  %v2809 = vpop.xlane.xlu0 %2808
  %v2810 = vsel %vm104, %v2800, 0.0
  %2811 = vadd.xlane.f32.xlu0 %v2810
  %v2812 = vpop.xlane.xlu0 %2811
  %v2813 = vsel %vm104, %v2801, 0.0
  %2814 = vadd.xlane.f32.xlu0 %v2813
  %v2815 = vpop.xlane.xlu0 %2814
  %v2816 = vsel %vm104, %v2802, 0.0
  %2817 = vadd.xlane.f32.xlu0 %v2816
  %v2818 = vpop.xlane.xlu0 %2817
  %v2819 = vsel %vm104, %v2803, 0.0
  %2820 = vadd.xlane.f32.xlu0 %v2819
  %v2821 = vpop.xlane.xlu0 %2820
  %v2822 = vmul.f32 %v2806, %v123
  %v2823 = vmul.f32 %v2809, %v123
  %v2824 = vmul.f32 %v2812, %v123
  %v2825 = vmul.f32 %v2815, %v123
  %v2826 = vmul.f32 %v2818, %v123
  %v2827 = vmul.f32 %v2821, %v123
  %v2828 = vmul.f32 %v2792, %v2792
  %v2829 = vmul.f32 %v2793, %v2793
  %v2830 = vmul.f32 %v2794, %v2794
  %v2831 = vmul.f32 %v2795, %v2795
  %v2832 = vmul.f32 %v2796, %v2796
  %v2833 = vmul.f32 %v2797, %v2797
  %v2834 = vsub.f32 %v2822, %v2828
  %v2835 = vsub.f32 %v2823, %v2829
  %v2836 = vsub.f32 %v2824, %v2830
  %v2837 = vsub.f32 %v2825, %v2831
  %v2838 = vsub.f32 %v2826, %v2832
  %v2839 = vsub.f32 %v2827, %v2833
  %v2840 = vsub.f32 %v2768, %v2792
  %v2841 = vsub.f32 %v2769, %v2793
  %v2842 = vsub.f32 %v2770, %v2794
  %v2843 = vsub.f32 %v2771, %v2795
  %v2844 = vsub.f32 %v2772, %v2796
  %v2845 = vsub.f32 %v2773, %v2797
  %v2846 = vadd.f32 %v2834, 1e-05
  %v2847 = vadd.f32 %v2835, 1e-05
  %v2848 = vadd.f32 %v2836, 1e-05
  %v2849 = vadd.f32 %v2837, 1e-05
  %v2850 = vadd.f32 %v2838, 1e-05
  %v2851 = vadd.f32 %v2839, 1e-05
  %v2852 = vrsqrt.pop %v2846
  %v2853 = vmul.f32 %v2852, %v2846
  %v2854 = vmul.f32 %v2853, %v2852
  %v2855 = vmul.f32 0.5, %v2854
  %v2856 = vsub.f32 1.5, %v2855
  %v2857 = vmul.f32 %v2852, %v2856
  %vm2858 = vweird.f32 %v2846
  %vm2859 = vweird.f32 %v2852
  %vm2860 = vmor %vm2858, %vm2859
  %v2861 = vsel %vm2860, %v2852, %v2857
  %v2862 = vrsqrt.pop %v2847
  %v2863 = vmul.f32 %v2862, %v2847
  %v2864 = vmul.f32 %v2863, %v2862
  %v2865 = vmul.f32 0.5, %v2864
  %v2866 = vsub.f32 1.5, %v2865
  %v2867 = vmul.f32 %v2862, %v2866
  %vm2868 = vweird.f32 %v2847
  %vm2869 = vweird.f32 %v2862
  %vm2870 = vmor %vm2868, %vm2869
  %v2871 = vsel %vm2870, %v2862, %v2867
  %v2872 = vrsqrt.pop %v2848
  %v2873 = vmul.f32 %v2872, %v2848
  %v2874 = vmul.f32 %v2873, %v2872
  %v2875 = vmul.f32 0.5, %v2874
  %v2876 = vsub.f32 1.5, %v2875
  %v2877 = vmul.f32 %v2872, %v2876
  %vm2878 = vweird.f32 %v2848
  %vm2879 = vweird.f32 %v2872
  %vm2880 = vmor %vm2878, %vm2879
  %v2881 = vsel %vm2880, %v2872, %v2877
  %v2882 = vrsqrt.pop %v2849
  %v2883 = vmul.f32 %v2882, %v2849
  %v2884 = vmul.f32 %v2883, %v2882
  %v2885 = vmul.f32 0.5, %v2884
  %v2886 = vsub.f32 1.5, %v2885
  %v2887 = vmul.f32 %v2882, %v2886
  %vm2888 = vweird.f32 %v2849
  %vm2889 = vweird.f32 %v2882
  %vm2890 = vmor %vm2888, %vm2889
  %v2891 = vsel %vm2890, %v2882, %v2887
  %v2892 = vrsqrt.pop %v2850
  %v2893 = vmul.f32 %v2892, %v2850
  %v2894 = vmul.f32 %v2893, %v2892
  %v2895 = vmul.f32 0.5, %v2894
  %v2896 = vsub.f32 1.5, %v2895
  %v2897 = vmul.f32 %v2892, %v2896
  %vm2898 = vweird.f32 %v2850
  %vm2899 = vweird.f32 %v2892
  %vm2900 = vmor %vm2898, %vm2899
  %v2901 = vsel %vm2900, %v2892, %v2897
  %v2902 = vrsqrt.pop %v2851
  %v2903 = vmul.f32 %v2902, %v2851
  %v2904 = vmul.f32 %v2903, %v2902
  %v2905 = vmul.f32 0.5, %v2904
  %v2906 = vsub.f32 1.5, %v2905
  %v2907 = vmul.f32 %v2902, %v2906
  %vm2908 = vweird.f32 %v2851
  %vm2909 = vweird.f32 %v2902
  %vm2910 = vmor %vm2908, %vm2909
  %v2911 = vsel %vm2910, %v2902, %v2907
  %v2912 = vmul.f32 %v2840, %v2861
  %v2913 = vmul.f32 %v2841, %v2871
  %v2914 = vmul.f32 %v2842, %v2881
  %v2915 = vmul.f32 %v2843, %v2891
  %v2916 = vmul.f32 %v2844, %v2901
  %v2917 = vmul.f32 %v2845, %v2911
  %v2918 = vperm.slane %v1707, 3
  %v2919 = vmul.f32 %v2912, %v2918
  %v2920 = vmul.f32 %v2913, %v2918
  %v2921 = vmul.f32 %v2914, %v2918
  %v2922 = vmul.f32 %v2915, %v2918
  %v2923 = vmul.f32 %v2916, %v2918
  %v2924 = vmul.f32 %v2917, %v2918
  %v2925 = vperm.slane %v1707, 4
  %v2926 = vadd.f32 %v2919, %v2925
  %v2927 = vadd.f32 %v2920, %v2925
  %v2928 = vadd.f32 %v2921, %v2925
  %v2929 = vadd.f32 %v2922, %v2925
  %v2930 = vadd.f32 %v2923, %v2925
  %v2931 = vadd.f32 %v2924, %v2925
  %v2932 = vpack.c.bf16 %v2927, %v2926
  %v2933 = vpack.c.bf16 %v2929, %v2928
  %v2934 = vpack.c.bf16 %v2931, %v2930
  %s2935 = scalar_lea.vmem %s9, 16
  %v2936 = vld [vmem:[%s2935] sm:$0xf]
  %v2937 = vld [vmem:[%s2935 + $0x4] sm:$0xf]
  %v2938 = vld [vmem:[%s2935 + $0x8] sm:$0xf]
  %v2939 = vld [vmem:[%s2935 + $0xc] sm:$0xf]
  %v2940 = vperm.slane %v1709, 1
  %v2945 = vunpack.c.l.b16 %v2936
  %v2946 = vunpack.c.l.b16 %v2937
  %v2947 = vunpack.c.l.b16 %v2938
  %v2948 = vunpack.c.l.b16 %v2939
  %v2949 = vpack.c.b16 %v2946, %v2945
  %v2950 = vpack.c.b16 %v2948, %v2947
  %v2954 = vsel %vm104, %v2932, 0
  %v2957 = vsel %vm104, %v2933, 0
  %v2960 = vsel %vm104, %v2934, 0
  %2962 = vmatpush.bf16.msra.mxu0 0
  %2963 = vmatpush.bf16.msra.mxu0 0
  %2964 = vmatpush.bf16.msra.mxu0 0
  %2965 = vmatpush.bf16.msra.mxu0 0
  %2966 = vmatpush.bf16.msra.mxu0 0
  %2967 = vmatpush.bf16.msra.mxu0 0
  %2968 = vmatpush.bf16.msra.mxu0 %v2950
  %2969 = vmatpush.bf16.msra.mxu0 %v2949
  %2970 = vmatmul.bf16.gmra.mxu0 %v2954
  %v2971 = vpop.f32.mrf.mxu0
  %v2972 = vadd.f32 %v2940, %v2971
  %v2973 = vpop.f32.mrf.mxu0
  %v2974 = vadd.f32 %v2940, %v2973
  %2975 = vmatmul.bf16.gmra.mxu0 %v2957
  %v2976 = vpop.f32.mrf.mxu0
  %v2977 = vadd.f32 %v2940, %v2976
  %v2978 = vpop.f32.mrf.mxu0
  %v2979 = vadd.f32 %v2940, %v2978
  %2980 = vmatmul.bf16.gmra.mxu0 %v2960
  %v2981 = vpop.f32.mrf.mxu0
  %v2982 = vadd.f32 %v2940, %v2981
  %v2983 = vpop.f32.mrf.mxu0
  %v2984 = vadd.f32 %v2940, %v2983
  %2985 = vdwg.mxu0
  %v2986 = vmul.f32 %v2972, 1.702
  %v2987 = vmul.f32 %v2974, 1.702
  %v2988 = vmul.f32 %v2977, 1.702
  %v2989 = vmul.f32 %v2979, 1.702
  %v2990 = vmul.f32 %v2982, 1.702
  %v2991 = vmul.f32 %v2984, 1.702
  %v2992 = vxor.u32 %v2986, 2147483648
  %v2993 = vxor.u32 %v2987, 2147483648
  %v2994 = vxor.u32 %v2988, 2147483648
  %v2995 = vxor.u32 %v2989, 2147483648
  %v2996 = vxor.u32 %v2990, 2147483648
  %v2997 = vxor.u32 %v2991, 2147483648
  %v2998 = vmul.f32 %v2992, 1.442695
  %v2999 = vpow.pop %v2998
  %v3000 = vmul.f32 %v2993, 1.442695
  %v3001 = vpow.pop %v3000
  %v3002 = vmul.f32 %v2994, 1.442695
  %v3003 = vpow.pop %v3002
  %v3004 = vmul.f32 %v2995, 1.442695
  %v3005 = vpow.pop %v3004
  %v3006 = vmul.f32 %v2996, 1.442695
  %v3007 = vpow.pop %v3006
  %v3008 = vmul.f32 %v2997, 1.442695
  %v3009 = vpow.pop %v3008
  %v3010 = vadd.f32 %v2999, 1.0
  %v3011 = vadd.f32 %v3001, 1.0
  %v3012 = vadd.f32 %v3003, 1.0
  %v3013 = vadd.f32 %v3005, 1.0
  %v3014 = vadd.f32 %v3007, 1.0
  %v3015 = vadd.f32 %v3009, 1.0
  %v3016 = vrcp.pop %v3010
  %v3017 = vmul.f32 %v3010, %v3016
  %v3018 = vsub.f32 1.0, %v3017
  %v3019 = vmul.f32 %v3016, %v3018
  %v3020 = vadd.f32 %v3016, %v3019
  %vm3021 = vweird.f32 %v3010
  %vm3022 = vweird.f32 %v3016
  %vm3023 = vmor %vm3021, %vm3022
  %v3024 = vsel %vm3023, %v3016, %v3020
  %v3025 = vand.u32 2147483647, %v3010
  %vm3026 = vcmp.eq.f32.partialorder %v3025, 8.507059e+37
  %v3027 = vand.u32 %v3010, 2147483648
  %v3028 = vor.u32 1.1754944e-38, %v3027
  %v3029 = vsel %vm3026, %v3028, %v3024
  %v3030 = vmul.f32 1.0, %v3029
  %v3031 = vrcp.pop %v3011
  %v3032 = vmul.f32 %v3011, %v3031
  %v3033 = vsub.f32 1.0, %v3032
  %v3034 = vmul.f32 %v3031, %v3033
  %v3035 = vadd.f32 %v3031, %v3034
  %vm3036 = vweird.f32 %v3011
  %vm3037 = vweird.f32 %v3031
  %vm3038 = vmor %vm3036, %vm3037
  %v3039 = vsel %vm3038, %v3031, %v3035
  %v3040 = vand.u32 2147483647, %v3011
  %vm3041 = vcmp.eq.f32.partialorder %v3040, 8.507059e+37
  %v3042 = vand.u32 %v3011, 2147483648
  %v3043 = vor.u32 1.1754944e-38, %v3042
  %v3044 = vsel %vm3041, %v3043, %v3039
  %v3045 = vmul.f32 1.0, %v3044
  %v3046 = vrcp.pop %v3012
  %v3047 = vmul.f32 %v3012, %v3046
  %v3048 = vsub.f32 1.0, %v3047
  %v3049 = vmul.f32 %v3046, %v3048
  %v3050 = vadd.f32 %v3046, %v3049
  %vm3051 = vweird.f32 %v3012
  %vm3052 = vweird.f32 %v3046
  %vm3053 = vmor %vm3051, %vm3052
  %v3054 = vsel %vm3053, %v3046, %v3050
  %v3055 = vand.u32 2147483647, %v3012
  %vm3056 = vcmp.eq.f32.partialorder %v3055, 8.507059e+37
  %v3057 = vand.u32 %v3012, 2147483648
  %v3058 = vor.u32 1.1754944e-38, %v3057
  %v3059 = vsel %vm3056, %v3058, %v3054
  %v3060 = vmul.f32 1.0, %v3059
  %v3061 = vrcp.pop %v3013
  %v3062 = vmul.f32 %v3013, %v3061
  %v3063 = vsub.f32 1.0, %v3062
  %v3064 = vmul.f32 %v3061, %v3063
  %v3065 = vadd.f32 %v3061, %v3064
  %vm3066 = vweird.f32 %v3013
  %vm3067 = vweird.f32 %v3061
  %vm3068 = vmor %vm3066, %vm3067
  %v3069 = vsel %vm3068, %v3061, %v3065
  %v3070 = vand.u32 2147483647, %v3013
  %vm3071 = vcmp.eq.f32.partialorder %v3070, 8.507059e+37
  %v3072 = vand.u32 %v3013, 2147483648
  %v3073 = vor.u32 1.1754944e-38, %v3072
  %v3074 = vsel %vm3071, %v3073, %v3069
  %v3075 = vmul.f32 1.0, %v3074
  %v3076 = vrcp.pop %v3014
  %v3077 = vmul.f32 %v3014, %v3076
  %v3078 = vsub.f32 1.0, %v3077
  %v3079 = vmul.f32 %v3076, %v3078
  %v3080 = vadd.f32 %v3076, %v3079
  %vm3081 = vweird.f32 %v3014
  %vm3082 = vweird.f32 %v3076
  %vm3083 = vmor %vm3081, %vm3082
  %v3084 = vsel %vm3083, %v3076, %v3080
  %v3085 = vand.u32 2147483647, %v3014
  %vm3086 = vcmp.eq.f32.partialorder %v3085, 8.507059e+37
  %v3087 = vand.u32 %v3014, 2147483648
  %v3088 = vor.u32 1.1754944e-38, %v3087
  %v3089 = vsel %vm3086, %v3088, %v3084
  %v3090 = vmul.f32 1.0, %v3089
  %v3091 = vrcp.pop %v3015
  %v3092 = vmul.f32 %v3015, %v3091
  %v3093 = vsub.f32 1.0, %v3092
  %v3094 = vmul.f32 %v3091, %v3093
  %v3095 = vadd.f32 %v3091, %v3094
  %vm3096 = vweird.f32 %v3015
  %vm3097 = vweird.f32 %v3091
  %vm3098 = vmor %vm3096, %vm3097
  %v3099 = vsel %vm3098, %v3091, %v3095
  %v3100 = vand.u32 2147483647, %v3015
  %vm3101 = vcmp.eq.f32.partialorder %v3100, 8.507059e+37
  %v3102 = vand.u32 %v3015, 2147483648
  %v3103 = vor.u32 1.1754944e-38, %v3102
  %v3104 = vsel %vm3101, %v3103, %v3099
  %v3105 = vmul.f32 1.0, %v3104
  %v3106 = vmul.f32 %v2972, %v3030
  %v3107 = vmul.f32 %v2974, %v3045
  %v3108 = vmul.f32 %v2977, %v3060
  %v3109 = vmul.f32 %v2979, %v3075
  %v3110 = vmul.f32 %v2982, %v3090
  %v3111 = vmul.f32 %v2984, %v3105
  %v3112 = vpack.c.bf16 %v3107, %v3106
  %v3113 = vpack.c.bf16 %v3109, %v3108
  %v3114 = vpack.c.bf16 %v3111, %v3110
  %s3115 = scalar_lea.vmem %s10, 64
  %v3116 = vld [vmem:[%s3115] sm:$0xf]
  %v3117 = vld [vmem:[%s3115 + $0x4] sm:$0xf]
  %v3118 = vld [vmem:[%s3115 + $0x8] sm:$0xf]
  %v3119 = vld [vmem:[%s3115 + $0xc] sm:$0xf]
  %v3120 = vld [vmem:[%s3115 + $0x10] sm:$0xf]
  %v3121 = vld [vmem:[%s3115 + $0x14] sm:$0xf]
  %v3122 = vld [vmem:[%s3115 + $0x18] sm:$0xf]
  %v3123 = vld [vmem:[%s3115 + $0x1c] sm:$0xf]
  %v3124 = vld [vmem:[%s3115 + $0x20] sm:$0xf]
  %v3125 = vld [vmem:[%s3115 + $0x24] sm:$0xf]
  %v3126 = vld [vmem:[%s3115 + $0x28] sm:$0xf]
  %v3127 = vld [vmem:[%s3115 + $0x2c] sm:$0xf]
  %v3128 = vld [vmem:[%s3115 + $0x30] sm:$0xf]
  %v3129 = vld [vmem:[%s3115 + $0x34] sm:$0xf]
  %v3130 = vld [vmem:[%s3115 + $0x38] sm:$0xf]
  %v3131 = vld [vmem:[%s3115 + $0x3c] sm:$0xf]
  %v3148 = vunpack.c.l.b16 %v3116
  %v3149 = vunpack.c.l.b16 %v3117
  %v3150 = vunpack.c.l.b16 %v3118
  %v3151 = vunpack.c.l.b16 %v3119
  %v3152 = vunpack.c.l.b16 %v3120
  %v3153 = vunpack.c.l.b16 %v3121
  %v3154 = vunpack.c.l.b16 %v3122
  %v3155 = vunpack.c.l.b16 %v3123
  %v3156 = vunpack.c.l.b16 %v3124
  %v3157 = vunpack.c.l.b16 %v3125
  %v3158 = vunpack.c.l.b16 %v3126
  %v3159 = vunpack.c.l.b16 %v3127
  %v3160 = vunpack.c.l.b16 %v3128
  %v3161 = vunpack.c.l.b16 %v3129
  %v3162 = vunpack.c.l.b16 %v3130
  %v3163 = vunpack.c.l.b16 %v3131
  %v3164 = vpack.c.b16 %v3149, %v3148
  %v3165 = vpack.c.b16 %v3151, %v3150
  %v3166 = vpack.c.b16 %v3153, %v3152
  %v3167 = vpack.c.b16 %v3155, %v3154
  %v3168 = vpack.c.b16 %v3157, %v3156
  %v3169 = vpack.c.b16 %v3159, %v3158
  %v3170 = vpack.c.b16 %v3161, %v3160
  %v3171 = vpack.c.b16 %v3163, %v3162
  %3180 = vmatpush.bf16.msra.mxu0 %v3171
  %3181 = vmatpush.bf16.msra.mxu0 %v3170
  %3182 = vmatpush.bf16.msra.mxu0 %v3169
  %3183 = vmatpush.bf16.msra.mxu0 %v3168
  %3184 = vmatpush.bf16.msra.mxu0 %v3167
  %3185 = vmatpush.bf16.msra.mxu0 %v3166
  %3186 = vmatpush.bf16.msra.mxu0 %v3165
  %3187 = vmatpush.bf16.msra.mxu0 %v3164
  %3188 = vmatmul.bf16.gmra.mxu0 %v3112
  %v3189 = vpop.f32.mrf.mxu0
  %v3190 = vadd.f32 0.0, %v3189
  %v3191 = vpop.f32.mrf.mxu0
  %v3192 = vadd.f32 0.0, %v3191
  %3193 = vmatmul.bf16.gmra.mxu0 %v3113
  %v3194 = vpop.f32.mrf.mxu0
  %v3195 = vadd.f32 0.0, %v3194
  %v3196 = vpop.f32.mrf.mxu0
  %v3197 = vadd.f32 0.0, %v3196
  %3198 = vmatmul.bf16.gmra.mxu0 %v3114
  %v3199 = vpop.f32.mrf.mxu0
  %v3200 = vadd.f32 0.0, %v3199
  %v3201 = vpop.f32.mrf.mxu0
  %v3202 = vadd.f32 0.0, %v3201
  %3203 = vdwg.mxu0
  %v3204 = vadd.f32 %v2768, %v3190
  %v3205 = vadd.f32 %v2769, %v3192
  %v3206 = vadd.f32 %v2770, %v3195
  %v3207 = vadd.f32 %v2771, %v3197
  %v3208 = vadd.f32 %v2772, %v3200
  %v3209 = vadd.f32 %v2773, %v3202
  %v3210 = vperm.slane %v1707, 5
  %v3211 = vadd.f32 %v3204, %v3210
  %v3212 = vadd.f32 %v3205, %v3210
  %v3213 = vadd.f32 %v3206, %v3210
  %v3214 = vadd.f32 %v3207, %v3210
  %v3215 = vadd.f32 %v3208, %v3210
  %v3216 = vadd.f32 %v3209, %v3210
  %v3217 = vsel %vm104, %v3211, 0.0
  %3218 = vadd.xlane.f32.xlu0 %v3217
  %v3219 = vpop.xlane.xlu0 %3218
  %v3220 = vsel %vm104, %v3212, 0.0
  %3221 = vadd.xlane.f32.xlu0 %v3220
  %v3222 = vpop.xlane.xlu0 %3221
  %v3223 = vsel %vm104, %v3213, 0.0
  %3224 = vadd.xlane.f32.xlu0 %v3223
  %v3225 = vpop.xlane.xlu0 %3224
  %v3226 = vsel %vm104, %v3214, 0.0
  %3227 = vadd.xlane.f32.xlu0 %v3226
  %v3228 = vpop.xlane.xlu0 %3227
  %v3229 = vsel %vm104, %v3215, 0.0
  %3230 = vadd.xlane.f32.xlu0 %v3229
  %v3231 = vpop.xlane.xlu0 %3230
  %v3232 = vsel %vm104, %v3216, 0.0
  %3233 = vadd.xlane.f32.xlu0 %v3232
  %v3234 = vpop.xlane.xlu0 %3233
  %v3235 = vmul.f32 %v3219, %v123
  %v3236 = vmul.f32 %v3222, %v123
  %v3237 = vmul.f32 %v3225, %v123
  %v3238 = vmul.f32 %v3228, %v123
  %v3239 = vmul.f32 %v3231, %v123
  %v3240 = vmul.f32 %v3234, %v123
  %v3241 = vmul.f32 %v3211, %v3211
  %v3242 = vmul.f32 %v3212, %v3212
  %v3243 = vmul.f32 %v3213, %v3213
  %v3244 = vmul.f32 %v3214, %v3214
  %v3245 = vmul.f32 %v3215, %v3215
  %v3246 = vmul.f32 %v3216, %v3216
  %v3247 = vsel %vm104, %v3241, 0.0
  %3248 = vadd.xlane.f32.xlu0 %v3247
  %v3249 = vpop.xlane.xlu0 %3248
  %v3250 = vsel %vm104, %v3242, 0.0
  %3251 = vadd.xlane.f32.xlu0 %v3250
  %v3252 = vpop.xlane.xlu0 %3251
  %v3253 = vsel %vm104, %v3243, 0.0
  %3254 = vadd.xlane.f32.xlu0 %v3253
  %v3255 = vpop.xlane.xlu0 %3254
  %v3256 = vsel %vm104, %v3244, 0.0
  %3257 = vadd.xlane.f32.xlu0 %v3256
  %v3258 = vpop.xlane.xlu0 %3257
  %v3259 = vsel %vm104, %v3245, 0.0
  %3260 = vadd.xlane.f32.xlu0 %v3259
  %v3261 = vpop.xlane.xlu0 %3260
  %v3262 = vsel %vm104, %v3246, 0.0
  %3263 = vadd.xlane.f32.xlu0 %v3262
  %v3264 = vpop.xlane.xlu0 %3263
  %v3265 = vmul.f32 %v3249, %v123
  %v3266 = vmul.f32 %v3252, %v123
  %v3267 = vmul.f32 %v3255, %v123
  %v3268 = vmul.f32 %v3258, %v123
  %v3269 = vmul.f32 %v3261, %v123
  %v3270 = vmul.f32 %v3264, %v123
  %v3271 = vmul.f32 %v3235, %v3235
  %v3272 = vmul.f32 %v3236, %v3236
  %v3273 = vmul.f32 %v3237, %v3237
  %v3274 = vmul.f32 %v3238, %v3238
  %v3275 = vmul.f32 %v3239, %v3239
  %v3276 = vmul.f32 %v3240, %v3240
  %v3277 = vsub.f32 %v3265, %v3271
  %v3278 = vsub.f32 %v3266, %v3272
  %v3279 = vsub.f32 %v3267, %v3273
  %v3280 = vsub.f32 %v3268, %v3274
  %v3281 = vsub.f32 %v3269, %v3275
  %v3282 = vsub.f32 %v3270, %v3276
  %v3283 = vsub.f32 %v3211, %v3235
  %v3284 = vsub.f32 %v3212, %v3236
  %v3285 = vsub.f32 %v3213, %v3237
  %v3286 = vsub.f32 %v3214, %v3238
  %v3287 = vsub.f32 %v3215, %v3239
  %v3288 = vsub.f32 %v3216, %v3240
  %v3289 = vadd.f32 %v3277, 1e-05
  %v3290 = vadd.f32 %v3278, 1e-05
  %v3291 = vadd.f32 %v3279, 1e-05
  %v3292 = vadd.f32 %v3280, 1e-05
  %v3293 = vadd.f32 %v3281, 1e-05
  %v3294 = vadd.f32 %v3282, 1e-05
  %v3295 = vrsqrt.pop %v3289
  %v3296 = vmul.f32 %v3295, %v3289
  %v3297 = vmul.f32 %v3296, %v3295
  %v3298 = vmul.f32 0.5, %v3297
  %v3299 = vsub.f32 1.5, %v3298
  %v3300 = vmul.f32 %v3295, %v3299
  %vm3301 = vweird.f32 %v3289
  %vm3302 = vweird.f32 %v3295
  %vm3303 = vmor %vm3301, %vm3302
  %v3304 = vsel %vm3303, %v3295, %v3300
  %v3305 = vrsqrt.pop %v3290
  %v3306 = vmul.f32 %v3305, %v3290
  %v3307 = vmul.f32 %v3306, %v3305
  %v3308 = vmul.f32 0.5, %v3307
  %v3309 = vsub.f32 1.5, %v3308
  %v3310 = vmul.f32 %v3305, %v3309
  %vm3311 = vweird.f32 %v3290
  %vm3312 = vweird.f32 %v3305
  %vm3313 = vmor %vm3311, %vm3312
  %v3314 = vsel %vm3313, %v3305, %v3310
  %v3315 = vrsqrt.pop %v3291
  %v3316 = vmul.f32 %v3315, %v3291
  %v3317 = vmul.f32 %v3316, %v3315
  %v3318 = vmul.f32 0.5, %v3317
  %v3319 = vsub.f32 1.5, %v3318
  %v3320 = vmul.f32 %v3315, %v3319
  %vm3321 = vweird.f32 %v3291
  %vm3322 = vweird.f32 %v3315
  %vm3323 = vmor %vm3321, %vm3322
  %v3324 = vsel %vm3323, %v3315, %v3320
  %v3325 = vrsqrt.pop %v3292
  %v3326 = vmul.f32 %v3325, %v3292
  %v3327 = vmul.f32 %v3326, %v3325
  %v3328 = vmul.f32 0.5, %v3327
  %v3329 = vsub.f32 1.5, %v3328
  %v3330 = vmul.f32 %v3325, %v3329
  %vm3331 = vweird.f32 %v3292
  %vm3332 = vweird.f32 %v3325
  %vm3333 = vmor %vm3331, %vm3332
  %v3334 = vsel %vm3333, %v3325, %v3330
  %v3335 = vrsqrt.pop %v3293
  %v3336 = vmul.f32 %v3335, %v3293
  %v3337 = vmul.f32 %v3336, %v3335
  %v3338 = vmul.f32 0.5, %v3337
  %v3339 = vsub.f32 1.5, %v3338
  %v3340 = vmul.f32 %v3335, %v3339
  %vm3341 = vweird.f32 %v3293
  %vm3342 = vweird.f32 %v3335
  %vm3343 = vmor %vm3341, %vm3342
  %v3344 = vsel %vm3343, %v3335, %v3340
  %v3345 = vrsqrt.pop %v3294
  %v3346 = vmul.f32 %v3345, %v3294
  %v3347 = vmul.f32 %v3346, %v3345
  %v3348 = vmul.f32 0.5, %v3347
  %v3349 = vsub.f32 1.5, %v3348
  %v3350 = vmul.f32 %v3345, %v3349
  %vm3351 = vweird.f32 %v3294
  %vm3352 = vweird.f32 %v3345
  %vm3353 = vmor %vm3351, %vm3352
  %v3354 = vsel %vm3353, %v3345, %v3350
  %v3355 = vmul.f32 %v3283, %v3304
  %v3356 = vmul.f32 %v3284, %v3314
  %v3357 = vmul.f32 %v3285, %v3324
  %v3358 = vmul.f32 %v3286, %v3334
  %v3359 = vmul.f32 %v3287, %v3344
  %v3360 = vmul.f32 %v3288, %v3354
  %v3361 = vperm.slane %v42, 2
  %v3362 = vmul.f32 %v3355, %v3361
  %v3363 = vmul.f32 %v3356, %v3361
  %v3364 = vmul.f32 %v3357, %v3361
  %v3365 = vmul.f32 %v3358, %v3361
  %v3366 = vmul.f32 %v3359, %v3361
  %v3367 = vmul.f32 %v3360, %v3361
  %v3368 = vperm.slane %v42, 3
  %v3369 = vadd.f32 %v3362, %v3368
  %v3370 = vadd.f32 %v3363, %v3368
  %v3371 = vadd.f32 %v3364, %v3368
  %v3372 = vadd.f32 %v3365, %v3368
  %v3373 = vadd.f32 %v3366, %v3368
  %v3374 = vadd.f32 %v3367, %v3368
  %v3375 = vpack.c.bf16 %v3370, %v3369
  %v3376 = vpack.c.bf16 %v3372, %v3371
  %v3377 = vpack.c.bf16 %v3374, %v3373
  %v3378 = vld [vmem:[%s11] sm:$0xf]
  %v3379 = vld [vmem:[%s11 + $0x4] sm:$0xf]
  %v3380 = vld [vmem:[%s11 + $0x8] sm:$0xf]
  %v3381 = vld [vmem:[%s11 + $0xc] sm:$0xf]
  %v3386 = vunpack.c.l.b16 %v3378
  %v3387 = vunpack.c.l.b16 %v3379
  %v3388 = vunpack.c.l.b16 %v3380
  %v3389 = vunpack.c.l.b16 %v3381
  %v3390 = vpack.c.b16 %v3387, %v3386
  %v3391 = vpack.c.b16 %v3389, %v3388
  %v3395 = vsel %vm104, %v3375, 0
  %v3398 = vsel %vm104, %v3376, 0
  %v3401 = vsel %vm104, %v3377, 0
  %3403 = vmatpush.bf16.msra.mxu0 0
  %3404 = vmatpush.bf16.msra.mxu0 0
  %3405 = vmatpush.bf16.msra.mxu0 0
  %3406 = vmatpush.bf16.msra.mxu0 0
  %3407 = vmatpush.bf16.msra.mxu0 0
  %3408 = vmatpush.bf16.msra.mxu0 0
  %3409 = vmatpush.bf16.msra.mxu0 %v3391
  %3410 = vmatpush.bf16.msra.mxu0 %v3390
  %3411 = vmatmul.bf16.gmra.mxu0 %v3395
  %v3412 = vpop.f32.mrf.mxu0
  %v3413 = vadd.f32 0.0, %v3412
  %v3414 = vpop.f32.mrf.mxu0
  %v3415 = vadd.f32 0.0, %v3414
  %3416 = vmatmul.bf16.gmra.mxu0 %v3398
  %v3417 = vpop.f32.mrf.mxu0
  %v3418 = vadd.f32 0.0, %v3417
  %v3419 = vpop.f32.mrf.mxu0
  %v3420 = vadd.f32 0.0, %v3419
  %3421 = vmatmul.bf16.gmra.mxu0 %v3401
  %v3422 = vpop.f32.mrf.mxu0
  %v3423 = vadd.f32 0.0, %v3422
  %v3424 = vpop.f32.mrf.mxu0
  %v3425 = vadd.f32 0.0, %v3424
  %3426 = vdwg.mxu0
  %v3427 = vmul.f32 %v3413, %v3413
  %v3428 = vmul.f32 %v3415, %v3415
  %v3429 = vmul.f32 %v3418, %v3418
  %v3430 = vmul.f32 %v3420, %v3420
  %v3431 = vmul.f32 %v3423, %v3423
  %v3432 = vmul.f32 %v3425, %v3425
  %3433 = vadd.xlane.f32.xlu0 %v3427
  %v3434 = vpop.xlane.xlu0 %3433
  %3435 = vadd.xlane.f32.xlu0 %v3428
  %v3436 = vpop.xlane.xlu0 %3435
  %3437 = vadd.xlane.f32.xlu0 %v3429
  %v3438 = vpop.xlane.xlu0 %3437
  %3439 = vadd.xlane.f32.xlu0 %v3430
  %v3440 = vpop.xlane.xlu0 %3439
  %3441 = vadd.xlane.f32.xlu0 %v3431
  %v3442 = vpop.xlane.xlu0 %3441
  %3443 = vadd.xlane.f32.xlu0 %v3432
  %v3444 = vpop.xlane.xlu0 %3443
  %v3445 = vadd.f32 %v3434, 1e-12
  %v3446 = vadd.f32 %v3436, 1e-12
  %v3447 = vadd.f32 %v3438, 1e-12
  %v3448 = vadd.f32 %v3440, 1e-12
  %v3449 = vadd.f32 %v3442, 1e-12
  %v3450 = vadd.f32 %v3444, 1e-12
  %v3451 = vrsqrt.pop %v3445
  %v3452 = vmul.f32 %v3451, %v3445
  %v3453 = vmul.f32 %v3452, %v3451
  %v3454 = vmul.f32 0.5, %v3453
  %v3455 = vsub.f32 1.5, %v3454
  %v3456 = vmul.f32 %v3451, %v3455
  %vm3457 = vweird.f32 %v3445
  %vm3458 = vweird.f32 %v3451
  %vm3459 = vmor %vm3457, %vm3458
  %v3460 = vsel %vm3459, %v3451, %v3456
  %v3461 = vrsqrt.pop %v3446
  %v3462 = vmul.f32 %v3461, %v3446
  %v3463 = vmul.f32 %v3462, %v3461
  %v3464 = vmul.f32 0.5, %v3463
  %v3465 = vsub.f32 1.5, %v3464
  %v3466 = vmul.f32 %v3461, %v3465
  %vm3467 = vweird.f32 %v3446
  %vm3468 = vweird.f32 %v3461
  %vm3469 = vmor %vm3467, %vm3468
  %v3470 = vsel %vm3469, %v3461, %v3466
  %v3471 = vrsqrt.pop %v3447
  %v3472 = vmul.f32 %v3471, %v3447
  %v3473 = vmul.f32 %v3472, %v3471
  %v3474 = vmul.f32 0.5, %v3473
  %v3475 = vsub.f32 1.5, %v3474
  %v3476 = vmul.f32 %v3471, %v3475
  %vm3477 = vweird.f32 %v3447
  %vm3478 = vweird.f32 %v3471
  %vm3479 = vmor %vm3477, %vm3478
  %v3480 = vsel %vm3479, %v3471, %v3476
  %v3481 = vrsqrt.pop %v3448
  %v3482 = vmul.f32 %v3481, %v3448
  %v3483 = vmul.f32 %v3482, %v3481
  %v3484 = vmul.f32 0.5, %v3483
  %v3485 = vsub.f32 1.5, %v3484
  %v3486 = vmul.f32 %v3481, %v3485
  %vm3487 = vweird.f32 %v3448
  %vm3488 = vweird.f32 %v3481
  %vm3489 = vmor %vm3487, %vm3488
  %v3490 = vsel %vm3489, %v3481, %v3486
  %v3491 = vrsqrt.pop %v3449
  %v3492 = vmul.f32 %v3491, %v3449
  %v3493 = vmul.f32 %v3492, %v3491
  %v3494 = vmul.f32 0.5, %v3493
  %v3495 = vsub.f32 1.5, %v3494
  %v3496 = vmul.f32 %v3491, %v3495
  %vm3497 = vweird.f32 %v3449
  %vm3498 = vweird.f32 %v3491
  %vm3499 = vmor %vm3497, %vm3498
  %v3500 = vsel %vm3499, %v3491, %v3496
  %v3501 = vrsqrt.pop %v3450
  %v3502 = vmul.f32 %v3501, %v3450
  %v3503 = vmul.f32 %v3502, %v3501
  %v3504 = vmul.f32 0.5, %v3503
  %v3505 = vsub.f32 1.5, %v3504
  %v3506 = vmul.f32 %v3501, %v3505
  %vm3507 = vweird.f32 %v3450
  %vm3508 = vweird.f32 %v3501
  %vm3509 = vmor %vm3507, %vm3508
  %v3510 = vsel %vm3509, %v3501, %v3506
  %v3511 = vmul.f32 %v3413, %v3460
  %v3512 = vmul.f32 %v3415, %v3470
  %v3513 = vmul.f32 %v3418, %v3480
  %v3514 = vmul.f32 %v3420, %v3490
  %v3515 = vmul.f32 %v3423, %v3500
  %v3516 = vmul.f32 %v3425, %v3510
  %3517 = vst [vmem:[%s12] sm:$0xff] %v3511
  %3518 = vst [vmem:[%s12 + $0x8] sm:$0xff] %v3512
  %3519 = vst [vmem:[%s12 + $0x10] sm:$0xff] %v3513
  %3520 = vst [vmem:[%s12 + $0x18] sm:$0xff] %v3514
  %3521 = vst [vmem:[%s12 + $0x20] sm:$0xff] %v3515
  %3522 = vst [vmem:[%s12 + $0x28] sm:$0xff] %v3516
  // Predicated region
  $region50: #{zegclip_forward.1} parent=0 // pred_check
    _
  $region51: #{zegclip_forward.1} parent=0 // pred_check_branch
    %3524 = sbr.rel (0) target = $region53
  $region52: #{zegclip_forward.1} parent=0 // pred_region
    _
  $region53: #{zegclip_forward.1} parent=0 // pred_fallthru
    _
  // Predicated region
  $region54: #{zegclip_forward.1} parent=0 // pred_check
    _
  $region55: #{zegclip_forward.1} parent=0 // pred_check_branch
    %3526 = sbr.rel (0) target = $region57
  $region56: #{zegclip_forward.1} parent=0 // pred_region
    _
  $region57: #{zegclip_forward.1} parent=0 // pred_fallthru
    _

</llo_original>
